<compile_context>
chip_gen: v7x
topology: tpu7x:2x2x1
jax: 0.10.0
libtpu: 0.0.40
codegen_flags: <defaults>
</compile_context>

<pallas_src>
import jax
import jax.numpy as jnp
from jax import lax
from jax.experimental import pallas as pl
from jax.experimental.pallas import tpu as pltpu

_EPS = 1e-5  # PyTorch BatchNorm2d default


# ---------------------------------------------------------------------------
# Fused Bottleneck kernel (one batch image per grid step)
# ---------------------------------------------------------------------------
def _bottleneck_kernel(x_ref, w1_ref, b1_ref, w2_ref, b2_ref, w3_ref, b3_ref,
                       o_ref, h1p_ref):
    """x:(1,H,W,Cin)  w1:(Cin,P)  w2:(9*P,P)  w3:(P,Cout)  b*: (1,C)  o:(1,H,W,Cout).

    h1p_ref: VMEM scratch (1, H+2, W+2, P) used as the zero-padded conv1 output.
    """
    _, H, W, Cin = x_ref.shape
    P = w2_ref.shape[-1]
    Cout = o_ref.shape[-1]
    N = H * W

    # Flatten spatial dims -> lane-dense (N, Cin) matrix (leading-dim collapse only).
    x2d = x_ref[...].reshape(N, Cin)

    # ---- conv1 (1x1) + bn1 (folded) + ReLU: one MXU matmul -------------------
    h1 = jnp.dot(x2d, w1_ref[...], preferred_element_type=jnp.float32) + b1_ref[...]
    h1 = jnp.maximum(h1, 0.0)

    # ---- zero-pad conv1 output spatially by 1 into VMEM scratch --------------
    h1p_ref[...] = jnp.zeros_like(h1p_ref)
    h1p_ref[:, 1:H + 1, 1:W + 1, :] = h1.reshape(1, H, W, P)
    h1p = h1p_ref[...]

    # ---- conv2 (3x3, stride 1, pad 1) + bn2 (folded) + ReLU ------------------
    # 9 shifted-window tap matmuls on the MXU (accumulate in f32).
    acc = jnp.zeros((N, P), jnp.float32)
    for kh in range(3):
        for kw in range(3):
            k = kh * 3 + kw
            patch = h1p[:, kh:kh + H, kw:kw + W, :].reshape(N, P)
            acc = acc + jnp.dot(patch, w2_ref[k * P:(k + 1) * P, :],
                                preferred_element_type=jnp.float32)
    h2 = jnp.maximum(acc + b2_ref[...], 0.0)

    # ---- conv3 (1x1) + bn3 (folded) + residual + ReLU ------------------------
    h3 = jnp.dot(h2, w3_ref[...], preferred_element_type=jnp.float32) + b3_ref[...]
    out = jnp.maximum(h3 + x2d, 0.0)

    # Single lane-dense full-block store.
    o_ref[...] = out.reshape(1, H, W, Cout)


# ---------------------------------------------------------------------------
# Wrapper
# ---------------------------------------------------------------------------
@jax.jit
def bottleneck_forward(x_nchw, fp):
    """x_nchw: (B, Cin, H, W) like the PyTorch module; returns (B, Cout, H, W)."""
    x = jnp.transpose(x_nchw, (0, 2, 3, 1)).astype(jnp.float32)  # NCHW -> NHWC
    B, H, W, Cin = x.shape
    P = fp["w2"].shape[-1]
    Cout = fp["w3"].shape[-1]

    out = pl.pallas_call(
        _bottleneck_kernel,
        out_shape=jax.ShapeDtypeStruct((B, H, W, Cout), jnp.float32),
        grid_spec=pltpu.PrefetchScalarGridSpec(
            num_scalar_prefetch=0,
            grid=(B,),
            in_specs=[
                pl.BlockSpec((1, H, W, Cin), lambda b: (b, 0, 0, 0)),  # x
                pl.BlockSpec((Cin, P), lambda b: (0, 0)),              # w1
                pl.BlockSpec((1, P), lambda b: (0, 0)),                # b1
                pl.BlockSpec((9 * P, P), lambda b: (0, 0)),            # w2 (taps stacked)
                pl.BlockSpec((1, P), lambda b: (0, 0)),                # b2
                pl.BlockSpec((P, Cout), lambda b: (0, 0)),             # w3
                pl.BlockSpec((1, Cout), lambda b: (0, 0)),             # b3
            ],
            out_specs=pl.BlockSpec((1, H, W, Cout), lambda b: (b, 0, 0, 0)),
            scratch_shapes=[pltpu.VMEM((1, H + 2, W + 2, P), jnp.float32)],
        ),
        compiler_params=pltpu.CompilerParams(
            dimension_semantics=("parallel",)),
    )(x, fp["w1"], fp["b1"], fp["w2"], fp["b2"], fp["w3"], fp["b3"])

    return jnp.transpose(out, (0, 3, 1, 2))  # NHWC -> NCHW


# ---------------------------------------------------------------------------
# Parameters: raw (PyTorch-like) params and eval-mode BN folding
# ---------------------------------------------------------------------------
def init_params(key, inplanes, planes):
    """Conv weights in HWIO layout; BN params (gamma, beta, running_mean, running_var)."""
    cout = planes * 4
    assert inplanes == cout, "stride=1 / downsample=None requires inplanes == 4*planes"
    ks = jax.random.split(key, 6)
    s = 0.05

    def bn(k, c):
        k1, k2, k3, k4 = jax.random.split(k, 4)
        return (1.0 + 0.1 * jax.random.normal(k1, (c,), jnp.float32),   # gamma
                0.1 * jax.random.normal(k2, (c,), jnp.float32),         # beta
                0.1 * jax.random.normal(k3, (c,), jnp.float32),         # running_mean
                0.5 + jax.random.uniform(k4, (c,), jnp.float32))        # running_var > 0

    g1, be1, m1, v1 = bn(ks[3], planes)
    g2, be2, m2, v2 = bn(ks[4], planes)
    g3, be3, m3, v3 = bn(ks[5], cout)
    return {
        "conv1_w": s * jax.random.normal(ks[0], (1, 1, inplanes, planes), jnp.float32),
        "conv2_w": s * jax.random.normal(ks[1], (3, 3, planes, planes), jnp.float32),
        "conv3_w": s * jax.random.normal(ks[2], (1, 1, planes, cout), jnp.float32),
        "bn1_g": g1, "bn1_b": be1, "bn1_m": m1, "bn1_v": v1,
        "bn2_g": g2, "bn2_b": be2, "bn2_m": m2, "bn2_v": v2,
        "bn3_g": g3, "bn3_b": be3, "bn3_m": m3, "bn3_v": v3,
    }


def fold_bn_params(p):
    """Fold eval-mode BatchNorm into the (bias-free) conv weights + per-channel bias."""
    def scale_shift(g, b, m, v):
        s = g / jnp.sqrt(v + _EPS)
        return s, b - m * s

    s1, t1 = scale_shift(p["bn1_g"], p["bn1_b"], p["bn1_m"], p["bn1_v"])
    s2, t2 = scale_shift(p["bn2_g"], p["bn2_b"], p["bn2_m"], p["bn2_v"])
    s3, t3 = scale_shift(p["bn3_g"], p["bn3_b"], p["bn3_m"], p["bn3_v"])

    P = p["conv2_w"].shape[-1]
    w1 = p["conv1_w"][0, 0] * s1[None, :]                          # (Cin, P)
    w2 = (p["conv2_w"] * s2[None, None, None, :]).reshape(9 * P, P)  # (kh,kw,ci) rows
    w3 = p["conv3_w"][0, 0] * s3[None, :]                          # (P, Cout)
    return {"w1": w1, "b1": t1.reshape(1, -1),
            "w2": w2, "b2": t2.reshape(1, -1),
            "w3": w3, "b3": t3.reshape(1, -1)}


# ---------------------------------------------------------------------------
# Pure-JAX reference (unfolded: conv -> BN(eval) -> ReLU ..., same math as PyTorch)
# ---------------------------------------------------------------------------
def reference_forward(x_nchw, p):
    dn = ("NHWC", "HWIO", "NHWC")
    hi = lax.Precision.HIGHEST
    x = jnp.transpose(x_nchw, (0, 2, 3, 1)).astype(jnp.float32)

    def bn(y, g, b, m, v):
        return g * (y - m) / jnp.sqrt(v + _EPS) + b

    h = lax.conv_general_dilated(x, p["conv1_w"], (1, 1), "VALID",
                                 dimension_numbers=dn, precision=hi)
    h = jax.nn.relu(bn(h, p["bn1_g"], p["bn1_b"], p["bn1_m"], p["bn1_v"]))
    h = lax.conv_general_dilated(h, p["conv2_w"], (1, 1), ((1, 1), (1, 1)),
                                 dimension_numbers=dn, precision=hi)
    h = jax.nn.relu(bn(h, p["bn2_g"], p["bn2_b"], p["bn2_m"], p["bn2_v"]))
    h = lax.conv_general_dilated(h, p["conv3_w"], (1, 1), "VALID",
                                 dimension_numbers=dn, precision=hi)
    h = bn(h, p["bn3_g"], p["bn3_b"], p["bn3_m"], p["bn3_v"])
    h = jax.nn.relu(h + x)
    return jnp.transpose(h, (0, 3, 1, 2))


if __name__ == "__main__":
    key = jax.random.PRNGKey(0)
    k_in, k_par = jax.random.split(key)

    # Canonical ResNet bottleneck sizes, kept small: inplanes=256, planes=64,
    # expansion=4, stride=1, downsample=None, 16x16 spatial, batch=2.
    B, INPLANES, PLANES, H, W = 2, 256, 64, 16, 16

    params = init_params(k_par, INPLANES, PLANES)
    folded = fold_bn_params(params)
    x = jax.random.normal(k_in, (B, INPLANES, H, W), jnp.float32)

    out = jax.block_until_ready(bottleneck_forward(x, folded))
    assert out.shape == (B, INPLANES, H, W), out.shape

    ref = jax.block_until_ready(reference_forward(x, params))
    max_err = float(jnp.max(jnp.abs(out - ref)))
    assert jnp.allclose(out, ref, atol=2e-3, rtol=2e-3), max_err

    print("KERNEL_OK")
</pallas_src>

<mosaic_0001>
module attributes {stable_mosaic.version = 11 : i64} {
  func.func @_bottleneck_kernel(%arg0: i32, %arg1: memref<1x16x16x256xf32, #tpu.memory_space<vmem>>, %arg2: memref<256x64xf32, #tpu.memory_space<vmem>>, %arg3: memref<1x64xf32, #tpu.memory_space<vmem>>, %arg4: memref<576x64xf32, #tpu.memory_space<vmem>>, %arg5: memref<1x64xf32, #tpu.memory_space<vmem>>, %arg6: memref<64x256xf32, #tpu.memory_space<vmem>>, %arg7: memref<1x256xf32, #tpu.memory_space<vmem>>, %arg8: memref<1x16x16x256xf32, #tpu.memory_space<vmem>>, %arg9: memref<1x18x18x64xf32, #tpu.memory_space<vmem>>) attributes {dimension_semantics = [#tpu.dimension_semantics<parallel>], iteration_bounds = array<i64: 2>, scalar_prefetch = 0 : i64, scratch_operands = 1 : i64, tpu.core_type = #tpu.core_type<tc>, window_params = [{transform_indices = @transform_0, window_bounds = array<i64: 1, 16, 16, 256>}, {pipeline_mode = #tpu.pipeline_mode<synchronous>, transform_indices = @transform_1, window_bounds = array<i64: 256, 64>}, {pipeline_mode = #tpu.pipeline_mode<synchronous>, transform_indices = @transform_2, window_bounds = array<i64: 1, 64>}, {pipeline_mode = #tpu.pipeline_mode<synchronous>, transform_indices = @transform_3, window_bounds = array<i64: 576, 64>}, {pipeline_mode = #tpu.pipeline_mode<synchronous>, transform_indices = @transform_4, window_bounds = array<i64: 1, 64>}, {pipeline_mode = #tpu.pipeline_mode<synchronous>, transform_indices = @transform_5, window_bounds = array<i64: 64, 256>}, {pipeline_mode = #tpu.pipeline_mode<synchronous>, transform_indices = @transform_6, window_bounds = array<i64: 1, 256>}, {transform_indices = @transform_7, window_bounds = array<i64: 1, 16, 16, 256>}]} {
    %c0 = arith.constant 0 : index
    %c0_0 = arith.constant 0 : index
    %c0_1 = arith.constant 0 : index
    %c0_2 = arith.constant 0 : index
    %0 = vector.load %arg1[%c0, %c0_0, %c0_1, %c0_2] : memref<1x16x16x256xf32, #tpu.memory_space<vmem>>, vector<1x16x16x256xf32>
    %1 = vector.shape_cast %0 : vector<1x16x16x256xf32> to vector<256x256xf32>
    %c0_3 = arith.constant 0 : index
    %c0_4 = arith.constant 0 : index
    %2 = vector.load %arg2[%c0_3, %c0_4] : memref<256x64xf32, #tpu.memory_space<vmem>>, vector<256x64xf32>
    %cst = arith.constant dense<0.000000e+00> : vector<256x64xf32>
    %3 = tpu.matmul %1, %2, %cst {dimension_numbers = #tpu.dot_dimension_numbers<[1], [0], [0], [1], [0, 0, 1, 1], [], []>} : vector<256x256xf32>, vector<256x64xf32>, vector<256x64xf32> -> vector<256x64xf32>
    %c0_5 = arith.constant 0 : index
    %c0_6 = arith.constant 0 : index
    %4 = vector.load %arg3[%c0_5, %c0_6] : memref<1x64xf32, #tpu.memory_space<vmem>>, vector<1x64xf32>
    %5 = vector.broadcast %4 : vector<1x64xf32> to vector<256x64xf32>
    %6 = arith.addf %3, %5 : vector<256x64xf32>
    %cst_7 = arith.constant 0.000000e+00 : f32
    %7 = vector.broadcast %cst_7 : f32 to vector<256x64xf32>
    %8 = arith.maximumf %6, %7 : vector<256x64xf32>
    %cst_8 = arith.constant 0.000000e+00 : f32
    %9 = vector.broadcast %cst_8 : f32 to vector<1x18x18x64xf32>
    %c0_9 = arith.constant 0 : index
    %c0_10 = arith.constant 0 : index
    %c0_11 = arith.constant 0 : index
    %c0_12 = arith.constant 0 : index
    %10 = vector.load %arg9[%c0_9, %c0_10, %c0_11, %c0_12] : memref<1x18x18x64xf32, #tpu.memory_space<vmem>>, vector<1x18x18x64xf32>
    tpu.vector_store %arg9[%c0_9, %c0_10, %c0_11, %c0_12], %9 {strides = array<i32>} : memref<1x18x18x64xf32, #tpu.memory_space<vmem>>, vector<1x18x18x64xf32>,
    %11 = vector.shape_cast %8 : vector<256x64xf32> to vector<1x16x16x64xf32>
    %c0_13 = arith.constant 0 : index
    %c1 = arith.constant 1 : index
    %c1_14 = arith.constant 1 : index
    %c0_15 = arith.constant 0 : index
    %12 = vector.load %arg9[%c0_13, %c1, %c1_14, %c0_15] : memref<1x18x18x64xf32, #tpu.memory_space<vmem>>, vector<1x16x16x64xf32>
    tpu.vector_store %arg9[%c0_13, %c1, %c1_14, %c0_15], %11 {strides = array<i32>} : memref<1x18x18x64xf32, #tpu.memory_space<vmem>>, vector<1x16x16x64xf32>,
    %c0_16 = arith.constant 0 : index
    %c0_17 = arith.constant 0 : index
    %c0_18 = arith.constant 0 : index
    %c0_19 = arith.constant 0 : index
    %13 = vector.load %arg9[%c0_16, %c0_17, %c0_18, %c0_19] : memref<1x18x18x64xf32, #tpu.memory_space<vmem>>, vector<1x18x18x64xf32>
    %cst_20 = arith.constant 0.000000e+00 : f32
    %14 = vector.broadcast %cst_20 : f32 to vector<256x64xf32>
    %15 = vector.extract_strided_slice %13 {offsets = [0, 0, 0, 0], sizes = [1, 16, 16, 64], strides = [1, 1, 1, 1]} : vector<1x18x18x64xf32> to vector<1x16x16x64xf32>
    %16 = vector.shape_cast %15 : vector<1x16x16x64xf32> to vector<256x64xf32>
    %c0_21 = arith.constant 0 : index
    %c0_22 = arith.constant 0 : index
    %17 = vector.load %arg4[%c0_21, %c0_22] : memref<576x64xf32, #tpu.memory_space<vmem>>, vector<64x64xf32>
    %cst_23 = arith.constant dense<0.000000e+00> : vector<256x64xf32>
    %18 = tpu.matmul %16, %17, %cst_23 {dimension_numbers = #tpu.dot_dimension_numbers<[1], [0], [0], [1], [0, 0, 1, 1], [], []>} : vector<256x64xf32>, vector<64x64xf32>, vector<256x64xf32> -> vector<256x64xf32>
    %19 = arith.addf %14, %18 : vector<256x64xf32>
    %20 = vector.extract_strided_slice %13 {offsets = [0, 0, 1, 0], sizes = [1, 16, 16, 64], strides = [1, 1, 1, 1]} : vector<1x18x18x64xf32> to vector<1x16x16x64xf32>
    %21 = vector.shape_cast %20 : vector<1x16x16x64xf32> to vector<256x64xf32>
    %c64 = arith.constant 64 : index
    %c0_24 = arith.constant 0 : index
    %22 = vector.load %arg4[%c64, %c0_24] : memref<576x64xf32, #tpu.memory_space<vmem>>, vector<64x64xf32>
    %cst_25 = arith.constant dense<0.000000e+00> : vector<256x64xf32>
    %23 = tpu.matmul %21, %22, %cst_25 {dimension_numbers = #tpu.dot_dimension_numbers<[1], [0], [0], [1], [0, 0, 1, 1], [], []>} : vector<256x64xf32>, vector<64x64xf32>, vector<256x64xf32> -> vector<256x64xf32>
    %24 = arith.addf %19, %23 : vector<256x64xf32>
    %25 = vector.extract_strided_slice %13 {offsets = [0, 0, 2, 0], sizes = [1, 16, 16, 64], strides = [1, 1, 1, 1]} : vector<1x18x18x64xf32> to vector<1x16x16x64xf32>
    %26 = vector.shape_cast %25 : vector<1x16x16x64xf32> to vector<256x64xf32>
    %c128 = arith.constant 128 : index
    %c0_26 = arith.constant 0 : index
    %27 = vector.load %arg4[%c128, %c0_26] : memref<576x64xf32, #tpu.memory_space<vmem>>, vector<64x64xf32>
    %cst_27 = arith.constant dense<0.000000e+00> : vector<256x64xf32>
    %28 = tpu.matmul %26, %27, %cst_27 {dimension_numbers = #tpu.dot_dimension_numbers<[1], [0], [0], [1], [0, 0, 1, 1], [], []>} : vector<256x64xf32>, vector<64x64xf32>, vector<256x64xf32> -> vector<256x64xf32>
    %29 = arith.addf %24, %28 : vector<256x64xf32>
    %30 = vector.extract_strided_slice %13 {offsets = [0, 1, 0, 0], sizes = [1, 16, 16, 64], strides = [1, 1, 1, 1]} : vector<1x18x18x64xf32> to vector<1x16x16x64xf32>
    %31 = vector.shape_cast %30 : vector<1x16x16x64xf32> to vector<256x64xf32>
    %c192 = arith.constant 192 : index
    %c0_28 = arith.constant 0 : index
    %32 = vector.load %arg4[%c192, %c0_28] : memref<576x64xf32, #tpu.memory_space<vmem>>, vector<64x64xf32>
    %cst_29 = arith.constant dense<0.000000e+00> : vector<256x64xf32>
    %33 = tpu.matmul %31, %32, %cst_29 {dimension_numbers = #tpu.dot_dimension_numbers<[1], [0], [0], [1], [0, 0, 1, 1], [], []>} : vector<256x64xf32>, vector<64x64xf32>, vector<256x64xf32> -> vector<256x64xf32>
    %34 = arith.addf %29, %33 : vector<256x64xf32>
    %35 = vector.extract_strided_slice %13 {offsets = [0, 1, 1, 0], sizes = [1, 16, 16, 64], strides = [1, 1, 1, 1]} : vector<1x18x18x64xf32> to vector<1x16x16x64xf32>
    %36 = vector.shape_cast %35 : vector<1x16x16x64xf32> to vector<256x64xf32>
    %c256 = arith.constant 256 : index
    %c0_30 = arith.constant 0 : index
    %37 = vector.load %arg4[%c256, %c0_30] : memref<576x64xf32, #tpu.memory_space<vmem>>, vector<64x64xf32>
    %cst_31 = arith.constant dense<0.000000e+00> : vector<256x64xf32>
    %38 = tpu.matmul %36, %37, %cst_31 {dimension_numbers = #tpu.dot_dimension_numbers<[1], [0], [0], [1], [0, 0, 1, 1], [], []>} : vector<256x64xf32>, vector<64x64xf32>, vector<256x64xf32> -> vector<256x64xf32>
    %39 = arith.addf %34, %38 : vector<256x64xf32>
    %40 = vector.extract_strided_slice %13 {offsets = [0, 1, 2, 0], sizes = [1, 16, 16, 64], strides = [1, 1, 1, 1]} : vector<1x18x18x64xf32> to vector<1x16x16x64xf32>
    %41 = vector.shape_cast %40 : vector<1x16x16x64xf32> to vector<256x64xf32>
    %c320 = arith.constant 320 : index
    %c0_32 = arith.constant 0 : index
    %42 = vector.load %arg4[%c320, %c0_32] : memref<576x64xf32, #tpu.memory_space<vmem>>, vector<64x64xf32>
    %cst_33 = arith.constant dense<0.000000e+00> : vector<256x64xf32>
    %43 = tpu.matmul %41, %42, %cst_33 {dimension_numbers = #tpu.dot_dimension_numbers<[1], [0], [0], [1], [0, 0, 1, 1], [], []>} : vector<256x64xf32>, vector<64x64xf32>, vector<256x64xf32> -> vector<256x64xf32>
    %44 = arith.addf %39, %43 : vector<256x64xf32>
    %45 = vector.extract_strided_slice %13 {offsets = [0, 2, 0, 0], sizes = [1, 16, 16, 64], strides = [1, 1, 1, 1]} : vector<1x18x18x64xf32> to vector<1x16x16x64xf32>
    %46 = vector.shape_cast %45 : vector<1x16x16x64xf32> to vector<256x64xf32>
    %c384 = arith.constant 384 : index
    %c0_34 = arith.constant 0 : index
    %47 = vector.load %arg4[%c384, %c0_34] : memref<576x64xf32, #tpu.memory_space<vmem>>, vector<64x64xf32>
    %cst_35 = arith.constant dense<0.000000e+00> : vector<256x64xf32>
    %48 = tpu.matmul %46, %47, %cst_35 {dimension_numbers = #tpu.dot_dimension_numbers<[1], [0], [0], [1], [0, 0, 1, 1], [], []>} : vector<256x64xf32>, vector<64x64xf32>, vector<256x64xf32> -> vector<256x64xf32>
    %49 = arith.addf %44, %48 : vector<256x64xf32>
    %50 = vector.extract_strided_slice %13 {offsets = [0, 2, 1, 0], sizes = [1, 16, 16, 64], strides = [1, 1, 1, 1]} : vector<1x18x18x64xf32> to vector<1x16x16x64xf32>
    %51 = vector.shape_cast %50 : vector<1x16x16x64xf32> to vector<256x64xf32>
    %c448 = arith.constant 448 : index
    %c0_36 = arith.constant 0 : index
    %52 = vector.load %arg4[%c448, %c0_36] : memref<576x64xf32, #tpu.memory_space<vmem>>, vector<64x64xf32>
    %cst_37 = arith.constant dense<0.000000e+00> : vector<256x64xf32>
    %53 = tpu.matmul %51, %52, %cst_37 {dimension_numbers = #tpu.dot_dimension_numbers<[1], [0], [0], [1], [0, 0, 1, 1], [], []>} : vector<256x64xf32>, vector<64x64xf32>, vector<256x64xf32> -> vector<256x64xf32>
    %54 = arith.addf %49, %53 : vector<256x64xf32>
    %55 = vector.extract_strided_slice %13 {offsets = [0, 2, 2, 0], sizes = [1, 16, 16, 64], strides = [1, 1, 1, 1]} : vector<1x18x18x64xf32> to vector<1x16x16x64xf32>
    %56 = vector.shape_cast %55 : vector<1x16x16x64xf32> to vector<256x64xf32>
    %c512 = arith.constant 512 : index
    %c0_38 = arith.constant 0 : index
    %57 = vector.load %arg4[%c512, %c0_38] : memref<576x64xf32, #tpu.memory_space<vmem>>, vector<64x64xf32>
    %cst_39 = arith.constant dense<0.000000e+00> : vector<256x64xf32>
    %58 = tpu.matmul %56, %57, %cst_39 {dimension_numbers = #tpu.dot_dimension_numbers<[1], [0], [0], [1], [0, 0, 1, 1], [], []>} : vector<256x64xf32>, vector<64x64xf32>, vector<256x64xf32> -> vector<256x64xf32>
    %59 = arith.addf %54, %58 : vector<256x64xf32>
    %c0_40 = arith.constant 0 : index
    %c0_41 = arith.constant 0 : index
    %60 = vector.load %arg5[%c0_40, %c0_41] : memref<1x64xf32, #tpu.memory_space<vmem>>, vector<1x64xf32>
    %61 = vector.broadcast %60 : vector<1x64xf32> to vector<256x64xf32>
    %62 = arith.addf %59, %61 : vector<256x64xf32>
    %cst_42 = arith.constant 0.000000e+00 : f32
    %63 = vector.broadcast %cst_42 : f32 to vector<256x64xf32>
    %64 = arith.maximumf %62, %63 : vector<256x64xf32>
    %c0_43 = arith.constant 0 : index
    %c0_44 = arith.constant 0 : index
    %65 = vector.load %arg6[%c0_43, %c0_44] : memref<64x256xf32, #tpu.memory_space<vmem>>, vector<64x256xf32>
    %cst_45 = arith.constant dense<0.000000e+00> : vector<256x256xf32>
    %66 = tpu.matmul %64, %65, %cst_45 {dimension_numbers = #tpu.dot_dimension_numbers<[1], [0], [0], [1], [0, 0, 1, 1], [], []>} : vector<256x64xf32>, vector<64x256xf32>, vector<256x256xf32> -> vector<256x256xf32>
    %c0_46 = arith.constant 0 : index
    %c0_47 = arith.constant 0 : index
    %67 = vector.load %arg7[%c0_46, %c0_47] : memref<1x256xf32, #tpu.memory_space<vmem>>, vector<1x256xf32>
    %68 = vector.broadcast %67 : vector<1x256xf32> to vector<256x256xf32>
    %69 = arith.addf %66, %68 : vector<256x256xf32>
    %70 = arith.addf %69, %1 : vector<256x256xf32>
    %cst_48 = arith.constant 0.000000e+00 : f32
    %71 = vector.broadcast %cst_48 : f32 to vector<256x256xf32>
    %72 = arith.maximumf %70, %71 : vector<256x256xf32>
    %73 = vector.shape_cast %72 : vector<256x256xf32> to vector<1x16x16x256xf32>
    %c0_49 = arith.constant 0 : index
    %c0_50 = arith.constant 0 : index
    %c0_51 = arith.constant 0 : index
    %c0_52 = arith.constant 0 : index
    %74 = vector.load %arg8[%c0_49, %c0_50, %c0_51, %c0_52] : memref<1x16x16x256xf32, #tpu.memory_space<vmem>>, vector<1x16x16x256xf32>
    tpu.vector_store %arg8[%c0_49, %c0_50, %c0_51, %c0_52], %73 {strides = array<i32>} : memref<1x16x16x256xf32, #tpu.memory_space<vmem>>, vector<1x16x16x256xf32>,
    return
  }
  func.func @transform_0(%arg0: i32) -> (i32, i32, i32, i32) {
    %c0_i32 = arith.constant 0 : i32
    %c0_i32_0 = arith.constant 0 : i32
    %c0_i32_1 = arith.constant 0 : i32
    %c0_i32_2 = arith.constant 0 : i32
    return %arg0, %c0_i32, %c0_i32_0, %c0_i32_1 : i32, i32, i32, i32
  }
  func.func @transform_1(%arg0: i32) -> (i32, i32) {
    %c0_i32 = arith.constant 0 : i32
    %c0_i32_0 = arith.constant 0 : i32
    %c0_i32_1 = arith.constant 0 : i32
    return %c0_i32, %c0_i32_0 : i32, i32
  }
  func.func @transform_2(%arg0: i32) -> (i32, i32) {
    %c0_i32 = arith.constant 0 : i32
    %c0_i32_0 = arith.constant 0 : i32
    %c0_i32_1 = arith.constant 0 : i32
    return %c0_i32, %c0_i32_0 : i32, i32
  }
  func.func @transform_3(%arg0: i32) -> (i32, i32) {
    %c0_i32 = arith.constant 0 : i32
    %c0_i32_0 = arith.constant 0 : i32
    %c0_i32_1 = arith.constant 0 : i32
    return %c0_i32, %c0_i32_0 : i32, i32
  }
  func.func @transform_4(%arg0: i32) -> (i32, i32) {
    %c0_i32 = arith.constant 0 : i32
    %c0_i32_0 = arith.constant 0 : i32
    %c0_i32_1 = arith.constant 0 : i32
    return %c0_i32, %c0_i32_0 : i32, i32
  }
  func.func @transform_5(%arg0: i32) -> (i32, i32) {
    %c0_i32 = arith.constant 0 : i32
    %c0_i32_0 = arith.constant 0 : i32
    %c0_i32_1 = arith.constant 0 : i32
    return %c0_i32, %c0_i32_0 : i32, i32
  }
  func.func @transform_6(%arg0: i32) -> (i32, i32) {
    %c0_i32 = arith.constant 0 : i32
    %c0_i32_0 = arith.constant 0 : i32
    %c0_i32_1 = arith.constant 0 : i32
    return %c0_i32, %c0_i32_0 : i32, i32
  }
  func.func @transform_7(%arg0: i32) -> (i32, i32, i32, i32) {
    %c0_i32 = arith.constant 0 : i32
    %c0_i32_0 = arith.constant 0 : i32
    %c0_i32_1 = arith.constant 0 : i32
    %c0_i32_2 = arith.constant 0 : i32
    return %arg0, %c0_i32, %c0_i32_0, %c0_i32_1 : i32, i32, i32, i32
  }
}

</mosaic_0001>

<llo_original>
// kernel: bottleneck_forward.1
$region0: #{bottleneck_forward.1}
  #allocation0 [shape = 'u32[]', space=smem, size = 0x4, offset = 0x4, fixed_abs, tag = 'smem constant byte address 0x4 - core index']
  #allocation1 [shape = 'u32[144,128]{1,0:T(1,128)}', space=vmem, size = 0x12000, scoped, tag = 'internal scratch']
  #allocation2 [shape = 'f32[1,18,18,64]{3,2,1,0:T(8,128)}', space=vmem, size = 0x36000, scoped, tag = 'scratch operand']
  %s0 = inlined_call_operand.vmem [shape: f32[2,16,16,256], index: 0, kind: input, shape index: {}]
  %s1 = inlined_call_operand.vmem [shape: f32[256,64], index: 1, kind: input, shape index: {}]
  %s2 = inlined_call_operand.vmem [shape: f32[1,64], index: 2, kind: input, shape index: {}]
  %s3 = inlined_call_operand.vmem [shape: f32[576,64], index: 3, kind: input, shape index: {}]
  %s4 = inlined_call_operand.vmem [shape: f32[1,64], index: 4, kind: input, shape index: {}]
  %s5 = inlined_call_operand.vmem [shape: f32[64,256], index: 5, kind: input, shape index: {}]
  %s6 = inlined_call_operand.vmem [shape: f32[1,256], index: 6, kind: input, shape index: {}]
  %s7 = inlined_call_operand.hbm [shape: f32[2,16,16,256], index: 7, kind: output, shape index: {}]
  %s8 = sld [smem:[#allocation0]]
  $region61: #{bottleneck_forward.1} parent=0
    _
  %s10 = ssub.s32 1, %s8
  %s11 = scalar_select 0, %s10, %s8
  $region1: #{bottleneck_forward.1} parent=0
    #allocation3 [shape = 'u8[524288]{0}', space=vmem, size = 0x80000, scoped, tag = 'output window, operand 0']
    #allocation4 [shape = 's32[2]{0}', space=sflag, size = 0x8, scoped, tag = 'scoped memory for bottleneck_forward.1']
    %12 = vsyncpa [#allocation4], 0
    %s13 = scalar_lea.sflag [#allocation4], 1
    %14 = vsyncpa %s13, 0
    loop: start=0, step=1, limit=4
    $region2: #{bottleneck_forward.1} parent=1 // loop_pre_header
      _
    $region3: #{bottleneck_forward.1} parent=1 // loop_header
      %s16 = sphi 0, %s20
      %p17 = scmp.ge.s32.totalorder %s16, 4
      %s26 = sphi 0, %s28
      %s29 = sphi 0, %s26
      %s30 = sphi 0, %s29
      %s46 = sphi 0, %s30
      %s50 = sphi 0, %s50
      %s52 = sphi 0, %s50
      %s53 = sphi 0, %s52
      %s67 = sphi 0, %s53
      %s71 = sphi 0, %s71
      %s73 = sphi 0, %s71
      %s74 = sphi 0, %s73
      %s88 = sphi 0, %s74
      %s92 = sphi 0, %s92
      %s94 = sphi 0, %s92
      %s95 = sphi 0, %s94
      %s109 = sphi 0, %s95
      %s113 = sphi 0, %s113
      %s115 = sphi 0, %s113
      %s116 = sphi 0, %s115
      %s130 = sphi 0, %s116
      %s134 = sphi 0, %s134
      %s136 = sphi 0, %s134
      %s137 = sphi 0, %s136
      %s151 = sphi 0, %s137
      %s155 = sphi 0, %s155
      %s157 = sphi 0, %s155
      %s158 = sphi 0, %s157
      %s172 = sphi 0, %s158
      %s178 = sphi 0, %s180
      %s181 = sphi 0, %s178
      %s182 = sphi 0, %s181
      %s198 = sphi 0, %s182
    $region4: #{bottleneck_forward.1} parent=1 // loop_header_branch
      %19 = sbr.rel (%p17) target = $region8
    $region5: #{bottleneck_forward.1} parent=1 // loop_body
      %s21 = ssub.s32 %s16, 1
      %s22 = ssub.s32 %s16, 2
      %s23 = sadd.s32 %s16, 1
      %s24 = ssub.s32 %s16, %s23
      %p25 = scmp.eq.s32.totalorder %s24, 0
      %s27 = sadd.s32 %s26, 1
      %s28 = scalar_select %p25, %s26, %s27
      %p31 = pneg %p25
      %p32 = scmp.eq.s32.totalorder %s16, 1
      %p33 = por %p31, %p32
      %p34 = scmp.ne.s32.totalorder %s26, %s29
      %p35 = scmp.eq.s32.totalorder %s16, 0
      %p36 = por %p34, %p35
      %p37 = scmp.ne.s32.totalorder %s26, %s29
      %p38 = scmp.eq.s32.totalorder %s21, 1
      %p39 = por %p37, %p38
      %p40 = scmp.ne.s32.totalorder %s29, %s30
      %p41 = scmp.eq.s32.totalorder %s21, 0
      %p42 = por %p40, %p41
      %p43 = scmp.ne.s32.totalorder %s29, %s30
      %p44 = scmp.eq.s32.totalorder %s22, 1
      %p45 = por %p43, %p44
      %p47 = scmp.ne.s32.totalorder %s30, %s46
      %p48 = scmp.eq.s32.totalorder %s22, 0
      %p49 = por %p47, %p48
      %s51 = sadd.s32 %s50, 1
      %p54 = scmp.eq.s32.totalorder %s16, 1
      %p55 = scmp.ne.s32.totalorder %s50, %s52
      %p56 = scmp.eq.s32.totalorder %s16, 0
      %p57 = por %p55, %p56
      %p58 = scmp.ne.s32.totalorder %s50, %s52
      %p59 = scmp.eq.s32.totalorder %s21, 1
      %p60 = por %p58, %p59
      %p61 = scmp.ne.s32.totalorder %s52, %s53
      %p62 = scmp.eq.s32.totalorder %s21, 0
      %p63 = por %p61, %p62
      %p64 = scmp.ne.s32.totalorder %s52, %s53
      %p65 = scmp.eq.s32.totalorder %s22, 1
      %p66 = por %p64, %p65
      %p68 = scmp.ne.s32.totalorder %s53, %s67
      %p69 = scmp.eq.s32.totalorder %s22, 0
      %p70 = por %p68, %p69
      %s72 = sadd.s32 %s71, 1
      %p75 = scmp.eq.s32.totalorder %s16, 1
      %p76 = scmp.ne.s32.totalorder %s71, %s73
      %p77 = scmp.eq.s32.totalorder %s16, 0
      %p78 = por %p76, %p77
      %p79 = scmp.ne.s32.totalorder %s71, %s73
      %p80 = scmp.eq.s32.totalorder %s21, 1
      %p81 = por %p79, %p80
      %p82 = scmp.ne.s32.totalorder %s73, %s74
      %p83 = scmp.eq.s32.totalorder %s21, 0
      %p84 = por %p82, %p83
      %p85 = scmp.ne.s32.totalorder %s73, %s74
      %p86 = scmp.eq.s32.totalorder %s22, 1
      %p87 = por %p85, %p86
      %p89 = scmp.ne.s32.totalorder %s74, %s88
      %p90 = scmp.eq.s32.totalorder %s22, 0
      %p91 = por %p89, %p90
      %s93 = sadd.s32 %s92, 1
      %p96 = scmp.eq.s32.totalorder %s16, 1
      %p97 = scmp.ne.s32.totalorder %s92, %s94
      %p98 = scmp.eq.s32.totalorder %s16, 0
      %p99 = por %p97, %p98
      %p100 = scmp.ne.s32.totalorder %s92, %s94
      %p101 = scmp.eq.s32.totalorder %s21, 1
      %p102 = por %p100, %p101
      %p103 = scmp.ne.s32.totalorder %s94, %s95
      %p104 = scmp.eq.s32.totalorder %s21, 0
      %p105 = por %p103, %p104
      %p106 = scmp.ne.s32.totalorder %s94, %s95
      %p107 = scmp.eq.s32.totalorder %s22, 1
      %p108 = por %p106, %p107
      %p110 = scmp.ne.s32.totalorder %s95, %s109
      %p111 = scmp.eq.s32.totalorder %s22, 0
      %p112 = por %p110, %p111
      %s114 = sadd.s32 %s113, 1
      %p117 = scmp.eq.s32.totalorder %s16, 1
      %p118 = scmp.ne.s32.totalorder %s113, %s115
      %p119 = scmp.eq.s32.totalorder %s16, 0
      %p120 = por %p118, %p119
      %p121 = scmp.ne.s32.totalorder %s113, %s115
      %p122 = scmp.eq.s32.totalorder %s21, 1
      %p123 = por %p121, %p122
      %p124 = scmp.ne.s32.totalorder %s115, %s116
      %p125 = scmp.eq.s32.totalorder %s21, 0
      %p126 = por %p124, %p125
      %p127 = scmp.ne.s32.totalorder %s115, %s116
      %p128 = scmp.eq.s32.totalorder %s22, 1
      %p129 = por %p127, %p128
      %p131 = scmp.ne.s32.totalorder %s116, %s130
      %p132 = scmp.eq.s32.totalorder %s22, 0
      %p133 = por %p131, %p132
      %s135 = sadd.s32 %s134, 1
      %p138 = scmp.eq.s32.totalorder %s16, 1
      %p139 = scmp.ne.s32.totalorder %s134, %s136
      %p140 = scmp.eq.s32.totalorder %s16, 0
      %p141 = por %p139, %p140
      %p142 = scmp.ne.s32.totalorder %s134, %s136
      %p143 = scmp.eq.s32.totalorder %s21, 1
      %p144 = por %p142, %p143
      %p145 = scmp.ne.s32.totalorder %s136, %s137
      %p146 = scmp.eq.s32.totalorder %s21, 0
      %p147 = por %p145, %p146
      %p148 = scmp.ne.s32.totalorder %s136, %s137
      %p149 = scmp.eq.s32.totalorder %s22, 1
      %p150 = por %p148, %p149
      %p152 = scmp.ne.s32.totalorder %s137, %s151
      %p153 = scmp.eq.s32.totalorder %s22, 0
      %p154 = por %p152, %p153
      %s156 = sadd.s32 %s155, 1
      %p159 = scmp.eq.s32.totalorder %s16, 1
      %p160 = scmp.ne.s32.totalorder %s155, %s157
      %p161 = scmp.eq.s32.totalorder %s16, 0
      %p162 = por %p160, %p161
      %p163 = scmp.ne.s32.totalorder %s155, %s157
      %p164 = scmp.eq.s32.totalorder %s21, 1
      %p165 = por %p163, %p164
      %p166 = scmp.ne.s32.totalorder %s157, %s158
      %p167 = scmp.eq.s32.totalorder %s21, 0
      %p168 = por %p166, %p167
      %p169 = scmp.ne.s32.totalorder %s157, %s158
      %p170 = scmp.eq.s32.totalorder %s22, 1
      %p171 = por %p169, %p170
      %p173 = scmp.ne.s32.totalorder %s158, %s172
      %p174 = scmp.eq.s32.totalorder %s22, 0
      %p175 = por %p173, %p174
      %s176 = ssub.s32 %s16, %s23
      %p177 = scmp.eq.s32.totalorder %s176, 0
      %s179 = sadd.s32 %s178, 1
      %s180 = scalar_select %p177, %s178, %s179
      %p183 = pneg %p177
      %p184 = scmp.eq.s32.totalorder %s16, 1
      %p185 = por %p183, %p184
      %p186 = scmp.ne.s32.totalorder %s178, %s181
      %p187 = scmp.eq.s32.totalorder %s16, 0
      %p188 = por %p186, %p187
      %p189 = scmp.ne.s32.totalorder %s178, %s181
      %p190 = scmp.eq.s32.totalorder %s21, 1
      %p191 = por %p189, %p190
      %p192 = scmp.ne.s32.totalorder %s181, %s182
      %p193 = scmp.eq.s32.totalorder %s21, 0
      %p194 = por %p192, %p193
      %p195 = scmp.ne.s32.totalorder %s181, %s182
      %p196 = scmp.eq.s32.totalorder %s22, 1
      %p197 = por %p195, %p196
      %p199 = scmp.ne.s32.totalorder %s182, %s198
      %p200 = scmp.eq.s32.totalorder %s22, 0
      %p201 = por %p199, %p200
      %p202 = scmp.le.s32.totalorder 1, %s16
      %p203 = scmp.lt.s32.totalorder %s16, 3
      %p204 = pnand %p202, %p203
      %p205 = pneg %p204
      // Predicated region
      $region9: #{bottleneck_forward.1} parent=5 // pred_check
        _
      $region10: #{bottleneck_forward.1} parent=5 // pred_check_branch
        %207 = sbr.rel (%p204) target = $region12
      $region11: #{bottleneck_forward.1} parent=5 // pred_region
        %s208 = ssub.s32 %s16, 1
        // Predicated region
        $region13: #{bottleneck_forward.1} parent=11 // pred_check
          %p209 = pneg %p63
        $region14: #{bottleneck_forward.1} parent=11 // pred_check_branch
          %211 = sbr.rel (%p209) target = $region16
        $region15: #{bottleneck_forward.1} parent=11 // pred_region
          _
        $region16: #{bottleneck_forward.1} parent=11 // pred_fallthru
          _
        // Predicated region
        $region17: #{bottleneck_forward.1} parent=11 // pred_check
          %p212 = pneg %p84
        $region18: #{bottleneck_forward.1} parent=11 // pred_check_branch
          %214 = sbr.rel (%p212) target = $region20
        $region19: #{bottleneck_forward.1} parent=11 // pred_region
          _
        $region20: #{bottleneck_forward.1} parent=11 // pred_fallthru
          _
        // Predicated region
        $region21: #{bottleneck_forward.1} parent=11 // pred_check
          %p215 = pneg %p105
        $region22: #{bottleneck_forward.1} parent=11 // pred_check_branch
          %217 = sbr.rel (%p215) target = $region24
        $region23: #{bottleneck_forward.1} parent=11 // pred_region
          _
        $region24: #{bottleneck_forward.1} parent=11 // pred_fallthru
          _
        // Predicated region
        $region25: #{bottleneck_forward.1} parent=11 // pred_check
          %p218 = pneg %p126
        $region26: #{bottleneck_forward.1} parent=11 // pred_check_branch
          %220 = sbr.rel (%p218) target = $region28
        $region27: #{bottleneck_forward.1} parent=11 // pred_region
          _
        $region28: #{bottleneck_forward.1} parent=11 // pred_fallthru
          _
        // Predicated region
        $region29: #{bottleneck_forward.1} parent=11 // pred_check
          %p221 = pneg %p147
        $region30: #{bottleneck_forward.1} parent=11 // pred_check_branch
          %223 = sbr.rel (%p221) target = $region32
        $region31: #{bottleneck_forward.1} parent=11 // pred_region
          _
        $region32: #{bottleneck_forward.1} parent=11 // pred_fallthru
          _
        // Predicated region
        $region33: #{bottleneck_forward.1} parent=11 // pred_check
          %p224 = pneg %p168
        $region34: #{bottleneck_forward.1} parent=11 // pred_check_branch
          %226 = sbr.rel (%p224) target = $region36
        $region35: #{bottleneck_forward.1} parent=11 // pred_region
          _
        $region36: #{bottleneck_forward.1} parent=11 // pred_fallthru
          _
      $region12: #{bottleneck_forward.1} parent=5 // pred_fallthru
        _
      %p227 = scmp.lt.s32.totalorder %s16, 2
      // Predicated region
      $region37: #{bottleneck_forward.1} parent=5 // pred_check
        %p228 = pneg %p227
      $region38: #{bottleneck_forward.1} parent=5 // pred_check_branch
        %230 = sbr.rel (%p228) target = $region40
      $region39: #{bottleneck_forward.1} parent=5 // pred_region
        // Predicated region
        $region41: #{bottleneck_forward.1} parent=39 // pred_check
          %p231 = pneg %p36
        $region42: #{bottleneck_forward.1} parent=39 // pred_check_branch
          %233 = sbr.rel (%p231) target = $region44
        $region43: #{bottleneck_forward.1} parent=39 // pred_region
          %p234 = scmp.lt.s32.totalorder %s16, 1
          %s235 = scalar_select %p234, %s16, 1
          %s236 = smul.addr %s235, 64
          %s237 = smul.addr %s236, 8
          %s238 = scalar_lea.vmem %s0, %s237
        $region44: #{bottleneck_forward.1} parent=39 // pred_fallthru
          _
      $region40: #{bottleneck_forward.1} parent=5 // pred_fallthru
        _
      %p239 = scmp.le.s32.totalorder 1, %s16
      %p240 = scmp.lt.s32.totalorder %s16, 3
      %p241 = pnand %p239, %p240
      %p242 = pneg %p241
      // Predicated region
      $region45: #{bottleneck_forward.1} parent=5 // pred_check
        _
      $region46: #{bottleneck_forward.1} parent=5 // pred_check_branch
        %244 = sbr.rel (%p241) target = $region48
      $region47: #{bottleneck_forward.1} parent=5 // pred_region
        %s245 = ssub.s32 %s16, 1
        %p246 = scmp.lt.s32.totalorder %s21, 1
        %s247 = scalar_select %p246, %s21, 1
        %s248 = smul.addr %s247, 64
        %s249 = smul.addr %s248, 8
        %s250 = scalar_lea.vmem %s0, %s249
        %p251 = pneg %p42
        %p252 = pneg %p39
        %p253 = pneg %p63
        %p254 = pneg %p60
        %p255 = pneg %p84
        %p256 = pneg %p81
        %p257 = pneg %p105
        %p258 = pneg %p102
        %p259 = pneg %p126
        %p260 = pneg %p123
        %p261 = pneg %p147
        %p262 = pneg %p144
        %p263 = pneg %p168
        %p264 = pneg %p165
        %p265 = pneg %p194
        %p266 = pneg %p191
        %s267 = sand.u32 %s181, 1
        %s268 = scalar_lea.sflag [#allocation4], %s267
        %s269 = sand.u32 %s181, 1
        %s270 = smul.addr %s269, 512
        %s271 = scalar_lea.vmem [#allocation3], %s270
        %p272 = scmp.lt.s32.totalorder %s21, 1
        %s273 = scalar_select %p272, %s21, 1
        %s274 = smul.addr %s273, 64
        %s275 = smul.addr %s274, 8
        %s276 = scalar_lea.vmem %s0, %s275
        %v277 = vld [vmem:[%s276] sm:$0xff]
        %v278 = vld [vmem:[%s276 + $0x8] sm:$0xff]
        %v279 = vld [vmem:[%s276 + $0x10] sm:$0xff]
        %v280 = vld [vmem:[%s276 + $0x18] sm:$0xff]
        %v281 = vld [vmem:[%s276 + $0x20] sm:$0xff]
        %v282 = vld [vmem:[%s276 + $0x28] sm:$0xff]
        %v283 = vld [vmem:[%s276 + $0x30] sm:$0xff]
        %v284 = vld [vmem:[%s276 + $0x38] sm:$0xff]
        %v285 = vld [vmem:[%s276 + $0x40] sm:$0xff]
        %v286 = vld [vmem:[%s276 + $0x48] sm:$0xff]
        %v287 = vld [vmem:[%s276 + $0x50] sm:$0xff]
        %v288 = vld [vmem:[%s276 + $0x58] sm:$0xff]
        %v289 = vld [vmem:[%s276 + $0x60] sm:$0xff]
        %v290 = vld [vmem:[%s276 + $0x68] sm:$0xff]
        %v291 = vld [vmem:[%s276 + $0x70] sm:$0xff]
        %v292 = vld [vmem:[%s276 + $0x78] sm:$0xff]
        %v293 = vld [vmem:[%s276 + $0x80] sm:$0xff]
        %v294 = vld [vmem:[%s276 + $0x88] sm:$0xff]
        %v295 = vld [vmem:[%s276 + $0x90] sm:$0xff]
        %v296 = vld [vmem:[%s276 + $0x98] sm:$0xff]
        %v297 = vld [vmem:[%s276 + $0xa0] sm:$0xff]
        %v298 = vld [vmem:[%s276 + $0xa8] sm:$0xff]
        %v299 = vld [vmem:[%s276 + $0xb0] sm:$0xff]
        %v300 = vld [vmem:[%s276 + $0xb8] sm:$0xff]
        %v301 = vld [vmem:[%s276 + $0xc0] sm:$0xff]
        %v302 = vld [vmem:[%s276 + $0xc8] sm:$0xff]
        %v303 = vld [vmem:[%s276 + $0xd0] sm:$0xff]
        %v304 = vld [vmem:[%s276 + $0xd8] sm:$0xff]
        %v305 = vld [vmem:[%s276 + $0xe0] sm:$0xff]
        %v306 = vld [vmem:[%s276 + $0xe8] sm:$0xff]
        %v307 = vld [vmem:[%s276 + $0xf0] sm:$0xff]
        %v308 = vld [vmem:[%s276 + $0xf8] sm:$0xff]
        %v309 = vld [vmem:[%s276 + $0x100] sm:$0xff]
        %v310 = vld [vmem:[%s276 + $0x108] sm:$0xff]
        %v311 = vld [vmem:[%s276 + $0x110] sm:$0xff]
        %v312 = vld [vmem:[%s276 + $0x118] sm:$0xff]
        %v313 = vld [vmem:[%s276 + $0x120] sm:$0xff]
        %v314 = vld [vmem:[%s276 + $0x128] sm:$0xff]
        %v315 = vld [vmem:[%s276 + $0x130] sm:$0xff]
        %v316 = vld [vmem:[%s276 + $0x138] sm:$0xff]
        %v317 = vld [vmem:[%s276 + $0x140] sm:$0xff]
        %v318 = vld [vmem:[%s276 + $0x148] sm:$0xff]
        %v319 = vld [vmem:[%s276 + $0x150] sm:$0xff]
        %v320 = vld [vmem:[%s276 + $0x158] sm:$0xff]
        %v321 = vld [vmem:[%s276 + $0x160] sm:$0xff]
        %v322 = vld [vmem:[%s276 + $0x168] sm:$0xff]
        %v323 = vld [vmem:[%s276 + $0x170] sm:$0xff]
        %v324 = vld [vmem:[%s276 + $0x178] sm:$0xff]
        %v325 = vld [vmem:[%s276 + $0x180] sm:$0xff]
        %v326 = vld [vmem:[%s276 + $0x188] sm:$0xff]
        %v327 = vld [vmem:[%s276 + $0x190] sm:$0xff]
        %v328 = vld [vmem:[%s276 + $0x198] sm:$0xff]
        %v329 = vld [vmem:[%s276 + $0x1a0] sm:$0xff]
        %v330 = vld [vmem:[%s276 + $0x1a8] sm:$0xff]
        %v331 = vld [vmem:[%s276 + $0x1b0] sm:$0xff]
        %v332 = vld [vmem:[%s276 + $0x1b8] sm:$0xff]
        %v333 = vld [vmem:[%s276 + $0x1c0] sm:$0xff]
        %v334 = vld [vmem:[%s276 + $0x1c8] sm:$0xff]
        %v335 = vld [vmem:[%s276 + $0x1d0] sm:$0xff]
        %v336 = vld [vmem:[%s276 + $0x1d8] sm:$0xff]
        %v337 = vld [vmem:[%s276 + $0x1e0] sm:$0xff]
        %v338 = vld [vmem:[%s276 + $0x1e8] sm:$0xff]
        %v339 = vld [vmem:[%s276 + $0x1f0] sm:$0xff]
        %v340 = vld [vmem:[%s276 + $0x1f8] sm:$0xff]
        %v341 = vld [vmem:[%s1] sm:$0xff]
        %v342 = vld [vmem:[%s1 + $0x8] sm:$0xff]
        %v343 = vld [vmem:[%s1 + $0x10] sm:$0xff]
        %v344 = vld [vmem:[%s1 + $0x18] sm:$0xff]
        %v345 = vld [vmem:[%s1 + $0x20] sm:$0xff]
        %v346 = vld [vmem:[%s1 + $0x28] sm:$0xff]
        %v347 = vld [vmem:[%s1 + $0x30] sm:$0xff]
        %v348 = vld [vmem:[%s1 + $0x38] sm:$0xff]
        %v349 = vld [vmem:[%s1 + $0x40] sm:$0xff]
        %v350 = vld [vmem:[%s1 + $0x48] sm:$0xff]
        %v351 = vld [vmem:[%s1 + $0x50] sm:$0xff]
        %v352 = vld [vmem:[%s1 + $0x58] sm:$0xff]
        %v353 = vld [vmem:[%s1 + $0x60] sm:$0xff]
        %v354 = vld [vmem:[%s1 + $0x68] sm:$0xff]
        %v355 = vld [vmem:[%s1 + $0x70] sm:$0xff]
        %v356 = vld [vmem:[%s1 + $0x78] sm:$0xff]
        %v357 = vld [vmem:[%s1 + $0x80] sm:$0xff]
        %v358 = vld [vmem:[%s1 + $0x88] sm:$0xff]
        %v359 = vld [vmem:[%s1 + $0x90] sm:$0xff]
        %v360 = vld [vmem:[%s1 + $0x98] sm:$0xff]
        %v361 = vld [vmem:[%s1 + $0xa0] sm:$0xff]
        %v362 = vld [vmem:[%s1 + $0xa8] sm:$0xff]
        %v363 = vld [vmem:[%s1 + $0xb0] sm:$0xff]
        %v364 = vld [vmem:[%s1 + $0xb8] sm:$0xff]
        %v365 = vld [vmem:[%s1 + $0xc0] sm:$0xff]
        %v366 = vld [vmem:[%s1 + $0xc8] sm:$0xff]
        %v367 = vld [vmem:[%s1 + $0xd0] sm:$0xff]
        %v368 = vld [vmem:[%s1 + $0xd8] sm:$0xff]
        %v369 = vld [vmem:[%s1 + $0xe0] sm:$0xff]
        %v370 = vld [vmem:[%s1 + $0xe8] sm:$0xff]
        %v371 = vld [vmem:[%s1 + $0xf0] sm:$0xff]
        %v372 = vld [vmem:[%s1 + $0xf8] sm:$0xff]
        %v373 = vld [vmem:[%s2] sm:$0x1]
        %v375 = vlaneseq
        %v376 = vshrl.u32 %v375, 7
        %v377 = vsub.s32 0, %v376
        %v378 = vrot.slane %v373, %v377
        %380 = vmatprep.subr.mxu0 0.0
        %381 = vmatpush1.msra.mxu0 %v341
        %382 = vmatprep.subr.mxu0 0.0
        %383 = vmatpush1.msra.mxu0 %v342
        %384 = vmatprep.subr.mxu0 0.0
        %385 = vmatpush1.msra.mxu0 %v343
        %386 = vmatprep.subr.mxu0 0.0
        %387 = vmatpush1.msra.mxu0 %v344
        %388 = vmatprep.subr.mxu0 0.0
        %389 = vmatpush1.msra.mxu0 %v345
        %390 = vmatprep.subr.mxu0 0.0
        %391 = vmatpush1.msra.mxu0 %v346
        %392 = vmatprep.subr.mxu0 0.0
        %393 = vmatpush1.msra.mxu0 %v347
        %394 = vmatprep.subr.mxu0 0.0
        %395 = vmatpush1.msra.mxu0 %v348
        %396 = vmatprep.subr.mxu0 0.0
        %397 = vmatpush1.msra.mxu0 %v349
        %398 = vmatprep.subr.mxu0 0.0
        %399 = vmatpush1.msra.mxu0 %v350
        %400 = vmatprep.subr.mxu0 0.0
        %401 = vmatpush1.msra.mxu0 %v351
        %402 = vmatprep.subr.mxu0 0.0
        %403 = vmatpush1.msra.mxu0 %v352
        %404 = vmatprep.subr.mxu0 0.0
        %405 = vmatpush1.msra.mxu0 %v353
        %406 = vmatprep.subr.mxu0 0.0
        %407 = vmatpush1.msra.mxu0 %v354
        %408 = vmatprep.subr.mxu0 0.0
        %409 = vmatpush1.msra.mxu0 %v355
        %410 = vmatprep.subr.mxu0 0.0
        %411 = vmatpush1.msra.mxu0 %v356
        %412 = vmatprep.subr.mxu0 0.0
        %413 = vmatpush1.msra.mxu0 %v357
        %414 = vmatprep.subr.mxu0 0.0
        %415 = vmatpush1.msra.mxu0 %v358
        %416 = vmatprep.subr.mxu0 0.0
        %417 = vmatpush1.msra.mxu0 %v359
        %418 = vmatprep.subr.mxu0 0.0
        %419 = vmatpush1.msra.mxu0 %v360
        %420 = vmatprep.subr.mxu0 0.0
        %421 = vmatpush1.msra.mxu0 %v361
        %422 = vmatprep.subr.mxu0 0.0
        %423 = vmatpush1.msra.mxu0 %v362
        %424 = vmatprep.subr.mxu0 0.0
        %425 = vmatpush1.msra.mxu0 %v363
        %426 = vmatprep.subr.mxu0 0.0
        %427 = vmatpush1.msra.mxu0 %v364
        %428 = vmatprep.subr.mxu0 0.0
        %429 = vmatpush1.msra.mxu0 %v365
        %430 = vmatprep.subr.mxu0 0.0
        %431 = vmatpush1.msra.mxu0 %v366
        %432 = vmatprep.subr.mxu0 0.0
        %433 = vmatpush1.msra.mxu0 %v367
        %434 = vmatprep.subr.mxu0 0.0
        %435 = vmatpush1.msra.mxu0 %v368
        %436 = vmatprep.subr.mxu0 0.0
        %437 = vmatpush1.msra.mxu0 %v369
        %438 = vmatprep.subr.mxu0 0.0
        %439 = vmatpush1.msra.mxu0 %v370
        %440 = vmatprep.subr.mxu0 0.0
        %441 = vmatpush1.msra.mxu0 %v371
        %442 = vmatprep.subr.mxu0 0.0
        %443 = vmatpush1.msra.mxu0 %v372
        %444 = vmatprep.mubr.f32.mxu0 %v278
        %445 = vmatmul.mubr.f32.gmra.mrb[0].mxu0 %v277
        %v446 = vpop.f32.mrb[0].mxu0
        %v447 = vadd.f32 %v378, %v446
        %v448 = vpop.f32.mrb[0].mxu0
        %449 = vmatprep.mubr.f32.mxu0 %v280
        %450 = vmatmul.mubr.f32.gmra.mrb[0].mxu0 %v279
        %v451 = vpop.f32.mrb[0].mxu0
        %v452 = vadd.f32 %v378, %v451
        %v453 = vpop.f32.mrb[0].mxu0
        %454 = vmatprep.mubr.f32.mxu0 %v282
        %455 = vmatmul.mubr.f32.gmra.mrb[0].mxu0 %v281
        %v456 = vpop.f32.mrb[0].mxu0
        %v457 = vadd.f32 %v378, %v456
        %v458 = vpop.f32.mrb[0].mxu0
        %459 = vmatprep.mubr.f32.mxu0 %v284
        %460 = vmatmul.mubr.f32.gmra.mrb[0].mxu0 %v283
        %v461 = vpop.f32.mrb[0].mxu0
        %v462 = vadd.f32 %v378, %v461
        %v463 = vpop.f32.mrb[0].mxu0
        %464 = vmatprep.mubr.f32.mxu0 %v286
        %465 = vmatmul.mubr.f32.gmra.mrb[0].mxu0 %v285
        %v466 = vpop.f32.mrb[0].mxu0
        %v467 = vadd.f32 %v378, %v466
        %v468 = vpop.f32.mrb[0].mxu0
        %469 = vmatprep.mubr.f32.mxu0 %v288
        %470 = vmatmul.mubr.f32.gmra.mrb[0].mxu0 %v287
        %v471 = vpop.f32.mrb[0].mxu0
        %v472 = vadd.f32 %v378, %v471
        %v473 = vpop.f32.mrb[0].mxu0
        %474 = vmatprep.mubr.f32.mxu0 %v290
        %475 = vmatmul.mubr.f32.gmra.mrb[0].mxu0 %v289
        %v476 = vpop.f32.mrb[0].mxu0
        %v477 = vadd.f32 %v378, %v476
        %v478 = vpop.f32.mrb[0].mxu0
        %479 = vmatprep.mubr.f32.mxu0 %v292
        %480 = vmatmul.mubr.f32.gmra.mrb[0].mxu0 %v291
        %v481 = vpop.f32.mrb[0].mxu0
        %v482 = vadd.f32 %v378, %v481
        %v483 = vpop.f32.mrb[0].mxu0
        %484 = vmatprep.mubr.f32.mxu0 %v294
        %485 = vmatmul.mubr.f32.gmra.mrb[0].mxu0 %v293
        %v486 = vpop.f32.mrb[0].mxu0
        %v487 = vadd.f32 %v378, %v486
        %v488 = vpop.f32.mrb[0].mxu0
        %489 = vmatprep.mubr.f32.mxu0 %v296
        %490 = vmatmul.mubr.f32.gmra.mrb[0].mxu0 %v295
        %v491 = vpop.f32.mrb[0].mxu0
        %v492 = vadd.f32 %v378, %v491
        %v493 = vpop.f32.mrb[0].mxu0
        %494 = vmatprep.mubr.f32.mxu0 %v298
        %495 = vmatmul.mubr.f32.gmra.mrb[0].mxu0 %v297
        %v496 = vpop.f32.mrb[0].mxu0
        %v497 = vadd.f32 %v378, %v496
        %v498 = vpop.f32.mrb[0].mxu0
        %499 = vmatprep.mubr.f32.mxu0 %v300
        %500 = vmatmul.mubr.f32.gmra.mrb[0].mxu0 %v299
        %v501 = vpop.f32.mrb[0].mxu0
        %v502 = vadd.f32 %v378, %v501
        %v503 = vpop.f32.mrb[0].mxu0
        %504 = vmatprep.mubr.f32.mxu0 %v302
        %505 = vmatmul.mubr.f32.gmra.mrb[0].mxu0 %v301
        %v506 = vpop.f32.mrb[0].mxu0
        %v507 = vadd.f32 %v378, %v506
        %v508 = vpop.f32.mrb[0].mxu0
        %509 = vmatprep.mubr.f32.mxu0 %v304
        %510 = vmatmul.mubr.f32.gmra.mrb[0].mxu0 %v303
        %v511 = vpop.f32.mrb[0].mxu0
        %v512 = vadd.f32 %v378, %v511
        %v513 = vpop.f32.mrb[0].mxu0
        %514 = vmatprep.mubr.f32.mxu0 %v306
        %515 = vmatmul.mubr.f32.gmra.mrb[0].mxu0 %v305
        %v516 = vpop.f32.mrb[0].mxu0
        %v517 = vadd.f32 %v378, %v516
        %v518 = vpop.f32.mrb[0].mxu0
        %519 = vmatprep.mubr.f32.mxu0 %v308
        %520 = vmatmul.mubr.f32.gmra.mrb[0].mxu0 %v307
        %v521 = vpop.f32.mrb[0].mxu0
        %v522 = vadd.f32 %v378, %v521
        %v523 = vpop.f32.mrb[0].mxu0
        %524 = vmatprep.mubr.f32.mxu0 %v310
        %525 = vmatmul.mubr.f32.gmra.mrb[0].mxu0 %v309
        %v526 = vpop.f32.mrb[0].mxu0
        %v527 = vadd.f32 %v378, %v526
        %v528 = vpop.f32.mrb[0].mxu0
        %529 = vmatprep.mubr.f32.mxu0 %v312
        %530 = vmatmul.mubr.f32.gmra.mrb[0].mxu0 %v311
        %v531 = vpop.f32.mrb[0].mxu0
        %v532 = vadd.f32 %v378, %v531
        %v533 = vpop.f32.mrb[0].mxu0
        %534 = vmatprep.mubr.f32.mxu0 %v314
        %535 = vmatmul.mubr.f32.gmra.mrb[0].mxu0 %v313
        %v536 = vpop.f32.mrb[0].mxu0
        %v537 = vadd.f32 %v378, %v536
        %v538 = vpop.f32.mrb[0].mxu0
        %539 = vmatprep.mubr.f32.mxu0 %v316
        %540 = vmatmul.mubr.f32.gmra.mrb[0].mxu0 %v315
        %v541 = vpop.f32.mrb[0].mxu0
        %v542 = vadd.f32 %v378, %v541
        %v543 = vpop.f32.mrb[0].mxu0
        %544 = vmatprep.mubr.f32.mxu0 %v318
        %545 = vmatmul.mubr.f32.gmra.mrb[0].mxu0 %v317
        %v546 = vpop.f32.mrb[0].mxu0
        %v547 = vadd.f32 %v378, %v546
        %v548 = vpop.f32.mrb[0].mxu0
        %549 = vmatprep.mubr.f32.mxu0 %v320
        %550 = vmatmul.mubr.f32.gmra.mrb[0].mxu0 %v319
        %v551 = vpop.f32.mrb[0].mxu0
        %v552 = vadd.f32 %v378, %v551
        %v553 = vpop.f32.mrb[0].mxu0
        %554 = vmatprep.mubr.f32.mxu0 %v322
        %555 = vmatmul.mubr.f32.gmra.mrb[0].mxu0 %v321
        %v556 = vpop.f32.mrb[0].mxu0
        %v557 = vadd.f32 %v378, %v556
        %v558 = vpop.f32.mrb[0].mxu0
        %559 = vmatprep.mubr.f32.mxu0 %v324
        %560 = vmatmul.mubr.f32.gmra.mrb[0].mxu0 %v323
        %v561 = vpop.f32.mrb[0].mxu0
        %v562 = vadd.f32 %v378, %v561
        %v563 = vpop.f32.mrb[0].mxu0
        %564 = vmatprep.mubr.f32.mxu0 %v326
        %565 = vmatmul.mubr.f32.gmra.mrb[0].mxu0 %v325
        %v566 = vpop.f32.mrb[0].mxu0
        %v567 = vadd.f32 %v378, %v566
        %v568 = vpop.f32.mrb[0].mxu0
        %569 = vmatprep.mubr.f32.mxu0 %v328
        %570 = vmatmul.mubr.f32.gmra.mrb[0].mxu0 %v327
        %v571 = vpop.f32.mrb[0].mxu0
        %v572 = vadd.f32 %v378, %v571
        %v573 = vpop.f32.mrb[0].mxu0
        %574 = vmatprep.mubr.f32.mxu0 %v330
        %575 = vmatmul.mubr.f32.gmra.mrb[0].mxu0 %v329
        %v576 = vpop.f32.mrb[0].mxu0
        %v577 = vadd.f32 %v378, %v576
        %v578 = vpop.f32.mrb[0].mxu0
        %579 = vmatprep.mubr.f32.mxu0 %v332
        %580 = vmatmul.mubr.f32.gmra.mrb[0].mxu0 %v331
        %v581 = vpop.f32.mrb[0].mxu0
        %v582 = vadd.f32 %v378, %v581
        %v583 = vpop.f32.mrb[0].mxu0
        %584 = vmatprep.mubr.f32.mxu0 %v334
        %585 = vmatmul.mubr.f32.gmra.mrb[0].mxu0 %v333
        %v586 = vpop.f32.mrb[0].mxu0
        %v587 = vadd.f32 %v378, %v586
        %v588 = vpop.f32.mrb[0].mxu0
        %589 = vmatprep.mubr.f32.mxu0 %v336
        %590 = vmatmul.mubr.f32.gmra.mrb[0].mxu0 %v335
        %v591 = vpop.f32.mrb[0].mxu0
        %v592 = vadd.f32 %v378, %v591
        %v593 = vpop.f32.mrb[0].mxu0
        %594 = vmatprep.mubr.f32.mxu0 %v338
        %595 = vmatmul.mubr.f32.gmra.mrb[0].mxu0 %v337
        %v596 = vpop.f32.mrb[0].mxu0
        %v597 = vadd.f32 %v378, %v596
        %v598 = vpop.f32.mrb[0].mxu0
        %599 = vmatprep.mubr.f32.mxu0 %v340
        %600 = vmatmul.mubr.f32.gmra.mrb[0].mxu0 %v339
        %v601 = vpop.f32.mrb[0].mxu0
        %v602 = vadd.f32 %v378, %v601
        %v603 = vpop.f32.mrb[0].mxu0
        %604 = vdwg.mxu0
        %v605 = vmax.f32 %v447, 0.0
        %v606 = vmax.f32 %v452, 0.0
        %v607 = vmax.f32 %v457, 0.0
        %v608 = vmax.f32 %v462, 0.0
        %v609 = vmax.f32 %v467, 0.0
        %v610 = vmax.f32 %v472, 0.0
        %v611 = vmax.f32 %v477, 0.0
        %v612 = vmax.f32 %v482, 0.0
        %v613 = vmax.f32 %v487, 0.0
        %v614 = vmax.f32 %v492, 0.0
        %v615 = vmax.f32 %v497, 0.0
        %v616 = vmax.f32 %v502, 0.0
        %v617 = vmax.f32 %v507, 0.0
        %v618 = vmax.f32 %v512, 0.0
        %v619 = vmax.f32 %v517, 0.0
        %v620 = vmax.f32 %v522, 0.0
        %v621 = vmax.f32 %v527, 0.0
        %v622 = vmax.f32 %v532, 0.0
        %v623 = vmax.f32 %v537, 0.0
        %v624 = vmax.f32 %v542, 0.0
        %v625 = vmax.f32 %v547, 0.0
        %v626 = vmax.f32 %v552, 0.0
        %v627 = vmax.f32 %v557, 0.0
        %v628 = vmax.f32 %v562, 0.0
        %v629 = vmax.f32 %v567, 0.0
        %v630 = vmax.f32 %v572, 0.0
        %v631 = vmax.f32 %v577, 0.0
        %v632 = vmax.f32 %v582, 0.0
        %v633 = vmax.f32 %v587, 0.0
        %v634 = vmax.f32 %v592, 0.0
        %v635 = vmax.f32 %v597, 0.0
        %v636 = vmax.f32 %v602, 0.0
        %vm637 = vcmask 523264
        %638 = vst.msk [vmem:[#allocation2] sm:$0xff] %vm637, 0.0
        %639 = vst.msk [vmem:[#allocation2 + $0x8] sm:$0xff] %vm637, 0.0
        %vm640 = vcmask 517120
        %641 = vst.msk [vmem:[#allocation2 + $0x10] sm:$0x3] %vm640, 0.0
        %642 = vst.msk [vmem:[#allocation2 + $0x18] sm:$0xff] %vm637, 0.0
        %643 = vst.msk [vmem:[#allocation2 + $0x20] sm:$0xff] %vm637, 0.0
        %644 = vst.msk [vmem:[#allocation2 + $0x28] sm:$0x3] %vm640, 0.0
        %645 = vst.msk [vmem:[#allocation2 + $0x30] sm:$0xff] %vm637, 0.0
        %646 = vst.msk [vmem:[#allocation2 + $0x38] sm:$0xff] %vm637, 0.0
        %647 = vst.msk [vmem:[#allocation2 + $0x40] sm:$0x3] %vm640, 0.0
        %648 = vst.msk [vmem:[#allocation2 + $0x48] sm:$0xff] %vm637, 0.0
        %649 = vst.msk [vmem:[#allocation2 + $0x50] sm:$0xff] %vm637, 0.0
        %650 = vst.msk [vmem:[#allocation2 + $0x58] sm:$0x3] %vm640, 0.0
        %651 = vst.msk [vmem:[#allocation2 + $0x60] sm:$0xff] %vm637, 0.0
        %652 = vst.msk [vmem:[#allocation2 + $0x68] sm:$0xff] %vm637, 0.0
        %653 = vst.msk [vmem:[#allocation2 + $0x70] sm:$0x3] %vm640, 0.0
        %654 = vst.msk [vmem:[#allocation2 + $0x78] sm:$0xff] %vm637, 0.0
        %655 = vst.msk [vmem:[#allocation2 + $0x80] sm:$0xff] %vm637, 0.0
        %656 = vst.msk [vmem:[#allocation2 + $0x88] sm:$0x3] %vm640, 0.0
        %657 = vst.msk [vmem:[#allocation2 + $0x90] sm:$0xff] %vm637, 0.0
        %658 = vst.msk [vmem:[#allocation2 + $0x98] sm:$0xff] %vm637, 0.0
        %659 = vst.msk [vmem:[#allocation2 + $0xa0] sm:$0x3] %vm640, 0.0
        %660 = vst.msk [vmem:[#allocation2 + $0xa8] sm:$0xff] %vm637, 0.0
        %661 = vst.msk [vmem:[#allocation2 + $0xb0] sm:$0xff] %vm637, 0.0
        %662 = vst.msk [vmem:[#allocation2 + $0xb8] sm:$0x3] %vm640, 0.0
        %663 = vst.msk [vmem:[#allocation2 + $0xc0] sm:$0xff] %vm637, 0.0
        %664 = vst.msk [vmem:[#allocation2 + $0xc8] sm:$0xff] %vm637, 0.0
        %665 = vst.msk [vmem:[#allocation2 + $0xd0] sm:$0x3] %vm640, 0.0
        %666 = vst.msk [vmem:[#allocation2 + $0xd8] sm:$0xff] %vm637, 0.0
        %667 = vst.msk [vmem:[#allocation2 + $0xe0] sm:$0xff] %vm637, 0.0
        %668 = vst.msk [vmem:[#allocation2 + $0xe8] sm:$0x3] %vm640, 0.0
        %669 = vst.msk [vmem:[#allocation2 + $0xf0] sm:$0xff] %vm637, 0.0
        %670 = vst.msk [vmem:[#allocation2 + $0xf8] sm:$0xff] %vm637, 0.0
        %671 = vst.msk [vmem:[#allocation2 + $0x100] sm:$0x3] %vm640, 0.0
        %672 = vst.msk [vmem:[#allocation2 + $0x108] sm:$0xff] %vm637, 0.0
        %673 = vst.msk [vmem:[#allocation2 + $0x110] sm:$0xff] %vm637, 0.0
        %674 = vst.msk [vmem:[#allocation2 + $0x118] sm:$0x3] %vm640, 0.0
        %675 = vst.msk [vmem:[#allocation2 + $0x120] sm:$0xff] %vm637, 0.0
        %676 = vst.msk [vmem:[#allocation2 + $0x128] sm:$0xff] %vm637, 0.0
        %677 = vst.msk [vmem:[#allocation2 + $0x130] sm:$0x3] %vm640, 0.0
        %678 = vst.msk [vmem:[#allocation2 + $0x138] sm:$0xff] %vm637, 0.0
        %679 = vst.msk [vmem:[#allocation2 + $0x140] sm:$0xff] %vm637, 0.0
        %680 = vst.msk [vmem:[#allocation2 + $0x148] sm:$0x3] %vm640, 0.0
        %681 = vst.msk [vmem:[#allocation2 + $0x150] sm:$0xff] %vm637, 0.0
        %682 = vst.msk [vmem:[#allocation2 + $0x158] sm:$0xff] %vm637, 0.0
        %683 = vst.msk [vmem:[#allocation2 + $0x160] sm:$0x3] %vm640, 0.0
        %684 = vst.msk [vmem:[#allocation2 + $0x168] sm:$0xff] %vm637, 0.0
        %685 = vst.msk [vmem:[#allocation2 + $0x170] sm:$0xff] %vm637, 0.0
        %686 = vst.msk [vmem:[#allocation2 + $0x178] sm:$0x3] %vm640, 0.0
        %687 = vst.msk [vmem:[#allocation2 + $0x180] sm:$0xff] %vm637, 0.0
        %688 = vst.msk [vmem:[#allocation2 + $0x188] sm:$0xff] %vm637, 0.0
        %689 = vst.msk [vmem:[#allocation2 + $0x190] sm:$0x3] %vm640, 0.0
        %690 = vst.msk [vmem:[#allocation2 + $0x198] sm:$0xff] %vm637, 0.0
        %691 = vst.msk [vmem:[#allocation2 + $0x1a0] sm:$0xff] %vm637, 0.0
        %692 = vst.msk [vmem:[#allocation2 + $0x1a8] sm:$0x3] %vm640, 0.0
        %s693 = scalar_lea.vmem [#allocation2], 24
        %694 = vst.msk [vmem:[%s693 + $0x1] sm:$0xff] %vm637, %v605
        %695 = vst.msk [vmem:[%s693 + $0x9] sm:$0xff] %vm637, %v606
        %696 = vst.msk [vmem:[%s693 + $0x19] sm:$0xff] %vm637, %v607
        %697 = vst.msk [vmem:[%s693 + $0x21] sm:$0xff] %vm637, %v608
        %698 = vst.msk [vmem:[%s693 + $0x31] sm:$0xff] %vm637, %v609
        %699 = vst.msk [vmem:[%s693 + $0x39] sm:$0xff] %vm637, %v610
        %700 = vst.msk [vmem:[%s693 + $0x49] sm:$0xff] %vm637, %v611
        %701 = vst.msk [vmem:[%s693 + $0x51] sm:$0xff] %vm637, %v612
        %702 = vst.msk [vmem:[%s693 + $0x61] sm:$0xff] %vm637, %v613
        %703 = vst.msk [vmem:[%s693 + $0x69] sm:$0xff] %vm637, %v614
        %704 = vst.msk [vmem:[%s693 + $0x79] sm:$0xff] %vm637, %v615
        %705 = vst.msk [vmem:[%s693 + $0x81] sm:$0xff] %vm637, %v616
        %706 = vst.msk [vmem:[%s693 + $0x91] sm:$0xff] %vm637, %v617
        %707 = vst.msk [vmem:[%s693 + $0x99] sm:$0xff] %vm637, %v618
        %708 = vst.msk [vmem:[%s693 + $0xa9] sm:$0xff] %vm637, %v619
        %709 = vst.msk [vmem:[%s693 + $0xb1] sm:$0xff] %vm637, %v620
        %710 = vst.msk [vmem:[%s693 + $0xc1] sm:$0xff] %vm637, %v621
        %711 = vst.msk [vmem:[%s693 + $0xc9] sm:$0xff] %vm637, %v622
        %712 = vst.msk [vmem:[%s693 + $0xd9] sm:$0xff] %vm637, %v623
        %713 = vst.msk [vmem:[%s693 + $0xe1] sm:$0xff] %vm637, %v624
        %714 = vst.msk [vmem:[%s693 + $0xf1] sm:$0xff] %vm637, %v625
        %715 = vst.msk [vmem:[%s693 + $0xf9] sm:$0xff] %vm637, %v626
        %716 = vst.msk [vmem:[%s693 + $0x109] sm:$0xff] %vm637, %v627
        %717 = vst.msk [vmem:[%s693 + $0x111] sm:$0xff] %vm637, %v628
        %718 = vst.msk [vmem:[%s693 + $0x121] sm:$0xff] %vm637, %v629
        %719 = vst.msk [vmem:[%s693 + $0x129] sm:$0xff] %vm637, %v630
        %720 = vst.msk [vmem:[%s693 + $0x139] sm:$0xff] %vm637, %v631
        %721 = vst.msk [vmem:[%s693 + $0x141] sm:$0xff] %vm637, %v632
        %722 = vst.msk [vmem:[%s693 + $0x151] sm:$0xff] %vm637, %v633
        %723 = vst.msk [vmem:[%s693 + $0x159] sm:$0xff] %vm637, %v634
        %724 = vst.msk [vmem:[%s693 + $0x169] sm:$0xff] %vm637, %v635
        %725 = vst.msk [vmem:[%s693 + $0x171] sm:$0xff] %vm637, %v636
        %v726 = vld [vmem:[#allocation2] sm:$0xff]
        %v727 = vld [vmem:[#allocation2 + $0x8] sm:$0xff]
        %v728 = vld [vmem:[#allocation2 + $0x10] sm:$0x3]
        %v729 = vld [vmem:[#allocation2 + $0x18] sm:$0xff]
        %v730 = vld [vmem:[#allocation2 + $0x20] sm:$0xff]
        %v731 = vld [vmem:[#allocation2 + $0x28] sm:$0x3]
        %v732 = vld [vmem:[#allocation2 + $0x30] sm:$0xff]
        %v733 = vld [vmem:[#allocation2 + $0x38] sm:$0xff]
        %v734 = vld [vmem:[#allocation2 + $0x40] sm:$0x3]
        %v735 = vld [vmem:[#allocation2 + $0x48] sm:$0xff]
        %v736 = vld [vmem:[#allocation2 + $0x50] sm:$0xff]
        %v737 = vld [vmem:[#allocation2 + $0x58] sm:$0x3]
        %v738 = vld [vmem:[#allocation2 + $0x60] sm:$0xff]
        %v739 = vld [vmem:[#allocation2 + $0x68] sm:$0xff]
        %v740 = vld [vmem:[#allocation2 + $0x70] sm:$0x3]
        %v741 = vld [vmem:[#allocation2 + $0x78] sm:$0xff]
        %v742 = vld [vmem:[#allocation2 + $0x80] sm:$0xff]
        %v743 = vld [vmem:[#allocation2 + $0x88] sm:$0x3]
        %v744 = vld [vmem:[#allocation2 + $0x90] sm:$0xff]
        %v745 = vld [vmem:[#allocation2 + $0x98] sm:$0xff]
        %v746 = vld [vmem:[#allocation2 + $0xa0] sm:$0x3]
        %v747 = vld [vmem:[#allocation2 + $0xa8] sm:$0xff]
        %v748 = vld [vmem:[#allocation2 + $0xb0] sm:$0xff]
        %v749 = vld [vmem:[#allocation2 + $0xb8] sm:$0x3]
        %v750 = vld [vmem:[#allocation2 + $0xc0] sm:$0xff]
        %v751 = vld [vmem:[#allocation2 + $0xc8] sm:$0xff]
        %v752 = vld [vmem:[#allocation2 + $0xd0] sm:$0x3]
        %v753 = vld [vmem:[#allocation2 + $0xd8] sm:$0xff]
        %v754 = vld [vmem:[#allocation2 + $0xe0] sm:$0xff]
        %v755 = vld [vmem:[#allocation2 + $0xe8] sm:$0x3]
        %v756 = vld [vmem:[#allocation2 + $0xf0] sm:$0xff]
        %v757 = vld [vmem:[#allocation2 + $0xf8] sm:$0xff]
        %v758 = vld [vmem:[#allocation2 + $0x100] sm:$0x3]
        %v759 = vld [vmem:[#allocation2 + $0x108] sm:$0xff]
        %v760 = vld [vmem:[#allocation2 + $0x110] sm:$0xff]
        %v761 = vld [vmem:[#allocation2 + $0x118] sm:$0x3]
        %v762 = vld [vmem:[#allocation2 + $0x120] sm:$0xff]
        %v763 = vld [vmem:[#allocation2 + $0x128] sm:$0xff]
        %v764 = vld [vmem:[#allocation2 + $0x130] sm:$0x3]
        %v765 = vld [vmem:[#allocation2 + $0x138] sm:$0xff]
        %v766 = vld [vmem:[#allocation2 + $0x140] sm:$0xff]
        %v767 = vld [vmem:[#allocation2 + $0x148] sm:$0x3]
        %v768 = vld [vmem:[#allocation2 + $0x150] sm:$0xff]
        %v769 = vld [vmem:[#allocation2 + $0x158] sm:$0xff]
        %v770 = vld [vmem:[#allocation2 + $0x160] sm:$0x3]
        %v771 = vld [vmem:[#allocation2 + $0x168] sm:$0xff]
        %v772 = vld [vmem:[#allocation2 + $0x170] sm:$0xff]
        %v773 = vld [vmem:[#allocation2 + $0x178] sm:$0x3]
        %v774 = vld [vmem:[#allocation2 + $0x180] sm:$0xff]
        %v775 = vld [vmem:[#allocation2 + $0x188] sm:$0xff]
        %v776 = vld [vmem:[#allocation2 + $0x190] sm:$0x3]
        %v777 = vld [vmem:[#allocation2 + $0x198] sm:$0xff]
        %v778 = vld [vmem:[#allocation2 + $0x1a0] sm:$0xff]
        %v779 = vld [vmem:[#allocation2 + $0x1a8] sm:$0x3]
        %v780 = vld [vmem:[%s3] sm:$0xff]
        %v781 = vld [vmem:[%s3 + $0x8] sm:$0xff]
        %v782 = vld [vmem:[%s3 + $0x10] sm:$0xff]
        %v783 = vld [vmem:[%s3 + $0x18] sm:$0xff]
        %v784 = vld [vmem:[%s3 + $0x20] sm:$0xff]
        %v785 = vld [vmem:[%s3 + $0x28] sm:$0xff]
        %v786 = vld [vmem:[%s3 + $0x30] sm:$0xff]
        %v787 = vld [vmem:[%s3 + $0x38] sm:$0xff]
        %vm836 = vcmask 1046528
        %v837 = vrot.slane %v726, 1
        %v838 = vrot.slane %v727, 1
        %v839 = vsel %vm836, %v837, %v838
        %v840 = vrot.slane %v728, 1
        %v841 = vsel %vm836, %v838, %v840
        %v842 = vrot.slane %v729, 1
        %v843 = vrot.slane %v730, 1
        %v844 = vsel %vm836, %v842, %v843
        %v845 = vrot.slane %v731, 1
        %v846 = vsel %vm836, %v843, %v845
        %v847 = vrot.slane %v732, 1
        %v848 = vrot.slane %v733, 1
        %v849 = vsel %vm836, %v847, %v848
        %v850 = vrot.slane %v734, 1
        %v851 = vsel %vm836, %v848, %v850
        %v852 = vrot.slane %v735, 1
        %v853 = vrot.slane %v736, 1
        %v854 = vsel %vm836, %v852, %v853
        %v855 = vrot.slane %v737, 1
        %v856 = vsel %vm836, %v853, %v855
        %v857 = vrot.slane %v738, 1
        %v858 = vrot.slane %v739, 1
        %v859 = vsel %vm836, %v857, %v858
        %v860 = vrot.slane %v740, 1
        %v861 = vsel %vm836, %v858, %v860
        %v862 = vrot.slane %v741, 1
        %v863 = vrot.slane %v742, 1
        %v864 = vsel %vm836, %v862, %v863
        %v865 = vrot.slane %v743, 1
        %v866 = vsel %vm836, %v863, %v865
        %v867 = vrot.slane %v744, 1
        %v868 = vrot.slane %v745, 1
        %v869 = vsel %vm836, %v867, %v868
        %v870 = vrot.slane %v746, 1
        %v871 = vsel %vm836, %v868, %v870
        %v872 = vrot.slane %v747, 1
        %v873 = vrot.slane %v748, 1
        %v874 = vsel %vm836, %v872, %v873
        %v875 = vrot.slane %v749, 1
        %v876 = vsel %vm836, %v873, %v875
        %v877 = vrot.slane %v750, 1
        %v878 = vrot.slane %v751, 1
        %v879 = vsel %vm836, %v877, %v878
        %v880 = vrot.slane %v752, 1
        %v881 = vsel %vm836, %v878, %v880
        %v882 = vrot.slane %v753, 1
        %v883 = vrot.slane %v754, 1
        %v884 = vsel %vm836, %v882, %v883
        %v885 = vrot.slane %v755, 1
        %v886 = vsel %vm836, %v883, %v885
        %v887 = vrot.slane %v756, 1
        %v888 = vrot.slane %v757, 1
        %v889 = vsel %vm836, %v887, %v888
        %v890 = vrot.slane %v758, 1
        %v891 = vsel %vm836, %v888, %v890
        %v892 = vrot.slane %v759, 1
        %v893 = vrot.slane %v760, 1
        %v894 = vsel %vm836, %v892, %v893
        %v895 = vrot.slane %v761, 1
        %v896 = vsel %vm836, %v893, %v895
        %v897 = vrot.slane %v762, 1
        %v898 = vrot.slane %v763, 1
        %v899 = vsel %vm836, %v897, %v898
        %v900 = vrot.slane %v764, 1
        %v901 = vsel %vm836, %v898, %v900
        %v902 = vrot.slane %v765, 1
        %v903 = vrot.slane %v766, 1
        %v904 = vsel %vm836, %v902, %v903
        %v905 = vrot.slane %v767, 1
        %v906 = vsel %vm836, %v903, %v905
        %v907 = vrot.slane %v768, 1
        %v908 = vrot.slane %v769, 1
        %v909 = vsel %vm836, %v907, %v908
        %v910 = vrot.slane %v770, 1
        %v911 = vsel %vm836, %v908, %v910
        %v912 = vrot.slane %v771, 1
        %v913 = vrot.slane %v772, 1
        %v914 = vsel %vm836, %v912, %v913
        %v915 = vrot.slane %v773, 1
        %v916 = vsel %vm836, %v913, %v915
        %v917 = vld [vmem:[%s3 + $0x40] sm:$0xff]
        %v918 = vld [vmem:[%s3 + $0x48] sm:$0xff]
        %v919 = vld [vmem:[%s3 + $0x50] sm:$0xff]
        %v920 = vld [vmem:[%s3 + $0x58] sm:$0xff]
        %v921 = vld [vmem:[%s3 + $0x60] sm:$0xff]
        %v922 = vld [vmem:[%s3 + $0x68] sm:$0xff]
        %v923 = vld [vmem:[%s3 + $0x70] sm:$0xff]
        %v924 = vld [vmem:[%s3 + $0x78] sm:$0xff]
        %v925 = vsel %vm637, %v839, 0
        %v927 = vsel %vm637, %v841, 0
        %v929 = vsel %vm637, %v844, 0
        %v931 = vsel %vm637, %v846, 0
        %v933 = vsel %vm637, %v849, 0
        %v935 = vsel %vm637, %v851, 0
        %v937 = vsel %vm637, %v854, 0
        %v939 = vsel %vm637, %v856, 0
        %v941 = vsel %vm637, %v859, 0
        %v943 = vsel %vm637, %v861, 0
        %v945 = vsel %vm637, %v864, 0
        %v947 = vsel %vm637, %v866, 0
        %v949 = vsel %vm637, %v869, 0
        %v951 = vsel %vm637, %v871, 0
        %v953 = vsel %vm637, %v874, 0
        %v955 = vsel %vm637, %v876, 0
        %v957 = vsel %vm637, %v879, 0
        %v959 = vsel %vm637, %v881, 0
        %v961 = vsel %vm637, %v884, 0
        %v963 = vsel %vm637, %v886, 0
        %v965 = vsel %vm637, %v889, 0
        %v967 = vsel %vm637, %v891, 0
        %v969 = vsel %vm637, %v894, 0
        %v971 = vsel %vm637, %v896, 0
        %v973 = vsel %vm637, %v899, 0
        %v975 = vsel %vm637, %v901, 0
        %v977 = vsel %vm637, %v904, 0
        %v979 = vsel %vm637, %v906, 0
        %v981 = vsel %vm637, %v909, 0
        %v983 = vsel %vm637, %v911, 0
        %v985 = vsel %vm637, %v914, 0
        %v987 = vsel %vm637, %v916, 0
        %989 = vmatprep.subr.mxu0 0.0
        %990 = vmatpush1.msra.mxu0 %v917
        %991 = vmatprep.subr.mxu0 0.0
        %992 = vmatpush1.msra.mxu0 %v918
        %993 = vmatprep.subr.mxu0 0.0
        %994 = vmatpush1.msra.mxu0 %v919
        %995 = vmatprep.subr.mxu0 0.0
        %996 = vmatpush1.msra.mxu0 %v920
        %997 = vmatprep.subr.mxu0 0.0
        %998 = vmatpush1.msra.mxu0 %v921
        %999 = vmatprep.subr.mxu0 0.0
        %1000 = vmatpush1.msra.mxu0 %v922
        %1001 = vmatprep.subr.mxu0 0.0
        %1002 = vmatpush1.msra.mxu0 %v923
        %1003 = vmatprep.subr.mxu0 0.0
        %1004 = vmatpush1.msra.mxu0 %v924
        %1005 = vmatprep.subr.mxu0 0.0
        %1006 = vmatpush1.msra.mxu0 0.0
        %1007 = vmatprep.subr.mxu0 0.0
        %1008 = vmatpush1.msra.mxu0 0.0
        %1009 = vmatprep.subr.mxu0 0.0
        %1010 = vmatpush1.msra.mxu0 0.0
        %1011 = vmatprep.subr.mxu0 0.0
        %1012 = vmatpush1.msra.mxu0 0.0
        %1013 = vmatprep.subr.mxu0 0.0
        %1014 = vmatpush1.msra.mxu0 0.0
        %1015 = vmatprep.subr.mxu0 0.0
        %1016 = vmatpush1.msra.mxu0 0.0
        %1017 = vmatprep.subr.mxu0 0.0
        %1018 = vmatpush1.msra.mxu0 0.0
        %1019 = vmatprep.subr.mxu0 0.0
        %1020 = vmatpush1.msra.mxu0 0.0
        %1021 = vmatprep.subr.mxu0 0.0
        %1022 = vmatpush1.msra.mxu0 0.0
        %1023 = vmatprep.subr.mxu0 0.0
        %1024 = vmatpush1.msra.mxu0 0.0
        %1025 = vmatprep.subr.mxu0 0.0
        %1026 = vmatpush1.msra.mxu0 0.0
        %1027 = vmatprep.subr.mxu0 0.0
        %1028 = vmatpush1.msra.mxu0 0.0
        %1029 = vmatprep.subr.mxu0 0.0
        %1030 = vmatpush1.msra.mxu0 0.0
        %1031 = vmatprep.subr.mxu0 0.0
        %1032 = vmatpush1.msra.mxu0 0.0
        %1033 = vmatprep.subr.mxu0 0.0
        %1034 = vmatpush1.msra.mxu0 0.0
        %1035 = vmatprep.subr.mxu0 0.0
        %1036 = vmatpush1.msra.mxu0 0.0
        %1037 = vmatprep.subr.mxu0 0.0
        %1038 = vmatpush1.msra.mxu0 0.0
        %1039 = vmatprep.subr.mxu0 0.0
        %1040 = vmatpush1.msra.mxu0 0.0
        %1041 = vmatprep.subr.mxu0 0.0
        %1042 = vmatpush1.msra.mxu0 0.0
        %1043 = vmatprep.subr.mxu0 0.0
        %1044 = vmatpush1.msra.mxu0 0.0
        %1045 = vmatprep.subr.mxu0 0.0
        %1046 = vmatpush1.msra.mxu0 0.0
        %1047 = vmatprep.subr.mxu0 0.0
        %1048 = vmatpush1.msra.mxu0 0.0
        %1049 = vmatprep.subr.mxu0 0.0
        %1050 = vmatpush1.msra.mxu0 0.0
        %1051 = vmatprep.subr.mxu0 0.0
        %1052 = vmatpush1.msra.mxu0 0.0
        %1053 = vmatprep.mubr.f32.mxu0 0.0
        %1054 = vmatmul.mubr.f32.gmra.mrb[0].mxu0 %v925
        %v1055 = vpop.f32.mrb[0].mxu0
        %v1056 = vadd.f32 0.0, %v1055
        %v1057 = vpop.f32.mrb[0].mxu0
        %1058 = vmatprep.mubr.f32.mxu0 0.0
        %1059 = vmatmul.mubr.f32.gmra.mrb[0].mxu0 %v927
        %v1060 = vpop.f32.mrb[0].mxu0
        %v1061 = vadd.f32 0.0, %v1060
        %v1062 = vpop.f32.mrb[0].mxu0
        %1063 = vmatprep.mubr.f32.mxu0 0.0
        %1064 = vmatmul.mubr.f32.gmra.mrb[0].mxu0 %v929
        %v1065 = vpop.f32.mrb[0].mxu0
        %v1066 = vadd.f32 0.0, %v1065
        %v1067 = vpop.f32.mrb[0].mxu0
        %1068 = vmatprep.mubr.f32.mxu0 0.0
        %1069 = vmatmul.mubr.f32.gmra.mrb[0].mxu0 %v931
        %v1070 = vpop.f32.mrb[0].mxu0
        %v1071 = vadd.f32 0.0, %v1070
        %v1072 = vpop.f32.mrb[0].mxu0
        %1073 = vmatprep.mubr.f32.mxu0 0.0
        %1074 = vmatmul.mubr.f32.gmra.mrb[0].mxu0 %v933
        %v1075 = vpop.f32.mrb[0].mxu0
        %v1076 = vadd.f32 0.0, %v1075
        %v1077 = vpop.f32.mrb[0].mxu0
        %1078 = vmatprep.mubr.f32.mxu0 0.0
        %1079 = vmatmul.mubr.f32.gmra.mrb[0].mxu0 %v935
        %v1080 = vpop.f32.mrb[0].mxu0
        %v1081 = vadd.f32 0.0, %v1080
        %v1082 = vpop.f32.mrb[0].mxu0
        %1083 = vmatprep.mubr.f32.mxu0 0.0
        %1084 = vmatmul.mubr.f32.gmra.mrb[0].mxu0 %v937
        %v1085 = vpop.f32.mrb[0].mxu0
        %v1086 = vadd.f32 0.0, %v1085
        %v1087 = vpop.f32.mrb[0].mxu0
        %1088 = vmatprep.mubr.f32.mxu0 0.0
        %1089 = vmatmul.mubr.f32.gmra.mrb[0].mxu0 %v939
        %v1090 = vpop.f32.mrb[0].mxu0
        %v1091 = vadd.f32 0.0, %v1090
        %v1092 = vpop.f32.mrb[0].mxu0
        %1093 = vmatprep.mubr.f32.mxu0 0.0
        %1094 = vmatmul.mubr.f32.gmra.mrb[0].mxu0 %v941
        %v1095 = vpop.f32.mrb[0].mxu0
        %v1096 = vadd.f32 0.0, %v1095
        %v1097 = vpop.f32.mrb[0].mxu0
        %1098 = vmatprep.mubr.f32.mxu0 0.0
        %1099 = vmatmul.mubr.f32.gmra.mrb[0].mxu0 %v943
        %v1100 = vpop.f32.mrb[0].mxu0
        %v1101 = vadd.f32 0.0, %v1100
        %v1102 = vpop.f32.mrb[0].mxu0
        %1103 = vmatprep.mubr.f32.mxu0 0.0
        %1104 = vmatmul.mubr.f32.gmra.mrb[0].mxu0 %v945
        %v1105 = vpop.f32.mrb[0].mxu0
        %v1106 = vadd.f32 0.0, %v1105
        %v1107 = vpop.f32.mrb[0].mxu0
        %1108 = vmatprep.mubr.f32.mxu0 0.0
        %1109 = vmatmul.mubr.f32.gmra.mrb[0].mxu0 %v947
        %v1110 = vpop.f32.mrb[0].mxu0
        %v1111 = vadd.f32 0.0, %v1110
        %v1112 = vpop.f32.mrb[0].mxu0
        %1113 = vmatprep.mubr.f32.mxu0 0.0
        %1114 = vmatmul.mubr.f32.gmra.mrb[0].mxu0 %v949
        %v1115 = vpop.f32.mrb[0].mxu0
        %v1116 = vadd.f32 0.0, %v1115
        %v1117 = vpop.f32.mrb[0].mxu0
        %1118 = vmatprep.mubr.f32.mxu0 0.0
        %1119 = vmatmul.mubr.f32.gmra.mrb[0].mxu0 %v951
        %v1120 = vpop.f32.mrb[0].mxu0
        %v1121 = vadd.f32 0.0, %v1120
        %v1122 = vpop.f32.mrb[0].mxu0
        %1123 = vmatprep.mubr.f32.mxu0 0.0
        %1124 = vmatmul.mubr.f32.gmra.mrb[0].mxu0 %v953
        %v1125 = vpop.f32.mrb[0].mxu0
        %v1126 = vadd.f32 0.0, %v1125
        %v1127 = vpop.f32.mrb[0].mxu0
        %1128 = vmatprep.mubr.f32.mxu0 0.0
        %1129 = vmatmul.mubr.f32.gmra.mrb[0].mxu0 %v955
        %v1130 = vpop.f32.mrb[0].mxu0
        %v1131 = vadd.f32 0.0, %v1130
        %v1132 = vpop.f32.mrb[0].mxu0
        %1133 = vmatprep.mubr.f32.mxu0 0.0
        %1134 = vmatmul.mubr.f32.gmra.mrb[0].mxu0 %v957
        %v1135 = vpop.f32.mrb[0].mxu0
        %v1136 = vadd.f32 0.0, %v1135
        %v1137 = vpop.f32.mrb[0].mxu0
        %1138 = vmatprep.mubr.f32.mxu0 0.0
        %1139 = vmatmul.mubr.f32.gmra.mrb[0].mxu0 %v959
        %v1140 = vpop.f32.mrb[0].mxu0
        %v1141 = vadd.f32 0.0, %v1140
        %v1142 = vpop.f32.mrb[0].mxu0
        %1143 = vmatprep.mubr.f32.mxu0 0.0
        %1144 = vmatmul.mubr.f32.gmra.mrb[0].mxu0 %v961
        %v1145 = vpop.f32.mrb[0].mxu0
        %v1146 = vadd.f32 0.0, %v1145
        %v1147 = vpop.f32.mrb[0].mxu0
        %1148 = vmatprep.mubr.f32.mxu0 0.0
        %1149 = vmatmul.mubr.f32.gmra.mrb[0].mxu0 %v963
        %v1150 = vpop.f32.mrb[0].mxu0
        %v1151 = vadd.f32 0.0, %v1150
        %v1152 = vpop.f32.mrb[0].mxu0
        %1153 = vmatprep.mubr.f32.mxu0 0.0
        %1154 = vmatmul.mubr.f32.gmra.mrb[0].mxu0 %v965
        %v1155 = vpop.f32.mrb[0].mxu0
        %v1156 = vadd.f32 0.0, %v1155
        %v1157 = vpop.f32.mrb[0].mxu0
        %1158 = vmatprep.mubr.f32.mxu0 0.0
        %1159 = vmatmul.mubr.f32.gmra.mrb[0].mxu0 %v967
        %v1160 = vpop.f32.mrb[0].mxu0
        %v1161 = vadd.f32 0.0, %v1160
        %v1162 = vpop.f32.mrb[0].mxu0
        %1163 = vmatprep.mubr.f32.mxu0 0.0
        %1164 = vmatmul.mubr.f32.gmra.mrb[0].mxu0 %v969
        %v1165 = vpop.f32.mrb[0].mxu0
        %v1166 = vadd.f32 0.0, %v1165
        %v1167 = vpop.f32.mrb[0].mxu0
        %1168 = vmatprep.mubr.f32.mxu0 0.0
        %1169 = vmatmul.mubr.f32.gmra.mrb[0].mxu0 %v971
        %v1170 = vpop.f32.mrb[0].mxu0
        %v1171 = vadd.f32 0.0, %v1170
        %v1172 = vpop.f32.mrb[0].mxu0
        %1173 = vmatprep.mubr.f32.mxu0 0.0
        %1174 = vmatmul.mubr.f32.gmra.mrb[0].mxu0 %v973
        %v1175 = vpop.f32.mrb[0].mxu0
        %v1176 = vadd.f32 0.0, %v1175
        %v1177 = vpop.f32.mrb[0].mxu0
        %1178 = vmatprep.mubr.f32.mxu0 0.0
        %1179 = vmatmul.mubr.f32.gmra.mrb[0].mxu0 %v975
        %v1180 = vpop.f32.mrb[0].mxu0
        %v1181 = vadd.f32 0.0, %v1180
        %v1182 = vpop.f32.mrb[0].mxu0
        %1183 = vmatprep.mubr.f32.mxu0 0.0
        %1184 = vmatmul.mubr.f32.gmra.mrb[0].mxu0 %v977
        %v1185 = vpop.f32.mrb[0].mxu0
        %v1186 = vadd.f32 0.0, %v1185
        %v1187 = vpop.f32.mrb[0].mxu0
        %1188 = vmatprep.mubr.f32.mxu0 0.0
        %1189 = vmatmul.mubr.f32.gmra.mrb[0].mxu0 %v979
        %v1190 = vpop.f32.mrb[0].mxu0
        %v1191 = vadd.f32 0.0, %v1190
        %v1192 = vpop.f32.mrb[0].mxu0
        %1193 = vmatprep.mubr.f32.mxu0 0.0
        %1194 = vmatmul.mubr.f32.gmra.mrb[0].mxu0 %v981
        %v1195 = vpop.f32.mrb[0].mxu0
        %v1196 = vadd.f32 0.0, %v1195
        %v1197 = vpop.f32.mrb[0].mxu0
        %1198 = vmatprep.mubr.f32.mxu0 0.0
        %1199 = vmatmul.mubr.f32.gmra.mrb[0].mxu0 %v983
        %v1200 = vpop.f32.mrb[0].mxu0
        %v1201 = vadd.f32 0.0, %v1200
        %v1202 = vpop.f32.mrb[0].mxu0
        %1203 = vmatprep.mubr.f32.mxu0 0.0
        %1204 = vmatmul.mubr.f32.gmra.mrb[0].mxu0 %v985
        %v1205 = vpop.f32.mrb[0].mxu0
        %v1206 = vadd.f32 0.0, %v1205
        %v1207 = vpop.f32.mrb[0].mxu0
        %1208 = vmatprep.mubr.f32.mxu0 0.0
        %1209 = vmatmul.mubr.f32.gmra.mrb[0].mxu0 %v987
        %v1210 = vpop.f32.mrb[0].mxu0
        %v1211 = vadd.f32 0.0, %v1210
        %v1212 = vpop.f32.mrb[0].mxu0
        %1213 = vdwg.mxu0
        %v1214 = vsel %vm637, %v726, 0
        %v1216 = vsel %vm637, %v727, 0
        %v1218 = vsel %vm637, %v729, 0
        %v1220 = vsel %vm637, %v730, 0
        %v1222 = vsel %vm637, %v732, 0
        %v1224 = vsel %vm637, %v733, 0
        %v1226 = vsel %vm637, %v735, 0
        %v1228 = vsel %vm637, %v736, 0
        %v1230 = vsel %vm637, %v738, 0
        %v1232 = vsel %vm637, %v739, 0
        %v1234 = vsel %vm637, %v741, 0
        %v1236 = vsel %vm637, %v742, 0
        %v1238 = vsel %vm637, %v744, 0
        %v1240 = vsel %vm637, %v745, 0
        %v1242 = vsel %vm637, %v747, 0
        %v1244 = vsel %vm637, %v748, 0
        %v1246 = vsel %vm637, %v750, 0
        %v1248 = vsel %vm637, %v751, 0
        %v1250 = vsel %vm637, %v753, 0
        %v1252 = vsel %vm637, %v754, 0
        %v1254 = vsel %vm637, %v756, 0
        %v1256 = vsel %vm637, %v757, 0
        %v1258 = vsel %vm637, %v759, 0
        %v1260 = vsel %vm637, %v760, 0
        %v1262 = vsel %vm637, %v762, 0
        %v1264 = vsel %vm637, %v763, 0
        %v1266 = vsel %vm637, %v765, 0
        %v1268 = vsel %vm637, %v766, 0
        %v1270 = vsel %vm637, %v768, 0
        %v1272 = vsel %vm637, %v769, 0
        %v1274 = vsel %vm637, %v771, 0
        %v1276 = vsel %vm637, %v772, 0
        %1278 = vmatprep.subr.mxu0 0.0
        %1279 = vmatpush1.msra.mxu0 %v780
        %1280 = vmatprep.subr.mxu0 0.0
        %1281 = vmatpush1.msra.mxu0 %v781
        %1282 = vmatprep.subr.mxu0 0.0
        %1283 = vmatpush1.msra.mxu0 %v782
        %1284 = vmatprep.subr.mxu0 0.0
        %1285 = vmatpush1.msra.mxu0 %v783
        %1286 = vmatprep.subr.mxu0 0.0
        %1287 = vmatpush1.msra.mxu0 %v784
        %1288 = vmatprep.subr.mxu0 0.0
        %1289 = vmatpush1.msra.mxu0 %v785
        %1290 = vmatprep.subr.mxu0 0.0
        %1291 = vmatpush1.msra.mxu0 %v786
        %1292 = vmatprep.subr.mxu0 0.0
        %1293 = vmatpush1.msra.mxu0 %v787
        %1294 = vmatprep.subr.mxu0 0.0
        %1295 = vmatpush1.msra.mxu0 0.0
        %1296 = vmatprep.subr.mxu0 0.0
        %1297 = vmatpush1.msra.mxu0 0.0
        %1298 = vmatprep.subr.mxu0 0.0
        %1299 = vmatpush1.msra.mxu0 0.0
        %1300 = vmatprep.subr.mxu0 0.0
        %1301 = vmatpush1.msra.mxu0 0.0
        %1302 = vmatprep.subr.mxu0 0.0
        %1303 = vmatpush1.msra.mxu0 0.0
        %1304 = vmatprep.subr.mxu0 0.0
        %1305 = vmatpush1.msra.mxu0 0.0
        %1306 = vmatprep.subr.mxu0 0.0
        %1307 = vmatpush1.msra.mxu0 0.0
        %1308 = vmatprep.subr.mxu0 0.0
        %1309 = vmatpush1.msra.mxu0 0.0
        %1310 = vmatprep.subr.mxu0 0.0
        %1311 = vmatpush1.msra.mxu0 0.0
        %1312 = vmatprep.subr.mxu0 0.0
        %1313 = vmatpush1.msra.mxu0 0.0
        %1314 = vmatprep.subr.mxu0 0.0
        %1315 = vmatpush1.msra.mxu0 0.0
        %1316 = vmatprep.subr.mxu0 0.0
        %1317 = vmatpush1.msra.mxu0 0.0
        %1318 = vmatprep.subr.mxu0 0.0
        %1319 = vmatpush1.msra.mxu0 0.0
        %1320 = vmatprep.subr.mxu0 0.0
        %1321 = vmatpush1.msra.mxu0 0.0
        %1322 = vmatprep.subr.mxu0 0.0
        %1323 = vmatpush1.msra.mxu0 0.0
        %1324 = vmatprep.subr.mxu0 0.0
        %1325 = vmatpush1.msra.mxu0 0.0
        %1326 = vmatprep.subr.mxu0 0.0
        %1327 = vmatpush1.msra.mxu0 0.0
        %1328 = vmatprep.subr.mxu0 0.0
        %1329 = vmatpush1.msra.mxu0 0.0
        %1330 = vmatprep.subr.mxu0 0.0
        %1331 = vmatpush1.msra.mxu0 0.0
        %1332 = vmatprep.subr.mxu0 0.0
        %1333 = vmatpush1.msra.mxu0 0.0
        %1334 = vmatprep.subr.mxu0 0.0
        %1335 = vmatpush1.msra.mxu0 0.0
        %1336 = vmatprep.subr.mxu0 0.0
        %1337 = vmatpush1.msra.mxu0 0.0
        %1338 = vmatprep.subr.mxu0 0.0
        %1339 = vmatpush1.msra.mxu0 0.0
        %1340 = vmatprep.subr.mxu0 0.0
        %1341 = vmatpush1.msra.mxu0 0.0
        %1342 = vmatprep.mubr.f32.mxu0 0.0
        %1343 = vmatmul.mubr.f32.gmra.mrb[0].mxu0 %v1214
        %v1344 = vpop.f32.mrb[0].mxu0
        %v1345 = vadd.f32 %v1056, %v1344
        %v1346 = vpop.f32.mrb[0].mxu0
        %1347 = vmatprep.mubr.f32.mxu0 0.0
        %1348 = vmatmul.mubr.f32.gmra.mrb[0].mxu0 %v1216
        %v1349 = vpop.f32.mrb[0].mxu0
        %v1350 = vadd.f32 %v1061, %v1349
        %v1351 = vpop.f32.mrb[0].mxu0
        %1352 = vmatprep.mubr.f32.mxu0 0.0
        %1353 = vmatmul.mubr.f32.gmra.mrb[0].mxu0 %v1218
        %v1354 = vpop.f32.mrb[0].mxu0
        %v1355 = vadd.f32 %v1066, %v1354
        %v1356 = vpop.f32.mrb[0].mxu0
        %1357 = vmatprep.mubr.f32.mxu0 0.0
        %1358 = vmatmul.mubr.f32.gmra.mrb[0].mxu0 %v1220
        %v1359 = vpop.f32.mrb[0].mxu0
        %v1360 = vadd.f32 %v1071, %v1359
        %v1361 = vpop.f32.mrb[0].mxu0
        %1362 = vmatprep.mubr.f32.mxu0 0.0
        %1363 = vmatmul.mubr.f32.gmra.mrb[0].mxu0 %v1222
        %v1364 = vpop.f32.mrb[0].mxu0
        %v1365 = vadd.f32 %v1076, %v1364
        %v1366 = vpop.f32.mrb[0].mxu0
        %1367 = vmatprep.mubr.f32.mxu0 0.0
        %1368 = vmatmul.mubr.f32.gmra.mrb[0].mxu0 %v1224
        %v1369 = vpop.f32.mrb[0].mxu0
        %v1370 = vadd.f32 %v1081, %v1369
        %v1371 = vpop.f32.mrb[0].mxu0
        %1372 = vmatprep.mubr.f32.mxu0 0.0
        %1373 = vmatmul.mubr.f32.gmra.mrb[0].mxu0 %v1226
        %v1374 = vpop.f32.mrb[0].mxu0
        %v1375 = vadd.f32 %v1086, %v1374
        %v1376 = vpop.f32.mrb[0].mxu0
        %1377 = vmatprep.mubr.f32.mxu0 0.0
        %1378 = vmatmul.mubr.f32.gmra.mrb[0].mxu0 %v1228
        %v1379 = vpop.f32.mrb[0].mxu0
        %v1380 = vadd.f32 %v1091, %v1379
        %v1381 = vpop.f32.mrb[0].mxu0
        %1382 = vmatprep.mubr.f32.mxu0 0.0
        %1383 = vmatmul.mubr.f32.gmra.mrb[0].mxu0 %v1230
        %v1384 = vpop.f32.mrb[0].mxu0
        %v1385 = vadd.f32 %v1096, %v1384
        %v1386 = vpop.f32.mrb[0].mxu0
        %1387 = vmatprep.mubr.f32.mxu0 0.0
        %1388 = vmatmul.mubr.f32.gmra.mrb[0].mxu0 %v1232
        %v1389 = vpop.f32.mrb[0].mxu0
        %v1390 = vadd.f32 %v1101, %v1389
        %v1391 = vpop.f32.mrb[0].mxu0
        %1392 = vmatprep.mubr.f32.mxu0 0.0
        %1393 = vmatmul.mubr.f32.gmra.mrb[0].mxu0 %v1234
        %v1394 = vpop.f32.mrb[0].mxu0
        %v1395 = vadd.f32 %v1106, %v1394
        %v1396 = vpop.f32.mrb[0].mxu0
        %1397 = vmatprep.mubr.f32.mxu0 0.0
        %1398 = vmatmul.mubr.f32.gmra.mrb[0].mxu0 %v1236
        %v1399 = vpop.f32.mrb[0].mxu0
        %v1400 = vadd.f32 %v1111, %v1399
        %v1401 = vpop.f32.mrb[0].mxu0
        %1402 = vmatprep.mubr.f32.mxu0 0.0
        %1403 = vmatmul.mubr.f32.gmra.mrb[0].mxu0 %v1238
        %v1404 = vpop.f32.mrb[0].mxu0
        %v1405 = vadd.f32 %v1116, %v1404
        %v1406 = vpop.f32.mrb[0].mxu0
        %1407 = vmatprep.mubr.f32.mxu0 0.0
        %1408 = vmatmul.mubr.f32.gmra.mrb[0].mxu0 %v1240
        %v1409 = vpop.f32.mrb[0].mxu0
        %v1410 = vadd.f32 %v1121, %v1409
        %v1411 = vpop.f32.mrb[0].mxu0
        %1412 = vmatprep.mubr.f32.mxu0 0.0
        %1413 = vmatmul.mubr.f32.gmra.mrb[0].mxu0 %v1242
        %v1414 = vpop.f32.mrb[0].mxu0
        %v1415 = vadd.f32 %v1126, %v1414
        %v1416 = vpop.f32.mrb[0].mxu0
        %1417 = vmatprep.mubr.f32.mxu0 0.0
        %1418 = vmatmul.mubr.f32.gmra.mrb[0].mxu0 %v1244
        %v1419 = vpop.f32.mrb[0].mxu0
        %v1420 = vadd.f32 %v1131, %v1419
        %v1421 = vpop.f32.mrb[0].mxu0
        %1422 = vmatprep.mubr.f32.mxu0 0.0
        %1423 = vmatmul.mubr.f32.gmra.mrb[0].mxu0 %v1246
        %v1424 = vpop.f32.mrb[0].mxu0
        %v1425 = vadd.f32 %v1136, %v1424
        %v1426 = vpop.f32.mrb[0].mxu0
        %1427 = vmatprep.mubr.f32.mxu0 0.0
        %1428 = vmatmul.mubr.f32.gmra.mrb[0].mxu0 %v1248
        %v1429 = vpop.f32.mrb[0].mxu0
        %v1430 = vadd.f32 %v1141, %v1429
        %v1431 = vpop.f32.mrb[0].mxu0
        %1432 = vmatprep.mubr.f32.mxu0 0.0
        %1433 = vmatmul.mubr.f32.gmra.mrb[0].mxu0 %v1250
        %v1434 = vpop.f32.mrb[0].mxu0
        %v1435 = vadd.f32 %v1146, %v1434
        %v1436 = vpop.f32.mrb[0].mxu0
        %1437 = vmatprep.mubr.f32.mxu0 0.0
        %1438 = vmatmul.mubr.f32.gmra.mrb[0].mxu0 %v1252
        %v1439 = vpop.f32.mrb[0].mxu0
        %v1440 = vadd.f32 %v1151, %v1439
        %v1441 = vpop.f32.mrb[0].mxu0
        %1442 = vmatprep.mubr.f32.mxu0 0.0
        %1443 = vmatmul.mubr.f32.gmra.mrb[0].mxu0 %v1254
        %v1444 = vpop.f32.mrb[0].mxu0
        %v1445 = vadd.f32 %v1156, %v1444
        %v1446 = vpop.f32.mrb[0].mxu0
        %1447 = vmatprep.mubr.f32.mxu0 0.0
        %1448 = vmatmul.mubr.f32.gmra.mrb[0].mxu0 %v1256
        %v1449 = vpop.f32.mrb[0].mxu0
        %v1450 = vadd.f32 %v1161, %v1449
        %v1451 = vpop.f32.mrb[0].mxu0
        %1452 = vmatprep.mubr.f32.mxu0 0.0
        %1453 = vmatmul.mubr.f32.gmra.mrb[0].mxu0 %v1258
        %v1454 = vpop.f32.mrb[0].mxu0
        %v1455 = vadd.f32 %v1166, %v1454
        %v1456 = vpop.f32.mrb[0].mxu0
        %1457 = vmatprep.mubr.f32.mxu0 0.0
        %1458 = vmatmul.mubr.f32.gmra.mrb[0].mxu0 %v1260
        %v1459 = vpop.f32.mrb[0].mxu0
        %v1460 = vadd.f32 %v1171, %v1459
        %v1461 = vpop.f32.mrb[0].mxu0
        %1462 = vmatprep.mubr.f32.mxu0 0.0
        %1463 = vmatmul.mubr.f32.gmra.mrb[0].mxu0 %v1262
        %v1464 = vpop.f32.mrb[0].mxu0
        %v1465 = vadd.f32 %v1176, %v1464
        %v1466 = vpop.f32.mrb[0].mxu0
        %1467 = vmatprep.mubr.f32.mxu0 0.0
        %1468 = vmatmul.mubr.f32.gmra.mrb[0].mxu0 %v1264
        %v1469 = vpop.f32.mrb[0].mxu0
        %v1470 = vadd.f32 %v1181, %v1469
        %v1471 = vpop.f32.mrb[0].mxu0
        %1472 = vmatprep.mubr.f32.mxu0 0.0
        %1473 = vmatmul.mubr.f32.gmra.mrb[0].mxu0 %v1266
        %v1474 = vpop.f32.mrb[0].mxu0
        %v1475 = vadd.f32 %v1186, %v1474
        %v1476 = vpop.f32.mrb[0].mxu0
        %1477 = vmatprep.mubr.f32.mxu0 0.0
        %1478 = vmatmul.mubr.f32.gmra.mrb[0].mxu0 %v1268
        %v1479 = vpop.f32.mrb[0].mxu0
        %v1480 = vadd.f32 %v1191, %v1479
        %v1481 = vpop.f32.mrb[0].mxu0
        %1482 = vmatprep.mubr.f32.mxu0 0.0
        %1483 = vmatmul.mubr.f32.gmra.mrb[0].mxu0 %v1270
        %v1484 = vpop.f32.mrb[0].mxu0
        %v1485 = vadd.f32 %v1196, %v1484
        %v1486 = vpop.f32.mrb[0].mxu0
        %1487 = vmatprep.mubr.f32.mxu0 0.0
        %1488 = vmatmul.mubr.f32.gmra.mrb[0].mxu0 %v1272
        %v1489 = vpop.f32.mrb[0].mxu0
        %v1490 = vadd.f32 %v1201, %v1489
        %v1491 = vpop.f32.mrb[0].mxu0
        %1492 = vmatprep.mubr.f32.mxu0 0.0
        %1493 = vmatmul.mubr.f32.gmra.mrb[0].mxu0 %v1274
        %v1494 = vpop.f32.mrb[0].mxu0
        %v1495 = vadd.f32 %v1206, %v1494
        %v1496 = vpop.f32.mrb[0].mxu0
        %1497 = vmatprep.mubr.f32.mxu0 0.0
        %1498 = vmatmul.mubr.f32.gmra.mrb[0].mxu0 %v1276
        %v1499 = vpop.f32.mrb[0].mxu0
        %v1500 = vadd.f32 %v1211, %v1499
        %v1501 = vpop.f32.mrb[0].mxu0
        %1502 = vdwg.mxu0
        %vm1503 = vcmask 1045504
        %v1504 = vrot.slane %v726, 2
        %v1505 = vrot.slane %v727, 2
        %v1506 = vsel %vm1503, %v1504, %v1505
        %v1507 = vrot.slane %v728, 2
        %v1508 = vsel %vm1503, %v1505, %v1507
        %v1509 = vrot.slane %v729, 2
        %v1510 = vrot.slane %v730, 2
        %v1511 = vsel %vm1503, %v1509, %v1510
        %v1512 = vrot.slane %v731, 2
        %v1513 = vsel %vm1503, %v1510, %v1512
        %v1514 = vrot.slane %v732, 2
        %v1515 = vrot.slane %v733, 2
        %v1516 = vsel %vm1503, %v1514, %v1515
        %v1517 = vrot.slane %v734, 2
        %v1518 = vsel %vm1503, %v1515, %v1517
        %v1519 = vrot.slane %v735, 2
        %v1520 = vrot.slane %v736, 2
        %v1521 = vsel %vm1503, %v1519, %v1520
        %v1522 = vrot.slane %v737, 2
        %v1523 = vsel %vm1503, %v1520, %v1522
        %v1524 = vrot.slane %v738, 2
        %v1525 = vrot.slane %v739, 2
        %v1526 = vsel %vm1503, %v1524, %v1525
        %v1527 = vrot.slane %v740, 2
        %v1528 = vsel %vm1503, %v1525, %v1527
        %v1529 = vrot.slane %v741, 2
        %v1530 = vrot.slane %v742, 2
        %v1531 = vsel %vm1503, %v1529, %v1530
        %v1532 = vrot.slane %v743, 2
        %v1533 = vsel %vm1503, %v1530, %v1532
        %v1534 = vrot.slane %v744, 2
        %v1535 = vrot.slane %v745, 2
        %v1536 = vsel %vm1503, %v1534, %v1535
        %v1537 = vrot.slane %v746, 2
        %v1538 = vsel %vm1503, %v1535, %v1537
        %v1539 = vrot.slane %v747, 2
        %v1540 = vrot.slane %v748, 2
        %v1541 = vsel %vm1503, %v1539, %v1540
        %v1542 = vrot.slane %v749, 2
        %v1543 = vsel %vm1503, %v1540, %v1542
        %v1544 = vrot.slane %v750, 2
        %v1545 = vrot.slane %v751, 2
        %v1546 = vsel %vm1503, %v1544, %v1545
        %v1547 = vrot.slane %v752, 2
        %v1548 = vsel %vm1503, %v1545, %v1547
        %v1549 = vrot.slane %v753, 2
        %v1550 = vrot.slane %v754, 2
        %v1551 = vsel %vm1503, %v1549, %v1550
        %v1552 = vrot.slane %v755, 2
        %v1553 = vsel %vm1503, %v1550, %v1552
        %v1554 = vrot.slane %v756, 2
        %v1555 = vrot.slane %v757, 2
        %v1556 = vsel %vm1503, %v1554, %v1555
        %v1557 = vrot.slane %v758, 2
        %v1558 = vsel %vm1503, %v1555, %v1557
        %v1559 = vrot.slane %v759, 2
        %v1560 = vrot.slane %v760, 2
        %v1561 = vsel %vm1503, %v1559, %v1560
        %v1562 = vrot.slane %v761, 2
        %v1563 = vsel %vm1503, %v1560, %v1562
        %v1564 = vrot.slane %v762, 2
        %v1565 = vrot.slane %v763, 2
        %v1566 = vsel %vm1503, %v1564, %v1565
        %v1567 = vrot.slane %v764, 2
        %v1568 = vsel %vm1503, %v1565, %v1567
        %v1569 = vrot.slane %v765, 2
        %v1570 = vrot.slane %v766, 2
        %v1571 = vsel %vm1503, %v1569, %v1570
        %v1572 = vrot.slane %v767, 2
        %v1573 = vsel %vm1503, %v1570, %v1572
        %v1574 = vrot.slane %v768, 2
        %v1575 = vrot.slane %v769, 2
        %v1576 = vsel %vm1503, %v1574, %v1575
        %v1577 = vrot.slane %v770, 2
        %v1578 = vsel %vm1503, %v1575, %v1577
        %v1579 = vrot.slane %v771, 2
        %v1580 = vrot.slane %v772, 2
        %v1581 = vsel %vm1503, %v1579, %v1580
        %v1582 = vrot.slane %v773, 2
        %v1583 = vsel %vm1503, %v1580, %v1582
        %v1584 = vld [vmem:[%s3 + $0x80] sm:$0xff]
        %v1585 = vld [vmem:[%s3 + $0x88] sm:$0xff]
        %v1586 = vld [vmem:[%s3 + $0x90] sm:$0xff]
        %v1587 = vld [vmem:[%s3 + $0x98] sm:$0xff]
        %v1588 = vld [vmem:[%s3 + $0xa0] sm:$0xff]
        %v1589 = vld [vmem:[%s3 + $0xa8] sm:$0xff]
        %v1590 = vld [vmem:[%s3 + $0xb0] sm:$0xff]
        %v1591 = vld [vmem:[%s3 + $0xb8] sm:$0xff]
        %v1592 = vsel %vm637, %v1506, 0
        %v1594 = vsel %vm637, %v1508, 0
        %v1596 = vsel %vm637, %v1511, 0
        %v1598 = vsel %vm637, %v1513, 0
        %v1600 = vsel %vm637, %v1516, 0
        %v1602 = vsel %vm637, %v1518, 0
        %v1604 = vsel %vm637, %v1521, 0
        %v1606 = vsel %vm637, %v1523, 0
        %v1608 = vsel %vm637, %v1526, 0
        %v1610 = vsel %vm637, %v1528, 0
        %v1612 = vsel %vm637, %v1531, 0
        %v1614 = vsel %vm637, %v1533, 0
        %v1616 = vsel %vm637, %v1536, 0
        %v1618 = vsel %vm637, %v1538, 0
        %v1620 = vsel %vm637, %v1541, 0
        %v1622 = vsel %vm637, %v1543, 0
        %v1624 = vsel %vm637, %v1546, 0
        %v1626 = vsel %vm637, %v1548, 0
        %v1628 = vsel %vm637, %v1551, 0
        %v1630 = vsel %vm637, %v1553, 0
        %v1632 = vsel %vm637, %v1556, 0
        %v1634 = vsel %vm637, %v1558, 0
        %v1636 = vsel %vm637, %v1561, 0
        %v1638 = vsel %vm637, %v1563, 0
        %v1640 = vsel %vm637, %v1566, 0
        %v1642 = vsel %vm637, %v1568, 0
        %v1644 = vsel %vm637, %v1571, 0
        %v1646 = vsel %vm637, %v1573, 0
        %v1648 = vsel %vm637, %v1576, 0
        %v1650 = vsel %vm637, %v1578, 0
        %v1652 = vsel %vm637, %v1581, 0
        %v1654 = vsel %vm637, %v1583, 0
        %1656 = vmatprep.subr.mxu0 0.0
        %1657 = vmatpush1.msra.mxu0 %v1584
        %1658 = vmatprep.subr.mxu0 0.0
        %1659 = vmatpush1.msra.mxu0 %v1585
        %1660 = vmatprep.subr.mxu0 0.0
        %1661 = vmatpush1.msra.mxu0 %v1586
        %1662 = vmatprep.subr.mxu0 0.0
        %1663 = vmatpush1.msra.mxu0 %v1587
        %1664 = vmatprep.subr.mxu0 0.0
        %1665 = vmatpush1.msra.mxu0 %v1588
        %1666 = vmatprep.subr.mxu0 0.0
        %1667 = vmatpush1.msra.mxu0 %v1589
        %1668 = vmatprep.subr.mxu0 0.0
        %1669 = vmatpush1.msra.mxu0 %v1590
        %1670 = vmatprep.subr.mxu0 0.0
        %1671 = vmatpush1.msra.mxu0 %v1591
        %1672 = vmatprep.subr.mxu0 0.0
        %1673 = vmatpush1.msra.mxu0 0.0
        %1674 = vmatprep.subr.mxu0 0.0
        %1675 = vmatpush1.msra.mxu0 0.0
        %1676 = vmatprep.subr.mxu0 0.0
        %1677 = vmatpush1.msra.mxu0 0.0
        %1678 = vmatprep.subr.mxu0 0.0
        %1679 = vmatpush1.msra.mxu0 0.0
        %1680 = vmatprep.subr.mxu0 0.0
        %1681 = vmatpush1.msra.mxu0 0.0
        %1682 = vmatprep.subr.mxu0 0.0
        %1683 = vmatpush1.msra.mxu0 0.0
        %1684 = vmatprep.subr.mxu0 0.0
        %1685 = vmatpush1.msra.mxu0 0.0
        %1686 = vmatprep.subr.mxu0 0.0
        %1687 = vmatpush1.msra.mxu0 0.0
        %1688 = vmatprep.subr.mxu0 0.0
        %1689 = vmatpush1.msra.mxu0 0.0
        %1690 = vmatprep.subr.mxu0 0.0
        %1691 = vmatpush1.msra.mxu0 0.0
        %1692 = vmatprep.subr.mxu0 0.0
        %1693 = vmatpush1.msra.mxu0 0.0
        %1694 = vmatprep.subr.mxu0 0.0
        %1695 = vmatpush1.msra.mxu0 0.0
        %1696 = vmatprep.subr.mxu0 0.0
        %1697 = vmatpush1.msra.mxu0 0.0
        %1698 = vmatprep.subr.mxu0 0.0
        %1699 = vmatpush1.msra.mxu0 0.0
        %1700 = vmatprep.subr.mxu0 0.0
        %1701 = vmatpush1.msra.mxu0 0.0
        %1702 = vmatprep.subr.mxu0 0.0
        %1703 = vmatpush1.msra.mxu0 0.0
        %1704 = vmatprep.subr.mxu0 0.0
        %1705 = vmatpush1.msra.mxu0 0.0
        %1706 = vmatprep.subr.mxu0 0.0
        %1707 = vmatpush1.msra.mxu0 0.0
        %1708 = vmatprep.subr.mxu0 0.0
        %1709 = vmatpush1.msra.mxu0 0.0
        %1710 = vmatprep.subr.mxu0 0.0
        %1711 = vmatpush1.msra.mxu0 0.0
        %1712 = vmatprep.subr.mxu0 0.0
        %1713 = vmatpush1.msra.mxu0 0.0
        %1714 = vmatprep.subr.mxu0 0.0
        %1715 = vmatpush1.msra.mxu0 0.0
        %1716 = vmatprep.subr.mxu0 0.0
        %1717 = vmatpush1.msra.mxu0 0.0
        %1718 = vmatprep.subr.mxu0 0.0
        %1719 = vmatpush1.msra.mxu0 0.0
        %1720 = vmatprep.mubr.f32.mxu0 0.0
        %1721 = vmatmul.mubr.f32.gmra.mrb[0].mxu0 %v1592
        %v1722 = vpop.f32.mrb[0].mxu0
        %v1723 = vadd.f32 0.0, %v1722
        %v1724 = vpop.f32.mrb[0].mxu0
        %1725 = vmatprep.mubr.f32.mxu0 0.0
        %1726 = vmatmul.mubr.f32.gmra.mrb[0].mxu0 %v1594
        %v1727 = vpop.f32.mrb[0].mxu0
        %v1728 = vadd.f32 0.0, %v1727
        %v1729 = vpop.f32.mrb[0].mxu0
        %1730 = vmatprep.mubr.f32.mxu0 0.0
        %1731 = vmatmul.mubr.f32.gmra.mrb[0].mxu0 %v1596
        %v1732 = vpop.f32.mrb[0].mxu0
        %v1733 = vadd.f32 0.0, %v1732
        %v1734 = vpop.f32.mrb[0].mxu0
        %1735 = vmatprep.mubr.f32.mxu0 0.0
        %1736 = vmatmul.mubr.f32.gmra.mrb[0].mxu0 %v1598
        %v1737 = vpop.f32.mrb[0].mxu0
        %v1738 = vadd.f32 0.0, %v1737
        %v1739 = vpop.f32.mrb[0].mxu0
        %1740 = vmatprep.mubr.f32.mxu0 0.0
        %1741 = vmatmul.mubr.f32.gmra.mrb[0].mxu0 %v1600
        %v1742 = vpop.f32.mrb[0].mxu0
        %v1743 = vadd.f32 0.0, %v1742
        %v1744 = vpop.f32.mrb[0].mxu0
        %1745 = vmatprep.mubr.f32.mxu0 0.0
        %1746 = vmatmul.mubr.f32.gmra.mrb[0].mxu0 %v1602
        %v1747 = vpop.f32.mrb[0].mxu0
        %v1748 = vadd.f32 0.0, %v1747
        %v1749 = vpop.f32.mrb[0].mxu0
        %1750 = vmatprep.mubr.f32.mxu0 0.0
        %1751 = vmatmul.mubr.f32.gmra.mrb[0].mxu0 %v1604
        %v1752 = vpop.f32.mrb[0].mxu0
        %v1753 = vadd.f32 0.0, %v1752
        %v1754 = vpop.f32.mrb[0].mxu0
        %1755 = vmatprep.mubr.f32.mxu0 0.0
        %1756 = vmatmul.mubr.f32.gmra.mrb[0].mxu0 %v1606
        %v1757 = vpop.f32.mrb[0].mxu0
        %v1758 = vadd.f32 0.0, %v1757
        %v1759 = vpop.f32.mrb[0].mxu0
        %1760 = vmatprep.mubr.f32.mxu0 0.0
        %1761 = vmatmul.mubr.f32.gmra.mrb[0].mxu0 %v1608
        %v1762 = vpop.f32.mrb[0].mxu0
        %v1763 = vadd.f32 0.0, %v1762
        %v1764 = vpop.f32.mrb[0].mxu0
        %1765 = vmatprep.mubr.f32.mxu0 0.0
        %1766 = vmatmul.mubr.f32.gmra.mrb[0].mxu0 %v1610
        %v1767 = vpop.f32.mrb[0].mxu0
        %v1768 = vadd.f32 0.0, %v1767
        %v1769 = vpop.f32.mrb[0].mxu0
        %1770 = vmatprep.mubr.f32.mxu0 0.0
        %1771 = vmatmul.mubr.f32.gmra.mrb[0].mxu0 %v1612
        %v1772 = vpop.f32.mrb[0].mxu0
        %v1773 = vadd.f32 0.0, %v1772
        %v1774 = vpop.f32.mrb[0].mxu0
        %1775 = vmatprep.mubr.f32.mxu0 0.0
        %1776 = vmatmul.mubr.f32.gmra.mrb[0].mxu0 %v1614
        %v1777 = vpop.f32.mrb[0].mxu0
        %v1778 = vadd.f32 0.0, %v1777
        %v1779 = vpop.f32.mrb[0].mxu0
        %1780 = vmatprep.mubr.f32.mxu0 0.0
        %1781 = vmatmul.mubr.f32.gmra.mrb[0].mxu0 %v1616
        %v1782 = vpop.f32.mrb[0].mxu0
        %v1783 = vadd.f32 0.0, %v1782
        %v1784 = vpop.f32.mrb[0].mxu0
        %1785 = vmatprep.mubr.f32.mxu0 0.0
        %1786 = vmatmul.mubr.f32.gmra.mrb[0].mxu0 %v1618
        %v1787 = vpop.f32.mrb[0].mxu0
        %v1788 = vadd.f32 0.0, %v1787
        %v1789 = vpop.f32.mrb[0].mxu0
        %1790 = vmatprep.mubr.f32.mxu0 0.0
        %1791 = vmatmul.mubr.f32.gmra.mrb[0].mxu0 %v1620
        %v1792 = vpop.f32.mrb[0].mxu0
        %v1793 = vadd.f32 0.0, %v1792
        %v1794 = vpop.f32.mrb[0].mxu0
        %1795 = vmatprep.mubr.f32.mxu0 0.0
        %1796 = vmatmul.mubr.f32.gmra.mrb[0].mxu0 %v1622
        %v1797 = vpop.f32.mrb[0].mxu0
        %v1798 = vadd.f32 0.0, %v1797
        %v1799 = vpop.f32.mrb[0].mxu0
        %1800 = vmatprep.mubr.f32.mxu0 0.0
        %1801 = vmatmul.mubr.f32.gmra.mrb[0].mxu0 %v1624
        %v1802 = vpop.f32.mrb[0].mxu0
        %v1803 = vadd.f32 0.0, %v1802
        %v1804 = vpop.f32.mrb[0].mxu0
        %1805 = vmatprep.mubr.f32.mxu0 0.0
        %1806 = vmatmul.mubr.f32.gmra.mrb[0].mxu0 %v1626
        %v1807 = vpop.f32.mrb[0].mxu0
        %v1808 = vadd.f32 0.0, %v1807
        %v1809 = vpop.f32.mrb[0].mxu0
        %1810 = vmatprep.mubr.f32.mxu0 0.0
        %1811 = vmatmul.mubr.f32.gmra.mrb[0].mxu0 %v1628
        %v1812 = vpop.f32.mrb[0].mxu0
        %v1813 = vadd.f32 0.0, %v1812
        %v1814 = vpop.f32.mrb[0].mxu0
        %1815 = vmatprep.mubr.f32.mxu0 0.0
        %1816 = vmatmul.mubr.f32.gmra.mrb[0].mxu0 %v1630
        %v1817 = vpop.f32.mrb[0].mxu0
        %v1818 = vadd.f32 0.0, %v1817
        %v1819 = vpop.f32.mrb[0].mxu0
        %1820 = vmatprep.mubr.f32.mxu0 0.0
        %1821 = vmatmul.mubr.f32.gmra.mrb[0].mxu0 %v1632
        %v1822 = vpop.f32.mrb[0].mxu0
        %v1823 = vadd.f32 0.0, %v1822
        %v1824 = vpop.f32.mrb[0].mxu0
        %1825 = vmatprep.mubr.f32.mxu0 0.0
        %1826 = vmatmul.mubr.f32.gmra.mrb[0].mxu0 %v1634
        %v1827 = vpop.f32.mrb[0].mxu0
        %v1828 = vadd.f32 0.0, %v1827
        %v1829 = vpop.f32.mrb[0].mxu0
        %1830 = vmatprep.mubr.f32.mxu0 0.0
        %1831 = vmatmul.mubr.f32.gmra.mrb[0].mxu0 %v1636
        %v1832 = vpop.f32.mrb[0].mxu0
        %v1833 = vadd.f32 0.0, %v1832
        %v1834 = vpop.f32.mrb[0].mxu0
        %1835 = vmatprep.mubr.f32.mxu0 0.0
        %1836 = vmatmul.mubr.f32.gmra.mrb[0].mxu0 %v1638
        %v1837 = vpop.f32.mrb[0].mxu0
        %v1838 = vadd.f32 0.0, %v1837
        %v1839 = vpop.f32.mrb[0].mxu0
        %1840 = vmatprep.mubr.f32.mxu0 0.0
        %1841 = vmatmul.mubr.f32.gmra.mrb[0].mxu0 %v1640
        %v1842 = vpop.f32.mrb[0].mxu0
        %v1843 = vadd.f32 0.0, %v1842
        %v1844 = vpop.f32.mrb[0].mxu0
        %1845 = vmatprep.mubr.f32.mxu0 0.0
        %1846 = vmatmul.mubr.f32.gmra.mrb[0].mxu0 %v1642
        %v1847 = vpop.f32.mrb[0].mxu0
        %v1848 = vadd.f32 0.0, %v1847
        %v1849 = vpop.f32.mrb[0].mxu0
        %1850 = vmatprep.mubr.f32.mxu0 0.0
        %1851 = vmatmul.mubr.f32.gmra.mrb[0].mxu0 %v1644
        %v1852 = vpop.f32.mrb[0].mxu0
        %v1853 = vadd.f32 0.0, %v1852
        %v1854 = vpop.f32.mrb[0].mxu0
        %1855 = vmatprep.mubr.f32.mxu0 0.0
        %1856 = vmatmul.mubr.f32.gmra.mrb[0].mxu0 %v1646
        %v1857 = vpop.f32.mrb[0].mxu0
        %v1858 = vadd.f32 0.0, %v1857
        %v1859 = vpop.f32.mrb[0].mxu0
        %1860 = vmatprep.mubr.f32.mxu0 0.0
        %1861 = vmatmul.mubr.f32.gmra.mrb[0].mxu0 %v1648
        %v1862 = vpop.f32.mrb[0].mxu0
        %v1863 = vadd.f32 0.0, %v1862
        %v1864 = vpop.f32.mrb[0].mxu0
        %1865 = vmatprep.mubr.f32.mxu0 0.0
        %1866 = vmatmul.mubr.f32.gmra.mrb[0].mxu0 %v1650
        %v1867 = vpop.f32.mrb[0].mxu0
        %v1868 = vadd.f32 0.0, %v1867
        %v1869 = vpop.f32.mrb[0].mxu0
        %1870 = vmatprep.mubr.f32.mxu0 0.0
        %1871 = vmatmul.mubr.f32.gmra.mrb[0].mxu0 %v1652
        %v1872 = vpop.f32.mrb[0].mxu0
        %v1873 = vadd.f32 0.0, %v1872
        %v1874 = vpop.f32.mrb[0].mxu0
        %1875 = vmatprep.mubr.f32.mxu0 0.0
        %1876 = vmatmul.mubr.f32.gmra.mrb[0].mxu0 %v1654
        %v1877 = vpop.f32.mrb[0].mxu0
        %v1878 = vadd.f32 0.0, %v1877
        %v1879 = vpop.f32.mrb[0].mxu0
        %1880 = vdwg.mxu0
        %v1881 = vadd.f32 %v1345, %v1723
        %v1882 = vadd.f32 %v1350, %v1728
        %v1883 = vadd.f32 %v1355, %v1733
        %v1884 = vadd.f32 %v1360, %v1738
        %v1885 = vadd.f32 %v1365, %v1743
        %v1886 = vadd.f32 %v1370, %v1748
        %v1887 = vadd.f32 %v1375, %v1753
        %v1888 = vadd.f32 %v1380, %v1758
        %v1889 = vadd.f32 %v1385, %v1763
        %v1890 = vadd.f32 %v1390, %v1768
        %v1891 = vadd.f32 %v1395, %v1773
        %v1892 = vadd.f32 %v1400, %v1778
        %v1893 = vadd.f32 %v1405, %v1783
        %v1894 = vadd.f32 %v1410, %v1788
        %v1895 = vadd.f32 %v1415, %v1793
        %v1896 = vadd.f32 %v1420, %v1798
        %v1897 = vadd.f32 %v1425, %v1803
        %v1898 = vadd.f32 %v1430, %v1808
        %v1899 = vadd.f32 %v1435, %v1813
        %v1900 = vadd.f32 %v1440, %v1818
        %v1901 = vadd.f32 %v1445, %v1823
        %v1902 = vadd.f32 %v1450, %v1828
        %v1903 = vadd.f32 %v1455, %v1833
        %v1904 = vadd.f32 %v1460, %v1838
        %v1905 = vadd.f32 %v1465, %v1843
        %v1906 = vadd.f32 %v1470, %v1848
        %v1907 = vadd.f32 %v1475, %v1853
        %v1908 = vadd.f32 %v1480, %v1858
        %v1909 = vadd.f32 %v1485, %v1863
        %v1910 = vadd.f32 %v1490, %v1868
        %v1911 = vadd.f32 %v1495, %v1873
        %v1912 = vadd.f32 %v1500, %v1878
        %v1913 = vld [vmem:[%s3 + $0xc0] sm:$0xff]
        %v1914 = vld [vmem:[%s3 + $0xc8] sm:$0xff]
        %v1915 = vld [vmem:[%s3 + $0xd0] sm:$0xff]
        %v1916 = vld [vmem:[%s3 + $0xd8] sm:$0xff]
        %v1917 = vld [vmem:[%s3 + $0xe0] sm:$0xff]
        %v1918 = vld [vmem:[%s3 + $0xe8] sm:$0xff]
        %v1919 = vld [vmem:[%s3 + $0xf0] sm:$0xff]
        %v1920 = vld [vmem:[%s3 + $0xf8] sm:$0xff]
        %v1922 = vsel %vm637, %v774, 0
        %v1925 = vsel %vm637, %v775, 0
        %1927 = vmatprep.subr.mxu0 0.0
        %1928 = vmatpush1.msra.mxu0 %v1913
        %1929 = vmatprep.subr.mxu0 0.0
        %1930 = vmatpush1.msra.mxu0 %v1914
        %1931 = vmatprep.subr.mxu0 0.0
        %1932 = vmatpush1.msra.mxu0 %v1915
        %1933 = vmatprep.subr.mxu0 0.0
        %1934 = vmatpush1.msra.mxu0 %v1916
        %1935 = vmatprep.subr.mxu0 0.0
        %1936 = vmatpush1.msra.mxu0 %v1917
        %1937 = vmatprep.subr.mxu0 0.0
        %1938 = vmatpush1.msra.mxu0 %v1918
        %1939 = vmatprep.subr.mxu0 0.0
        %1940 = vmatpush1.msra.mxu0 %v1919
        %1941 = vmatprep.subr.mxu0 0.0
        %1942 = vmatpush1.msra.mxu0 %v1920
        %1943 = vmatprep.subr.mxu0 0.0
        %1944 = vmatpush1.msra.mxu0 0.0
        %1945 = vmatprep.subr.mxu0 0.0
        %1946 = vmatpush1.msra.mxu0 0.0
        %1947 = vmatprep.subr.mxu0 0.0
        %1948 = vmatpush1.msra.mxu0 0.0
        %1949 = vmatprep.subr.mxu0 0.0
        %1950 = vmatpush1.msra.mxu0 0.0
        %1951 = vmatprep.subr.mxu0 0.0
        %1952 = vmatpush1.msra.mxu0 0.0
        %1953 = vmatprep.subr.mxu0 0.0
        %1954 = vmatpush1.msra.mxu0 0.0
        %1955 = vmatprep.subr.mxu0 0.0
        %1956 = vmatpush1.msra.mxu0 0.0
        %1957 = vmatprep.subr.mxu0 0.0
        %1958 = vmatpush1.msra.mxu0 0.0
        %1959 = vmatprep.subr.mxu0 0.0
        %1960 = vmatpush1.msra.mxu0 0.0
        %1961 = vmatprep.subr.mxu0 0.0
        %1962 = vmatpush1.msra.mxu0 0.0
        %1963 = vmatprep.subr.mxu0 0.0
        %1964 = vmatpush1.msra.mxu0 0.0
        %1965 = vmatprep.subr.mxu0 0.0
        %1966 = vmatpush1.msra.mxu0 0.0
        %1967 = vmatprep.subr.mxu0 0.0
        %1968 = vmatpush1.msra.mxu0 0.0
        %1969 = vmatprep.subr.mxu0 0.0
        %1970 = vmatpush1.msra.mxu0 0.0
        %1971 = vmatprep.subr.mxu0 0.0
        %1972 = vmatpush1.msra.mxu0 0.0
        %1973 = vmatprep.subr.mxu0 0.0
        %1974 = vmatpush1.msra.mxu0 0.0
        %1975 = vmatprep.subr.mxu0 0.0
        %1976 = vmatpush1.msra.mxu0 0.0
        %1977 = vmatprep.subr.mxu0 0.0
        %1978 = vmatpush1.msra.mxu0 0.0
        %1979 = vmatprep.subr.mxu0 0.0
        %1980 = vmatpush1.msra.mxu0 0.0
        %1981 = vmatprep.subr.mxu0 0.0
        %1982 = vmatpush1.msra.mxu0 0.0
        %1983 = vmatprep.subr.mxu0 0.0
        %1984 = vmatpush1.msra.mxu0 0.0
        %1985 = vmatprep.subr.mxu0 0.0
        %1986 = vmatpush1.msra.mxu0 0.0
        %1987 = vmatprep.subr.mxu0 0.0
        %1988 = vmatpush1.msra.mxu0 0.0
        %1989 = vmatprep.subr.mxu0 0.0
        %1990 = vmatpush1.msra.mxu0 0.0
        %1991 = vmatprep.mubr.f32.mxu0 0.0
        %1992 = vmatmul.mubr.f32.gmra.mrb[0].mxu0 %v1218
        %v1993 = vpop.f32.mrb[0].mxu0
        %v1994 = vadd.f32 0.0, %v1993
        %v1995 = vpop.f32.mrb[0].mxu0
        %1996 = vmatprep.mubr.f32.mxu0 0.0
        %1997 = vmatmul.mubr.f32.gmra.mrb[0].mxu0 %v1220
        %v1998 = vpop.f32.mrb[0].mxu0
        %v1999 = vadd.f32 0.0, %v1998
        %v2000 = vpop.f32.mrb[0].mxu0
        %2001 = vmatprep.mubr.f32.mxu0 0.0
        %2002 = vmatmul.mubr.f32.gmra.mrb[0].mxu0 %v1222
        %v2003 = vpop.f32.mrb[0].mxu0
        %v2004 = vadd.f32 0.0, %v2003
        %v2005 = vpop.f32.mrb[0].mxu0
        %2006 = vmatprep.mubr.f32.mxu0 0.0
        %2007 = vmatmul.mubr.f32.gmra.mrb[0].mxu0 %v1224
        %v2008 = vpop.f32.mrb[0].mxu0
        %v2009 = vadd.f32 0.0, %v2008
        %v2010 = vpop.f32.mrb[0].mxu0
        %2011 = vmatprep.mubr.f32.mxu0 0.0
        %2012 = vmatmul.mubr.f32.gmra.mrb[0].mxu0 %v1226
        %v2013 = vpop.f32.mrb[0].mxu0
        %v2014 = vadd.f32 0.0, %v2013
        %v2015 = vpop.f32.mrb[0].mxu0
        %2016 = vmatprep.mubr.f32.mxu0 0.0
        %2017 = vmatmul.mubr.f32.gmra.mrb[0].mxu0 %v1228
        %v2018 = vpop.f32.mrb[0].mxu0
        %v2019 = vadd.f32 0.0, %v2018
        %v2020 = vpop.f32.mrb[0].mxu0
        %2021 = vmatprep.mubr.f32.mxu0 0.0
        %2022 = vmatmul.mubr.f32.gmra.mrb[0].mxu0 %v1230
        %v2023 = vpop.f32.mrb[0].mxu0
        %v2024 = vadd.f32 0.0, %v2023
        %v2025 = vpop.f32.mrb[0].mxu0
        %2026 = vmatprep.mubr.f32.mxu0 0.0
        %2027 = vmatmul.mubr.f32.gmra.mrb[0].mxu0 %v1232
        %v2028 = vpop.f32.mrb[0].mxu0
        %v2029 = vadd.f32 0.0, %v2028
        %v2030 = vpop.f32.mrb[0].mxu0
        %2031 = vmatprep.mubr.f32.mxu0 0.0
        %2032 = vmatmul.mubr.f32.gmra.mrb[0].mxu0 %v1234
        %v2033 = vpop.f32.mrb[0].mxu0
        %v2034 = vadd.f32 0.0, %v2033
        %v2035 = vpop.f32.mrb[0].mxu0
        %2036 = vmatprep.mubr.f32.mxu0 0.0
        %2037 = vmatmul.mubr.f32.gmra.mrb[0].mxu0 %v1236
        %v2038 = vpop.f32.mrb[0].mxu0
        %v2039 = vadd.f32 0.0, %v2038
        %v2040 = vpop.f32.mrb[0].mxu0
        %2041 = vmatprep.mubr.f32.mxu0 0.0
        %2042 = vmatmul.mubr.f32.gmra.mrb[0].mxu0 %v1238
        %v2043 = vpop.f32.mrb[0].mxu0
        %v2044 = vadd.f32 0.0, %v2043
        %v2045 = vpop.f32.mrb[0].mxu0
        %2046 = vmatprep.mubr.f32.mxu0 0.0
        %2047 = vmatmul.mubr.f32.gmra.mrb[0].mxu0 %v1240
        %v2048 = vpop.f32.mrb[0].mxu0
        %v2049 = vadd.f32 0.0, %v2048
        %v2050 = vpop.f32.mrb[0].mxu0
        %2051 = vmatprep.mubr.f32.mxu0 0.0
        %2052 = vmatmul.mubr.f32.gmra.mrb[0].mxu0 %v1242
        %v2053 = vpop.f32.mrb[0].mxu0
        %v2054 = vadd.f32 0.0, %v2053
        %v2055 = vpop.f32.mrb[0].mxu0
        %2056 = vmatprep.mubr.f32.mxu0 0.0
        %2057 = vmatmul.mubr.f32.gmra.mrb[0].mxu0 %v1244
        %v2058 = vpop.f32.mrb[0].mxu0
        %v2059 = vadd.f32 0.0, %v2058
        %v2060 = vpop.f32.mrb[0].mxu0
        %2061 = vmatprep.mubr.f32.mxu0 0.0
        %2062 = vmatmul.mubr.f32.gmra.mrb[0].mxu0 %v1246
        %v2063 = vpop.f32.mrb[0].mxu0
        %v2064 = vadd.f32 0.0, %v2063
        %v2065 = vpop.f32.mrb[0].mxu0
        %2066 = vmatprep.mubr.f32.mxu0 0.0
        %2067 = vmatmul.mubr.f32.gmra.mrb[0].mxu0 %v1248
        %v2068 = vpop.f32.mrb[0].mxu0
        %v2069 = vadd.f32 0.0, %v2068
        %v2070 = vpop.f32.mrb[0].mxu0
        %2071 = vmatprep.mubr.f32.mxu0 0.0
        %2072 = vmatmul.mubr.f32.gmra.mrb[0].mxu0 %v1250
        %v2073 = vpop.f32.mrb[0].mxu0
        %v2074 = vadd.f32 0.0, %v2073
        %v2075 = vpop.f32.mrb[0].mxu0
        %2076 = vmatprep.mubr.f32.mxu0 0.0
        %2077 = vmatmul.mubr.f32.gmra.mrb[0].mxu0 %v1252
        %v2078 = vpop.f32.mrb[0].mxu0
        %v2079 = vadd.f32 0.0, %v2078
        %v2080 = vpop.f32.mrb[0].mxu0
        %2081 = vmatprep.mubr.f32.mxu0 0.0
        %2082 = vmatmul.mubr.f32.gmra.mrb[0].mxu0 %v1254
        %v2083 = vpop.f32.mrb[0].mxu0
        %v2084 = vadd.f32 0.0, %v2083
        %v2085 = vpop.f32.mrb[0].mxu0
        %2086 = vmatprep.mubr.f32.mxu0 0.0
        %2087 = vmatmul.mubr.f32.gmra.mrb[0].mxu0 %v1256
        %v2088 = vpop.f32.mrb[0].mxu0
        %v2089 = vadd.f32 0.0, %v2088
        %v2090 = vpop.f32.mrb[0].mxu0
        %2091 = vmatprep.mubr.f32.mxu0 0.0
        %2092 = vmatmul.mubr.f32.gmra.mrb[0].mxu0 %v1258
        %v2093 = vpop.f32.mrb[0].mxu0
        %v2094 = vadd.f32 0.0, %v2093
        %v2095 = vpop.f32.mrb[0].mxu0
        %2096 = vmatprep.mubr.f32.mxu0 0.0
        %2097 = vmatmul.mubr.f32.gmra.mrb[0].mxu0 %v1260
        %v2098 = vpop.f32.mrb[0].mxu0
        %v2099 = vadd.f32 0.0, %v2098
        %v2100 = vpop.f32.mrb[0].mxu0
        %2101 = vmatprep.mubr.f32.mxu0 0.0
        %2102 = vmatmul.mubr.f32.gmra.mrb[0].mxu0 %v1262
        %v2103 = vpop.f32.mrb[0].mxu0
        %v2104 = vadd.f32 0.0, %v2103
        %v2105 = vpop.f32.mrb[0].mxu0
        %2106 = vmatprep.mubr.f32.mxu0 0.0
        %2107 = vmatmul.mubr.f32.gmra.mrb[0].mxu0 %v1264
        %v2108 = vpop.f32.mrb[0].mxu0
        %v2109 = vadd.f32 0.0, %v2108
        %v2110 = vpop.f32.mrb[0].mxu0
        %2111 = vmatprep.mubr.f32.mxu0 0.0
        %2112 = vmatmul.mubr.f32.gmra.mrb[0].mxu0 %v1266
        %v2113 = vpop.f32.mrb[0].mxu0
        %v2114 = vadd.f32 0.0, %v2113
        %v2115 = vpop.f32.mrb[0].mxu0
        %2116 = vmatprep.mubr.f32.mxu0 0.0
        %2117 = vmatmul.mubr.f32.gmra.mrb[0].mxu0 %v1268
        %v2118 = vpop.f32.mrb[0].mxu0
        %v2119 = vadd.f32 0.0, %v2118
        %v2120 = vpop.f32.mrb[0].mxu0
        %2121 = vmatprep.mubr.f32.mxu0 0.0
        %2122 = vmatmul.mubr.f32.gmra.mrb[0].mxu0 %v1270
        %v2123 = vpop.f32.mrb[0].mxu0
        %v2124 = vadd.f32 0.0, %v2123
        %v2125 = vpop.f32.mrb[0].mxu0
        %2126 = vmatprep.mubr.f32.mxu0 0.0
        %2127 = vmatmul.mubr.f32.gmra.mrb[0].mxu0 %v1272
        %v2128 = vpop.f32.mrb[0].mxu0
        %v2129 = vadd.f32 0.0, %v2128
        %v2130 = vpop.f32.mrb[0].mxu0
        %2131 = vmatprep.mubr.f32.mxu0 0.0
        %2132 = vmatmul.mubr.f32.gmra.mrb[0].mxu0 %v1274
        %v2133 = vpop.f32.mrb[0].mxu0
        %v2134 = vadd.f32 0.0, %v2133
        %v2135 = vpop.f32.mrb[0].mxu0
        %2136 = vmatprep.mubr.f32.mxu0 0.0
        %2137 = vmatmul.mubr.f32.gmra.mrb[0].mxu0 %v1276
        %v2138 = vpop.f32.mrb[0].mxu0
        %v2139 = vadd.f32 0.0, %v2138
        %v2140 = vpop.f32.mrb[0].mxu0
        %2141 = vmatprep.mubr.f32.mxu0 0.0
        %2142 = vmatmul.mubr.f32.gmra.mrb[0].mxu0 %v1922
        %v2143 = vpop.f32.mrb[0].mxu0
        %v2144 = vadd.f32 0.0, %v2143
        %v2145 = vpop.f32.mrb[0].mxu0
        %2146 = vmatprep.mubr.f32.mxu0 0.0
        %2147 = vmatmul.mubr.f32.gmra.mrb[0].mxu0 %v1925
        %v2148 = vpop.f32.mrb[0].mxu0
        %v2149 = vadd.f32 0.0, %v2148
        %v2150 = vpop.f32.mrb[0].mxu0
        %2151 = vdwg.mxu0
        %v2152 = vadd.f32 %v1881, %v1994
        %v2153 = vadd.f32 %v1882, %v1999
        %v2154 = vadd.f32 %v1883, %v2004
        %v2155 = vadd.f32 %v1884, %v2009
        %v2156 = vadd.f32 %v1885, %v2014
        %v2157 = vadd.f32 %v1886, %v2019
        %v2158 = vadd.f32 %v1887, %v2024
        %v2159 = vadd.f32 %v1888, %v2029
        %v2160 = vadd.f32 %v1889, %v2034
        %v2161 = vadd.f32 %v1890, %v2039
        %v2162 = vadd.f32 %v1891, %v2044
        %v2163 = vadd.f32 %v1892, %v2049
        %v2164 = vadd.f32 %v1893, %v2054
        %v2165 = vadd.f32 %v1894, %v2059
        %v2166 = vadd.f32 %v1895, %v2064
        %v2167 = vadd.f32 %v1896, %v2069
        %v2168 = vadd.f32 %v1897, %v2074
        %v2169 = vadd.f32 %v1898, %v2079
        %v2170 = vadd.f32 %v1899, %v2084
        %v2171 = vadd.f32 %v1900, %v2089
        %v2172 = vadd.f32 %v1901, %v2094
        %v2173 = vadd.f32 %v1902, %v2099
        %v2174 = vadd.f32 %v1903, %v2104
        %v2175 = vadd.f32 %v1904, %v2109
        %v2176 = vadd.f32 %v1905, %v2114
        %v2177 = vadd.f32 %v1906, %v2119
        %v2178 = vadd.f32 %v1907, %v2124
        %v2179 = vadd.f32 %v1908, %v2129
        %v2180 = vadd.f32 %v1909, %v2134
        %v2181 = vadd.f32 %v1910, %v2139
        %v2182 = vadd.f32 %v1911, %v2144
        %v2183 = vadd.f32 %v1912, %v2149
        %v2185 = vrot.slane %v774, 1
        %v2186 = vrot.slane %v775, 1
        %v2187 = vsel %vm836, %v2185, %v2186
        %v2188 = vrot.slane %v776, 1
        %v2189 = vsel %vm836, %v2186, %v2188
        %v2190 = vld [vmem:[%s3 + $0x100] sm:$0xff]
        %v2191 = vld [vmem:[%s3 + $0x108] sm:$0xff]
        %v2192 = vld [vmem:[%s3 + $0x110] sm:$0xff]
        %v2193 = vld [vmem:[%s3 + $0x118] sm:$0xff]
        %v2194 = vld [vmem:[%s3 + $0x120] sm:$0xff]
        %v2195 = vld [vmem:[%s3 + $0x128] sm:$0xff]
        %v2196 = vld [vmem:[%s3 + $0x130] sm:$0xff]
        %v2197 = vld [vmem:[%s3 + $0x138] sm:$0xff]
        %v2198 = vsel %vm637, %v2187, 0
        %v2200 = vsel %vm637, %v2189, 0
        %2202 = vmatprep.subr.mxu0 0.0
        %2203 = vmatpush1.msra.mxu0 %v2190
        %2204 = vmatprep.subr.mxu0 0.0
        %2205 = vmatpush1.msra.mxu0 %v2191
        %2206 = vmatprep.subr.mxu0 0.0
        %2207 = vmatpush1.msra.mxu0 %v2192
        %2208 = vmatprep.subr.mxu0 0.0
        %2209 = vmatpush1.msra.mxu0 %v2193
        %2210 = vmatprep.subr.mxu0 0.0
        %2211 = vmatpush1.msra.mxu0 %v2194
        %2212 = vmatprep.subr.mxu0 0.0
        %2213 = vmatpush1.msra.mxu0 %v2195
        %2214 = vmatprep.subr.mxu0 0.0
        %2215 = vmatpush1.msra.mxu0 %v2196
        %2216 = vmatprep.subr.mxu0 0.0
        %2217 = vmatpush1.msra.mxu0 %v2197
        %2218 = vmatprep.subr.mxu0 0.0
        %2219 = vmatpush1.msra.mxu0 0.0
        %2220 = vmatprep.subr.mxu0 0.0
        %2221 = vmatpush1.msra.mxu0 0.0
        %2222 = vmatprep.subr.mxu0 0.0
        %2223 = vmatpush1.msra.mxu0 0.0
        %2224 = vmatprep.subr.mxu0 0.0
        %2225 = vmatpush1.msra.mxu0 0.0
        %2226 = vmatprep.subr.mxu0 0.0
        %2227 = vmatpush1.msra.mxu0 0.0
        %2228 = vmatprep.subr.mxu0 0.0
        %2229 = vmatpush1.msra.mxu0 0.0
        %2230 = vmatprep.subr.mxu0 0.0
        %2231 = vmatpush1.msra.mxu0 0.0
        %2232 = vmatprep.subr.mxu0 0.0
        %2233 = vmatpush1.msra.mxu0 0.0
        %2234 = vmatprep.subr.mxu0 0.0
        %2235 = vmatpush1.msra.mxu0 0.0
        %2236 = vmatprep.subr.mxu0 0.0
        %2237 = vmatpush1.msra.mxu0 0.0
        %2238 = vmatprep.subr.mxu0 0.0
        %2239 = vmatpush1.msra.mxu0 0.0
        %2240 = vmatprep.subr.mxu0 0.0
        %2241 = vmatpush1.msra.mxu0 0.0
        %2242 = vmatprep.subr.mxu0 0.0
        %2243 = vmatpush1.msra.mxu0 0.0
        %2244 = vmatprep.subr.mxu0 0.0
        %2245 = vmatpush1.msra.mxu0 0.0
        %2246 = vmatprep.subr.mxu0 0.0
        %2247 = vmatpush1.msra.mxu0 0.0
        %2248 = vmatprep.subr.mxu0 0.0
        %2249 = vmatpush1.msra.mxu0 0.0
        %2250 = vmatprep.subr.mxu0 0.0
        %2251 = vmatpush1.msra.mxu0 0.0
        %2252 = vmatprep.subr.mxu0 0.0
        %2253 = vmatpush1.msra.mxu0 0.0
        %2254 = vmatprep.subr.mxu0 0.0
        %2255 = vmatpush1.msra.mxu0 0.0
        %2256 = vmatprep.subr.mxu0 0.0
        %2257 = vmatpush1.msra.mxu0 0.0
        %2258 = vmatprep.subr.mxu0 0.0
        %2259 = vmatpush1.msra.mxu0 0.0
        %2260 = vmatprep.subr.mxu0 0.0
        %2261 = vmatpush1.msra.mxu0 0.0
        %2262 = vmatprep.subr.mxu0 0.0
        %2263 = vmatpush1.msra.mxu0 0.0
        %2264 = vmatprep.subr.mxu0 0.0
        %2265 = vmatpush1.msra.mxu0 0.0
        %2266 = vmatprep.mubr.f32.mxu0 0.0
        %2267 = vmatmul.mubr.f32.gmra.mrb[0].mxu0 %v929
        %v2268 = vpop.f32.mrb[0].mxu0
        %v2269 = vadd.f32 0.0, %v2268
        %v2270 = vpop.f32.mrb[0].mxu0
        %2271 = vmatprep.mubr.f32.mxu0 0.0
        %2272 = vmatmul.mubr.f32.gmra.mrb[0].mxu0 %v931
        %v2273 = vpop.f32.mrb[0].mxu0
        %v2274 = vadd.f32 0.0, %v2273
        %v2275 = vpop.f32.mrb[0].mxu0
        %2276 = vmatprep.mubr.f32.mxu0 0.0
        %2277 = vmatmul.mubr.f32.gmra.mrb[0].mxu0 %v933
        %v2278 = vpop.f32.mrb[0].mxu0
        %v2279 = vadd.f32 0.0, %v2278
        %v2280 = vpop.f32.mrb[0].mxu0
        %2281 = vmatprep.mubr.f32.mxu0 0.0
        %2282 = vmatmul.mubr.f32.gmra.mrb[0].mxu0 %v935
        %v2283 = vpop.f32.mrb[0].mxu0
        %v2284 = vadd.f32 0.0, %v2283
        %v2285 = vpop.f32.mrb[0].mxu0
        %2286 = vmatprep.mubr.f32.mxu0 0.0
        %2287 = vmatmul.mubr.f32.gmra.mrb[0].mxu0 %v937
        %v2288 = vpop.f32.mrb[0].mxu0
        %v2289 = vadd.f32 0.0, %v2288
        %v2290 = vpop.f32.mrb[0].mxu0
        %2291 = vmatprep.mubr.f32.mxu0 0.0
        %2292 = vmatmul.mubr.f32.gmra.mrb[0].mxu0 %v939
        %v2293 = vpop.f32.mrb[0].mxu0
        %v2294 = vadd.f32 0.0, %v2293
        %v2295 = vpop.f32.mrb[0].mxu0
        %2296 = vmatprep.mubr.f32.mxu0 0.0
        %2297 = vmatmul.mubr.f32.gmra.mrb[0].mxu0 %v941
        %v2298 = vpop.f32.mrb[0].mxu0
        %v2299 = vadd.f32 0.0, %v2298
        %v2300 = vpop.f32.mrb[0].mxu0
        %2301 = vmatprep.mubr.f32.mxu0 0.0
        %2302 = vmatmul.mubr.f32.gmra.mrb[0].mxu0 %v943
        %v2303 = vpop.f32.mrb[0].mxu0
        %v2304 = vadd.f32 0.0, %v2303
        %v2305 = vpop.f32.mrb[0].mxu0
        %2306 = vmatprep.mubr.f32.mxu0 0.0
        %2307 = vmatmul.mubr.f32.gmra.mrb[0].mxu0 %v945
        %v2308 = vpop.f32.mrb[0].mxu0
        %v2309 = vadd.f32 0.0, %v2308
        %v2310 = vpop.f32.mrb[0].mxu0
        %2311 = vmatprep.mubr.f32.mxu0 0.0
        %2312 = vmatmul.mubr.f32.gmra.mrb[0].mxu0 %v947
        %v2313 = vpop.f32.mrb[0].mxu0
        %v2314 = vadd.f32 0.0, %v2313
        %v2315 = vpop.f32.mrb[0].mxu0
        %2316 = vmatprep.mubr.f32.mxu0 0.0
        %2317 = vmatmul.mubr.f32.gmra.mrb[0].mxu0 %v949
        %v2318 = vpop.f32.mrb[0].mxu0
        %v2319 = vadd.f32 0.0, %v2318
        %v2320 = vpop.f32.mrb[0].mxu0
        %2321 = vmatprep.mubr.f32.mxu0 0.0
        %2322 = vmatmul.mubr.f32.gmra.mrb[0].mxu0 %v951
        %v2323 = vpop.f32.mrb[0].mxu0
        %v2324 = vadd.f32 0.0, %v2323
        %v2325 = vpop.f32.mrb[0].mxu0
        %2326 = vmatprep.mubr.f32.mxu0 0.0
        %2327 = vmatmul.mubr.f32.gmra.mrb[0].mxu0 %v953
        %v2328 = vpop.f32.mrb[0].mxu0
        %v2329 = vadd.f32 0.0, %v2328
        %v2330 = vpop.f32.mrb[0].mxu0
        %2331 = vmatprep.mubr.f32.mxu0 0.0
        %2332 = vmatmul.mubr.f32.gmra.mrb[0].mxu0 %v955
        %v2333 = vpop.f32.mrb[0].mxu0
        %v2334 = vadd.f32 0.0, %v2333
        %v2335 = vpop.f32.mrb[0].mxu0
        %2336 = vmatprep.mubr.f32.mxu0 0.0
        %2337 = vmatmul.mubr.f32.gmra.mrb[0].mxu0 %v957
        %v2338 = vpop.f32.mrb[0].mxu0
        %v2339 = vadd.f32 0.0, %v2338
        %v2340 = vpop.f32.mrb[0].mxu0
        %2341 = vmatprep.mubr.f32.mxu0 0.0
        %2342 = vmatmul.mubr.f32.gmra.mrb[0].mxu0 %v959
        %v2343 = vpop.f32.mrb[0].mxu0
        %v2344 = vadd.f32 0.0, %v2343
        %v2345 = vpop.f32.mrb[0].mxu0
        %2346 = vmatprep.mubr.f32.mxu0 0.0
        %2347 = vmatmul.mubr.f32.gmra.mrb[0].mxu0 %v961
        %v2348 = vpop.f32.mrb[0].mxu0
        %v2349 = vadd.f32 0.0, %v2348
        %v2350 = vpop.f32.mrb[0].mxu0
        %2351 = vmatprep.mubr.f32.mxu0 0.0
        %2352 = vmatmul.mubr.f32.gmra.mrb[0].mxu0 %v963
        %v2353 = vpop.f32.mrb[0].mxu0
        %v2354 = vadd.f32 0.0, %v2353
        %v2355 = vpop.f32.mrb[0].mxu0
        %2356 = vmatprep.mubr.f32.mxu0 0.0
        %2357 = vmatmul.mubr.f32.gmra.mrb[0].mxu0 %v965
        %v2358 = vpop.f32.mrb[0].mxu0
        %v2359 = vadd.f32 0.0, %v2358
        %v2360 = vpop.f32.mrb[0].mxu0
        %2361 = vmatprep.mubr.f32.mxu0 0.0
        %2362 = vmatmul.mubr.f32.gmra.mrb[0].mxu0 %v967
        %v2363 = vpop.f32.mrb[0].mxu0
        %v2364 = vadd.f32 0.0, %v2363
        %v2365 = vpop.f32.mrb[0].mxu0
        %2366 = vmatprep.mubr.f32.mxu0 0.0
        %2367 = vmatmul.mubr.f32.gmra.mrb[0].mxu0 %v969
        %v2368 = vpop.f32.mrb[0].mxu0
        %v2369 = vadd.f32 0.0, %v2368
        %v2370 = vpop.f32.mrb[0].mxu0
        %2371 = vmatprep.mubr.f32.mxu0 0.0
        %2372 = vmatmul.mubr.f32.gmra.mrb[0].mxu0 %v971
        %v2373 = vpop.f32.mrb[0].mxu0
        %v2374 = vadd.f32 0.0, %v2373
        %v2375 = vpop.f32.mrb[0].mxu0
        %2376 = vmatprep.mubr.f32.mxu0 0.0
        %2377 = vmatmul.mubr.f32.gmra.mrb[0].mxu0 %v973
        %v2378 = vpop.f32.mrb[0].mxu0
        %v2379 = vadd.f32 0.0, %v2378
        %v2380 = vpop.f32.mrb[0].mxu0
        %2381 = vmatprep.mubr.f32.mxu0 0.0
        %2382 = vmatmul.mubr.f32.gmra.mrb[0].mxu0 %v975
        %v2383 = vpop.f32.mrb[0].mxu0
        %v2384 = vadd.f32 0.0, %v2383
        %v2385 = vpop.f32.mrb[0].mxu0
        %2386 = vmatprep.mubr.f32.mxu0 0.0
        %2387 = vmatmul.mubr.f32.gmra.mrb[0].mxu0 %v977
        %v2388 = vpop.f32.mrb[0].mxu0
        %v2389 = vadd.f32 0.0, %v2388
        %v2390 = vpop.f32.mrb[0].mxu0
        %2391 = vmatprep.mubr.f32.mxu0 0.0
        %2392 = vmatmul.mubr.f32.gmra.mrb[0].mxu0 %v979
        %v2393 = vpop.f32.mrb[0].mxu0
        %v2394 = vadd.f32 0.0, %v2393
        %v2395 = vpop.f32.mrb[0].mxu0
        %2396 = vmatprep.mubr.f32.mxu0 0.0
        %2397 = vmatmul.mubr.f32.gmra.mrb[0].mxu0 %v981
        %v2398 = vpop.f32.mrb[0].mxu0
        %v2399 = vadd.f32 0.0, %v2398
        %v2400 = vpop.f32.mrb[0].mxu0
        %2401 = vmatprep.mubr.f32.mxu0 0.0
        %2402 = vmatmul.mubr.f32.gmra.mrb[0].mxu0 %v983
        %v2403 = vpop.f32.mrb[0].mxu0
        %v2404 = vadd.f32 0.0, %v2403
        %v2405 = vpop.f32.mrb[0].mxu0
        %2406 = vmatprep.mubr.f32.mxu0 0.0
        %2407 = vmatmul.mubr.f32.gmra.mrb[0].mxu0 %v985
        %v2408 = vpop.f32.mrb[0].mxu0
        %v2409 = vadd.f32 0.0, %v2408
        %v2410 = vpop.f32.mrb[0].mxu0
        %2411 = vmatprep.mubr.f32.mxu0 0.0
        %2412 = vmatmul.mubr.f32.gmra.mrb[0].mxu0 %v987
        %v2413 = vpop.f32.mrb[0].mxu0
        %v2414 = vadd.f32 0.0, %v2413
        %v2415 = vpop.f32.mrb[0].mxu0
        %2416 = vmatprep.mubr.f32.mxu0 0.0
        %2417 = vmatmul.mubr.f32.gmra.mrb[0].mxu0 %v2198
        %v2418 = vpop.f32.mrb[0].mxu0
        %v2419 = vadd.f32 0.0, %v2418
        %v2420 = vpop.f32.mrb[0].mxu0
        %2421 = vmatprep.mubr.f32.mxu0 0.0
        %2422 = vmatmul.mubr.f32.gmra.mrb[0].mxu0 %v2200
        %v2423 = vpop.f32.mrb[0].mxu0
        %v2424 = vadd.f32 0.0, %v2423
        %v2425 = vpop.f32.mrb[0].mxu0
        %2426 = vdwg.mxu0
        %v2427 = vadd.f32 %v2152, %v2269
        %v2428 = vadd.f32 %v2153, %v2274
        %v2429 = vadd.f32 %v2154, %v2279
        %v2430 = vadd.f32 %v2155, %v2284
        %v2431 = vadd.f32 %v2156, %v2289
        %v2432 = vadd.f32 %v2157, %v2294
        %v2433 = vadd.f32 %v2158, %v2299
        %v2434 = vadd.f32 %v2159, %v2304
        %v2435 = vadd.f32 %v2160, %v2309
        %v2436 = vadd.f32 %v2161, %v2314
        %v2437 = vadd.f32 %v2162, %v2319
        %v2438 = vadd.f32 %v2163, %v2324
        %v2439 = vadd.f32 %v2164, %v2329
        %v2440 = vadd.f32 %v2165, %v2334
        %v2441 = vadd.f32 %v2166, %v2339
        %v2442 = vadd.f32 %v2167, %v2344
        %v2443 = vadd.f32 %v2168, %v2349
        %v2444 = vadd.f32 %v2169, %v2354
        %v2445 = vadd.f32 %v2170, %v2359
        %v2446 = vadd.f32 %v2171, %v2364
        %v2447 = vadd.f32 %v2172, %v2369
        %v2448 = vadd.f32 %v2173, %v2374
        %v2449 = vadd.f32 %v2174, %v2379
        %v2450 = vadd.f32 %v2175, %v2384
        %v2451 = vadd.f32 %v2176, %v2389
        %v2452 = vadd.f32 %v2177, %v2394
        %v2453 = vadd.f32 %v2178, %v2399
        %v2454 = vadd.f32 %v2179, %v2404
        %v2455 = vadd.f32 %v2180, %v2409
        %v2456 = vadd.f32 %v2181, %v2414
        %v2457 = vadd.f32 %v2182, %v2419
        %v2458 = vadd.f32 %v2183, %v2424
        %v2459 = vrot.slane %v774, 2
        %v2460 = vrot.slane %v775, 2
        %v2461 = vsel %vm1503, %v2459, %v2460
        %v2462 = vrot.slane %v776, 2
        %v2463 = vsel %vm1503, %v2460, %v2462
        %v2464 = vld [vmem:[%s3 + $0x140] sm:$0xff]
        %v2465 = vld [vmem:[%s3 + $0x148] sm:$0xff]
        %v2466 = vld [vmem:[%s3 + $0x150] sm:$0xff]
        %v2467 = vld [vmem:[%s3 + $0x158] sm:$0xff]
        %v2468 = vld [vmem:[%s3 + $0x160] sm:$0xff]
        %v2469 = vld [vmem:[%s3 + $0x168] sm:$0xff]
        %v2470 = vld [vmem:[%s3 + $0x170] sm:$0xff]
        %v2471 = vld [vmem:[%s3 + $0x178] sm:$0xff]
        %v2472 = vsel %vm637, %v2461, 0
        %v2474 = vsel %vm637, %v2463, 0
        %2476 = vmatprep.subr.mxu0 0.0
        %2477 = vmatpush1.msra.mxu0 %v2464
        %2478 = vmatprep.subr.mxu0 0.0
        %2479 = vmatpush1.msra.mxu0 %v2465
        %2480 = vmatprep.subr.mxu0 0.0
        %2481 = vmatpush1.msra.mxu0 %v2466
        %2482 = vmatprep.subr.mxu0 0.0
        %2483 = vmatpush1.msra.mxu0 %v2467
        %2484 = vmatprep.subr.mxu0 0.0
        %2485 = vmatpush1.msra.mxu0 %v2468
        %2486 = vmatprep.subr.mxu0 0.0
        %2487 = vmatpush1.msra.mxu0 %v2469
        %2488 = vmatprep.subr.mxu0 0.0
        %2489 = vmatpush1.msra.mxu0 %v2470
        %2490 = vmatprep.subr.mxu0 0.0
        %2491 = vmatpush1.msra.mxu0 %v2471
        %2492 = vmatprep.subr.mxu0 0.0
        %2493 = vmatpush1.msra.mxu0 0.0
        %2494 = vmatprep.subr.mxu0 0.0
        %2495 = vmatpush1.msra.mxu0 0.0
        %2496 = vmatprep.subr.mxu0 0.0
        %2497 = vmatpush1.msra.mxu0 0.0
        %2498 = vmatprep.subr.mxu0 0.0
        %2499 = vmatpush1.msra.mxu0 0.0
        %2500 = vmatprep.subr.mxu0 0.0
        %2501 = vmatpush1.msra.mxu0 0.0
        %2502 = vmatprep.subr.mxu0 0.0
        %2503 = vmatpush1.msra.mxu0 0.0
        %2504 = vmatprep.subr.mxu0 0.0
        %2505 = vmatpush1.msra.mxu0 0.0
        %2506 = vmatprep.subr.mxu0 0.0
        %2507 = vmatpush1.msra.mxu0 0.0
        %2508 = vmatprep.subr.mxu0 0.0
        %2509 = vmatpush1.msra.mxu0 0.0
        %2510 = vmatprep.subr.mxu0 0.0
        %2511 = vmatpush1.msra.mxu0 0.0
        %2512 = vmatprep.subr.mxu0 0.0
        %2513 = vmatpush1.msra.mxu0 0.0
        %2514 = vmatprep.subr.mxu0 0.0
        %2515 = vmatpush1.msra.mxu0 0.0
        %2516 = vmatprep.subr.mxu0 0.0
        %2517 = vmatpush1.msra.mxu0 0.0
        %2518 = vmatprep.subr.mxu0 0.0
        %2519 = vmatpush1.msra.mxu0 0.0
        %2520 = vmatprep.subr.mxu0 0.0
        %2521 = vmatpush1.msra.mxu0 0.0
        %2522 = vmatprep.subr.mxu0 0.0
        %2523 = vmatpush1.msra.mxu0 0.0
        %2524 = vmatprep.subr.mxu0 0.0
        %2525 = vmatpush1.msra.mxu0 0.0
        %2526 = vmatprep.subr.mxu0 0.0
        %2527 = vmatpush1.msra.mxu0 0.0
        %2528 = vmatprep.subr.mxu0 0.0
        %2529 = vmatpush1.msra.mxu0 0.0
        %2530 = vmatprep.subr.mxu0 0.0
        %2531 = vmatpush1.msra.mxu0 0.0
        %2532 = vmatprep.subr.mxu0 0.0
        %2533 = vmatpush1.msra.mxu0 0.0
        %2534 = vmatprep.subr.mxu0 0.0
        %2535 = vmatpush1.msra.mxu0 0.0
        %2536 = vmatprep.subr.mxu0 0.0
        %2537 = vmatpush1.msra.mxu0 0.0
        %2538 = vmatprep.subr.mxu0 0.0
        %2539 = vmatpush1.msra.mxu0 0.0
        %2540 = vmatprep.mubr.f32.mxu0 0.0
        %2541 = vmatmul.mubr.f32.gmra.mrb[0].mxu0 %v1596
        %v2542 = vpop.f32.mrb[0].mxu0
        %v2543 = vadd.f32 0.0, %v2542
        %v2544 = vpop.f32.mrb[0].mxu0
        %2545 = vmatprep.mubr.f32.mxu0 0.0
        %2546 = vmatmul.mubr.f32.gmra.mrb[0].mxu0 %v1598
        %v2547 = vpop.f32.mrb[0].mxu0
        %v2548 = vadd.f32 0.0, %v2547
        %v2549 = vpop.f32.mrb[0].mxu0
        %2550 = vmatprep.mubr.f32.mxu0 0.0
        %2551 = vmatmul.mubr.f32.gmra.mrb[0].mxu0 %v1600
        %v2552 = vpop.f32.mrb[0].mxu0
        %v2553 = vadd.f32 0.0, %v2552
        %v2554 = vpop.f32.mrb[0].mxu0
        %2555 = vmatprep.mubr.f32.mxu0 0.0
        %2556 = vmatmul.mubr.f32.gmra.mrb[0].mxu0 %v1602
        %v2557 = vpop.f32.mrb[0].mxu0
        %v2558 = vadd.f32 0.0, %v2557
        %v2559 = vpop.f32.mrb[0].mxu0
        %2560 = vmatprep.mubr.f32.mxu0 0.0
        %2561 = vmatmul.mubr.f32.gmra.mrb[0].mxu0 %v1604
        %v2562 = vpop.f32.mrb[0].mxu0
        %v2563 = vadd.f32 0.0, %v2562
        %v2564 = vpop.f32.mrb[0].mxu0
        %2565 = vmatprep.mubr.f32.mxu0 0.0
        %2566 = vmatmul.mubr.f32.gmra.mrb[0].mxu0 %v1606
        %v2567 = vpop.f32.mrb[0].mxu0
        %v2568 = vadd.f32 0.0, %v2567
        %v2569 = vpop.f32.mrb[0].mxu0
        %2570 = vmatprep.mubr.f32.mxu0 0.0
        %2571 = vmatmul.mubr.f32.gmra.mrb[0].mxu0 %v1608
        %v2572 = vpop.f32.mrb[0].mxu0
        %v2573 = vadd.f32 0.0, %v2572
        %v2574 = vpop.f32.mrb[0].mxu0
        %2575 = vmatprep.mubr.f32.mxu0 0.0
        %2576 = vmatmul.mubr.f32.gmra.mrb[0].mxu0 %v1610
        %v2577 = vpop.f32.mrb[0].mxu0
        %v2578 = vadd.f32 0.0, %v2577
        %v2579 = vpop.f32.mrb[0].mxu0
        %2580 = vmatprep.mubr.f32.mxu0 0.0
        %2581 = vmatmul.mubr.f32.gmra.mrb[0].mxu0 %v1612
        %v2582 = vpop.f32.mrb[0].mxu0
        %v2583 = vadd.f32 0.0, %v2582
        %v2584 = vpop.f32.mrb[0].mxu0
        %2585 = vmatprep.mubr.f32.mxu0 0.0
        %2586 = vmatmul.mubr.f32.gmra.mrb[0].mxu0 %v1614
        %v2587 = vpop.f32.mrb[0].mxu0
        %v2588 = vadd.f32 0.0, %v2587
        %v2589 = vpop.f32.mrb[0].mxu0
        %2590 = vmatprep.mubr.f32.mxu0 0.0
        %2591 = vmatmul.mubr.f32.gmra.mrb[0].mxu0 %v1616
        %v2592 = vpop.f32.mrb[0].mxu0
        %v2593 = vadd.f32 0.0, %v2592
        %v2594 = vpop.f32.mrb[0].mxu0
        %2595 = vmatprep.mubr.f32.mxu0 0.0
        %2596 = vmatmul.mubr.f32.gmra.mrb[0].mxu0 %v1618
        %v2597 = vpop.f32.mrb[0].mxu0
        %v2598 = vadd.f32 0.0, %v2597
        %v2599 = vpop.f32.mrb[0].mxu0
        %2600 = vmatprep.mubr.f32.mxu0 0.0
        %2601 = vmatmul.mubr.f32.gmra.mrb[0].mxu0 %v1620
        %v2602 = vpop.f32.mrb[0].mxu0
        %v2603 = vadd.f32 0.0, %v2602
        %v2604 = vpop.f32.mrb[0].mxu0
        %2605 = vmatprep.mubr.f32.mxu0 0.0
        %2606 = vmatmul.mubr.f32.gmra.mrb[0].mxu0 %v1622
        %v2607 = vpop.f32.mrb[0].mxu0
        %v2608 = vadd.f32 0.0, %v2607
        %v2609 = vpop.f32.mrb[0].mxu0
        %2610 = vmatprep.mubr.f32.mxu0 0.0
        %2611 = vmatmul.mubr.f32.gmra.mrb[0].mxu0 %v1624
        %v2612 = vpop.f32.mrb[0].mxu0
        %v2613 = vadd.f32 0.0, %v2612
        %v2614 = vpop.f32.mrb[0].mxu0
        %2615 = vmatprep.mubr.f32.mxu0 0.0
        %2616 = vmatmul.mubr.f32.gmra.mrb[0].mxu0 %v1626
        %v2617 = vpop.f32.mrb[0].mxu0
        %v2618 = vadd.f32 0.0, %v2617
        %v2619 = vpop.f32.mrb[0].mxu0
        %2620 = vmatprep.mubr.f32.mxu0 0.0
        %2621 = vmatmul.mubr.f32.gmra.mrb[0].mxu0 %v1628
        %v2622 = vpop.f32.mrb[0].mxu0
        %v2623 = vadd.f32 0.0, %v2622
        %v2624 = vpop.f32.mrb[0].mxu0
        %2625 = vmatprep.mubr.f32.mxu0 0.0
        %2626 = vmatmul.mubr.f32.gmra.mrb[0].mxu0 %v1630
        %v2627 = vpop.f32.mrb[0].mxu0
        %v2628 = vadd.f32 0.0, %v2627
        %v2629 = vpop.f32.mrb[0].mxu0
        %2630 = vmatprep.mubr.f32.mxu0 0.0
        %2631 = vmatmul.mubr.f32.gmra.mrb[0].mxu0 %v1632
        %v2632 = vpop.f32.mrb[0].mxu0
        %v2633 = vadd.f32 0.0, %v2632
        %v2634 = vpop.f32.mrb[0].mxu0
        %2635 = vmatprep.mubr.f32.mxu0 0.0
        %2636 = vmatmul.mubr.f32.gmra.mrb[0].mxu0 %v1634
        %v2637 = vpop.f32.mrb[0].mxu0
        %v2638 = vadd.f32 0.0, %v2637
        %v2639 = vpop.f32.mrb[0].mxu0
        %2640 = vmatprep.mubr.f32.mxu0 0.0
        %2641 = vmatmul.mubr.f32.gmra.mrb[0].mxu0 %v1636
        %v2642 = vpop.f32.mrb[0].mxu0
        %v2643 = vadd.f32 0.0, %v2642
        %v2644 = vpop.f32.mrb[0].mxu0
        %2645 = vmatprep.mubr.f32.mxu0 0.0
        %2646 = vmatmul.mubr.f32.gmra.mrb[0].mxu0 %v1638
        %v2647 = vpop.f32.mrb[0].mxu0
        %v2648 = vadd.f32 0.0, %v2647
        %v2649 = vpop.f32.mrb[0].mxu0
        %2650 = vmatprep.mubr.f32.mxu0 0.0
        %2651 = vmatmul.mubr.f32.gmra.mrb[0].mxu0 %v1640
        %v2652 = vpop.f32.mrb[0].mxu0
        %v2653 = vadd.f32 0.0, %v2652
        %v2654 = vpop.f32.mrb[0].mxu0
        %2655 = vmatprep.mubr.f32.mxu0 0.0
        %2656 = vmatmul.mubr.f32.gmra.mrb[0].mxu0 %v1642
        %v2657 = vpop.f32.mrb[0].mxu0
        %v2658 = vadd.f32 0.0, %v2657
        %v2659 = vpop.f32.mrb[0].mxu0
        %2660 = vmatprep.mubr.f32.mxu0 0.0
        %2661 = vmatmul.mubr.f32.gmra.mrb[0].mxu0 %v1644
        %v2662 = vpop.f32.mrb[0].mxu0
        %v2663 = vadd.f32 0.0, %v2662
        %v2664 = vpop.f32.mrb[0].mxu0
        %2665 = vmatprep.mubr.f32.mxu0 0.0
        %2666 = vmatmul.mubr.f32.gmra.mrb[0].mxu0 %v1646
        %v2667 = vpop.f32.mrb[0].mxu0
        %v2668 = vadd.f32 0.0, %v2667
        %v2669 = vpop.f32.mrb[0].mxu0
        %2670 = vmatprep.mubr.f32.mxu0 0.0
        %2671 = vmatmul.mubr.f32.gmra.mrb[0].mxu0 %v1648
        %v2672 = vpop.f32.mrb[0].mxu0
        %v2673 = vadd.f32 0.0, %v2672
        %v2674 = vpop.f32.mrb[0].mxu0
        %2675 = vmatprep.mubr.f32.mxu0 0.0
        %2676 = vmatmul.mubr.f32.gmra.mrb[0].mxu0 %v1650
        %v2677 = vpop.f32.mrb[0].mxu0
        %v2678 = vadd.f32 0.0, %v2677
        %v2679 = vpop.f32.mrb[0].mxu0
        %2680 = vmatprep.mubr.f32.mxu0 0.0
        %2681 = vmatmul.mubr.f32.gmra.mrb[0].mxu0 %v1652
        %v2682 = vpop.f32.mrb[0].mxu0
        %v2683 = vadd.f32 0.0, %v2682
        %v2684 = vpop.f32.mrb[0].mxu0
        %2685 = vmatprep.mubr.f32.mxu0 0.0
        %2686 = vmatmul.mubr.f32.gmra.mrb[0].mxu0 %v1654
        %v2687 = vpop.f32.mrb[0].mxu0
        %v2688 = vadd.f32 0.0, %v2687
        %v2689 = vpop.f32.mrb[0].mxu0
        %2690 = vmatprep.mubr.f32.mxu0 0.0
        %2691 = vmatmul.mubr.f32.gmra.mrb[0].mxu0 %v2472
        %v2692 = vpop.f32.mrb[0].mxu0
        %v2693 = vadd.f32 0.0, %v2692
        %v2694 = vpop.f32.mrb[0].mxu0
        %2695 = vmatprep.mubr.f32.mxu0 0.0
        %2696 = vmatmul.mubr.f32.gmra.mrb[0].mxu0 %v2474
        %v2697 = vpop.f32.mrb[0].mxu0
        %v2698 = vadd.f32 0.0, %v2697
        %v2699 = vpop.f32.mrb[0].mxu0
        %2700 = vdwg.mxu0
        %v2701 = vadd.f32 %v2427, %v2543
        %v2702 = vadd.f32 %v2428, %v2548
        %v2703 = vadd.f32 %v2429, %v2553
        %v2704 = vadd.f32 %v2430, %v2558
        %v2705 = vadd.f32 %v2431, %v2563
        %v2706 = vadd.f32 %v2432, %v2568
        %v2707 = vadd.f32 %v2433, %v2573
        %v2708 = vadd.f32 %v2434, %v2578
        %v2709 = vadd.f32 %v2435, %v2583
        %v2710 = vadd.f32 %v2436, %v2588
        %v2711 = vadd.f32 %v2437, %v2593
        %v2712 = vadd.f32 %v2438, %v2598
        %v2713 = vadd.f32 %v2439, %v2603
        %v2714 = vadd.f32 %v2440, %v2608
        %v2715 = vadd.f32 %v2441, %v2613
        %v2716 = vadd.f32 %v2442, %v2618
        %v2717 = vadd.f32 %v2443, %v2623
        %v2718 = vadd.f32 %v2444, %v2628
        %v2719 = vadd.f32 %v2445, %v2633
        %v2720 = vadd.f32 %v2446, %v2638
        %v2721 = vadd.f32 %v2447, %v2643
        %v2722 = vadd.f32 %v2448, %v2648
        %v2723 = vadd.f32 %v2449, %v2653
        %v2724 = vadd.f32 %v2450, %v2658
        %v2725 = vadd.f32 %v2451, %v2663
        %v2726 = vadd.f32 %v2452, %v2668
        %v2727 = vadd.f32 %v2453, %v2673
        %v2728 = vadd.f32 %v2454, %v2678
        %v2729 = vadd.f32 %v2455, %v2683
        %v2730 = vadd.f32 %v2456, %v2688
        %v2731 = vadd.f32 %v2457, %v2693
        %v2732 = vadd.f32 %v2458, %v2698
        %v2733 = vld [vmem:[%s3 + $0x180] sm:$0xff]
        %v2734 = vld [vmem:[%s3 + $0x188] sm:$0xff]
        %v2735 = vld [vmem:[%s3 + $0x190] sm:$0xff]
        %v2736 = vld [vmem:[%s3 + $0x198] sm:$0xff]
        %v2737 = vld [vmem:[%s3 + $0x1a0] sm:$0xff]
        %v2738 = vld [vmem:[%s3 + $0x1a8] sm:$0xff]
        %v2739 = vld [vmem:[%s3 + $0x1b0] sm:$0xff]
        %v2740 = vld [vmem:[%s3 + $0x1b8] sm:$0xff]
        %v2742 = vsel %vm637, %v777, 0
        %v2745 = vsel %vm637, %v778, 0
        %2747 = vmatprep.subr.mxu0 0.0
        %2748 = vmatpush1.msra.mxu0 %v2733
        %2749 = vmatprep.subr.mxu0 0.0
        %2750 = vmatpush1.msra.mxu0 %v2734
        %2751 = vmatprep.subr.mxu0 0.0
        %2752 = vmatpush1.msra.mxu0 %v2735
        %2753 = vmatprep.subr.mxu0 0.0
        %2754 = vmatpush1.msra.mxu0 %v2736
        %2755 = vmatprep.subr.mxu0 0.0
        %2756 = vmatpush1.msra.mxu0 %v2737
        %2757 = vmatprep.subr.mxu0 0.0
        %2758 = vmatpush1.msra.mxu0 %v2738
        %2759 = vmatprep.subr.mxu0 0.0
        %2760 = vmatpush1.msra.mxu0 %v2739
        %2761 = vmatprep.subr.mxu0 0.0
        %2762 = vmatpush1.msra.mxu0 %v2740
        %2763 = vmatprep.subr.mxu0 0.0
        %2764 = vmatpush1.msra.mxu0 0.0
        %2765 = vmatprep.subr.mxu0 0.0
        %2766 = vmatpush1.msra.mxu0 0.0
        %2767 = vmatprep.subr.mxu0 0.0
        %2768 = vmatpush1.msra.mxu0 0.0
        %2769 = vmatprep.subr.mxu0 0.0
        %2770 = vmatpush1.msra.mxu0 0.0
        %2771 = vmatprep.subr.mxu0 0.0
        %2772 = vmatpush1.msra.mxu0 0.0
        %2773 = vmatprep.subr.mxu0 0.0
        %2774 = vmatpush1.msra.mxu0 0.0
        %2775 = vmatprep.subr.mxu0 0.0
        %2776 = vmatpush1.msra.mxu0 0.0
        %2777 = vmatprep.subr.mxu0 0.0
        %2778 = vmatpush1.msra.mxu0 0.0
        %2779 = vmatprep.subr.mxu0 0.0
        %2780 = vmatpush1.msra.mxu0 0.0
        %2781 = vmatprep.subr.mxu0 0.0
        %2782 = vmatpush1.msra.mxu0 0.0
        %2783 = vmatprep.subr.mxu0 0.0
        %2784 = vmatpush1.msra.mxu0 0.0
        %2785 = vmatprep.subr.mxu0 0.0
        %2786 = vmatpush1.msra.mxu0 0.0
        %2787 = vmatprep.subr.mxu0 0.0
        %2788 = vmatpush1.msra.mxu0 0.0
        %2789 = vmatprep.subr.mxu0 0.0
        %2790 = vmatpush1.msra.mxu0 0.0
        %2791 = vmatprep.subr.mxu0 0.0
        %2792 = vmatpush1.msra.mxu0 0.0
        %2793 = vmatprep.subr.mxu0 0.0
        %2794 = vmatpush1.msra.mxu0 0.0
        %2795 = vmatprep.subr.mxu0 0.0
        %2796 = vmatpush1.msra.mxu0 0.0
        %2797 = vmatprep.subr.mxu0 0.0
        %2798 = vmatpush1.msra.mxu0 0.0
        %2799 = vmatprep.subr.mxu0 0.0
        %2800 = vmatpush1.msra.mxu0 0.0
        %2801 = vmatprep.subr.mxu0 0.0
        %2802 = vmatpush1.msra.mxu0 0.0
        %2803 = vmatprep.subr.mxu0 0.0
        %2804 = vmatpush1.msra.mxu0 0.0
        %2805 = vmatprep.subr.mxu0 0.0
        %2806 = vmatpush1.msra.mxu0 0.0
        %2807 = vmatprep.subr.mxu0 0.0
        %2808 = vmatpush1.msra.mxu0 0.0
        %2809 = vmatprep.subr.mxu0 0.0
        %2810 = vmatpush1.msra.mxu0 0.0
        %2811 = vmatprep.mubr.f32.mxu0 0.0
        %2812 = vmatmul.mubr.f32.gmra.mrb[0].mxu0 %v1222
        %v2813 = vpop.f32.mrb[0].mxu0
        %v2814 = vadd.f32 0.0, %v2813
        %v2815 = vpop.f32.mrb[0].mxu0
        %2816 = vmatprep.mubr.f32.mxu0 0.0
        %2817 = vmatmul.mubr.f32.gmra.mrb[0].mxu0 %v1224
        %v2818 = vpop.f32.mrb[0].mxu0
        %v2819 = vadd.f32 0.0, %v2818
        %v2820 = vpop.f32.mrb[0].mxu0
        %2821 = vmatprep.mubr.f32.mxu0 0.0
        %2822 = vmatmul.mubr.f32.gmra.mrb[0].mxu0 %v1226
        %v2823 = vpop.f32.mrb[0].mxu0
        %v2824 = vadd.f32 0.0, %v2823
        %v2825 = vpop.f32.mrb[0].mxu0
        %2826 = vmatprep.mubr.f32.mxu0 0.0
        %2827 = vmatmul.mubr.f32.gmra.mrb[0].mxu0 %v1228
        %v2828 = vpop.f32.mrb[0].mxu0
        %v2829 = vadd.f32 0.0, %v2828
        %v2830 = vpop.f32.mrb[0].mxu0
        %2831 = vmatprep.mubr.f32.mxu0 0.0
        %2832 = vmatmul.mubr.f32.gmra.mrb[0].mxu0 %v1230
        %v2833 = vpop.f32.mrb[0].mxu0
        %v2834 = vadd.f32 0.0, %v2833
        %v2835 = vpop.f32.mrb[0].mxu0
        %2836 = vmatprep.mubr.f32.mxu0 0.0
        %2837 = vmatmul.mubr.f32.gmra.mrb[0].mxu0 %v1232
        %v2838 = vpop.f32.mrb[0].mxu0
        %v2839 = vadd.f32 0.0, %v2838
        %v2840 = vpop.f32.mrb[0].mxu0
        %2841 = vmatprep.mubr.f32.mxu0 0.0
        %2842 = vmatmul.mubr.f32.gmra.mrb[0].mxu0 %v1234
        %v2843 = vpop.f32.mrb[0].mxu0
        %v2844 = vadd.f32 0.0, %v2843
        %v2845 = vpop.f32.mrb[0].mxu0
        %2846 = vmatprep.mubr.f32.mxu0 0.0
        %2847 = vmatmul.mubr.f32.gmra.mrb[0].mxu0 %v1236
        %v2848 = vpop.f32.mrb[0].mxu0
        %v2849 = vadd.f32 0.0, %v2848
        %v2850 = vpop.f32.mrb[0].mxu0
        %2851 = vmatprep.mubr.f32.mxu0 0.0
        %2852 = vmatmul.mubr.f32.gmra.mrb[0].mxu0 %v1238
        %v2853 = vpop.f32.mrb[0].mxu0
        %v2854 = vadd.f32 0.0, %v2853
        %v2855 = vpop.f32.mrb[0].mxu0
        %2856 = vmatprep.mubr.f32.mxu0 0.0
        %2857 = vmatmul.mubr.f32.gmra.mrb[0].mxu0 %v1240
        %v2858 = vpop.f32.mrb[0].mxu0
        %v2859 = vadd.f32 0.0, %v2858
        %v2860 = vpop.f32.mrb[0].mxu0
        %2861 = vmatprep.mubr.f32.mxu0 0.0
        %2862 = vmatmul.mubr.f32.gmra.mrb[0].mxu0 %v1242
        %v2863 = vpop.f32.mrb[0].mxu0
        %v2864 = vadd.f32 0.0, %v2863
        %v2865 = vpop.f32.mrb[0].mxu0
        %2866 = vmatprep.mubr.f32.mxu0 0.0
        %2867 = vmatmul.mubr.f32.gmra.mrb[0].mxu0 %v1244
        %v2868 = vpop.f32.mrb[0].mxu0
        %v2869 = vadd.f32 0.0, %v2868
        %v2870 = vpop.f32.mrb[0].mxu0
        %2871 = vmatprep.mubr.f32.mxu0 0.0
        %2872 = vmatmul.mubr.f32.gmra.mrb[0].mxu0 %v1246
        %v2873 = vpop.f32.mrb[0].mxu0
        %v2874 = vadd.f32 0.0, %v2873
        %v2875 = vpop.f32.mrb[0].mxu0
        %2876 = vmatprep.mubr.f32.mxu0 0.0
        %2877 = vmatmul.mubr.f32.gmra.mrb[0].mxu0 %v1248
        %v2878 = vpop.f32.mrb[0].mxu0
        %v2879 = vadd.f32 0.0, %v2878
        %v2880 = vpop.f32.mrb[0].mxu0
        %2881 = vmatprep.mubr.f32.mxu0 0.0
        %2882 = vmatmul.mubr.f32.gmra.mrb[0].mxu0 %v1250
        %v2883 = vpop.f32.mrb[0].mxu0
        %v2884 = vadd.f32 0.0, %v2883
        %v2885 = vpop.f32.mrb[0].mxu0
        %2886 = vmatprep.mubr.f32.mxu0 0.0
        %2887 = vmatmul.mubr.f32.gmra.mrb[0].mxu0 %v1252
        %v2888 = vpop.f32.mrb[0].mxu0
        %v2889 = vadd.f32 0.0, %v2888
        %v2890 = vpop.f32.mrb[0].mxu0
        %2891 = vmatprep.mubr.f32.mxu0 0.0
        %2892 = vmatmul.mubr.f32.gmra.mrb[0].mxu0 %v1254
        %v2893 = vpop.f32.mrb[0].mxu0
        %v2894 = vadd.f32 0.0, %v2893
        %v2895 = vpop.f32.mrb[0].mxu0
        %2896 = vmatprep.mubr.f32.mxu0 0.0
        %2897 = vmatmul.mubr.f32.gmra.mrb[0].mxu0 %v1256
        %v2898 = vpop.f32.mrb[0].mxu0
        %v2899 = vadd.f32 0.0, %v2898
        %v2900 = vpop.f32.mrb[0].mxu0
        %2901 = vmatprep.mubr.f32.mxu0 0.0
        %2902 = vmatmul.mubr.f32.gmra.mrb[0].mxu0 %v1258
        %v2903 = vpop.f32.mrb[0].mxu0
        %v2904 = vadd.f32 0.0, %v2903
        %v2905 = vpop.f32.mrb[0].mxu0
        %2906 = vmatprep.mubr.f32.mxu0 0.0
        %2907 = vmatmul.mubr.f32.gmra.mrb[0].mxu0 %v1260
        %v2908 = vpop.f32.mrb[0].mxu0
        %v2909 = vadd.f32 0.0, %v2908
        %v2910 = vpop.f32.mrb[0].mxu0
        %2911 = vmatprep.mubr.f32.mxu0 0.0
        %2912 = vmatmul.mubr.f32.gmra.mrb[0].mxu0 %v1262
        %v2913 = vpop.f32.mrb[0].mxu0
        %v2914 = vadd.f32 0.0, %v2913
        %v2915 = vpop.f32.mrb[0].mxu0
        %2916 = vmatprep.mubr.f32.mxu0 0.0
        %2917 = vmatmul.mubr.f32.gmra.mrb[0].mxu0 %v1264
        %v2918 = vpop.f32.mrb[0].mxu0
        %v2919 = vadd.f32 0.0, %v2918
        %v2920 = vpop.f32.mrb[0].mxu0
        %2921 = vmatprep.mubr.f32.mxu0 0.0
        %2922 = vmatmul.mubr.f32.gmra.mrb[0].mxu0 %v1266
        %v2923 = vpop.f32.mrb[0].mxu0
        %v2924 = vadd.f32 0.0, %v2923
        %v2925 = vpop.f32.mrb[0].mxu0
        %2926 = vmatprep.mubr.f32.mxu0 0.0
        %2927 = vmatmul.mubr.f32.gmra.mrb[0].mxu0 %v1268
        %v2928 = vpop.f32.mrb[0].mxu0
        %v2929 = vadd.f32 0.0, %v2928
        %v2930 = vpop.f32.mrb[0].mxu0
        %2931 = vmatprep.mubr.f32.mxu0 0.0
        %2932 = vmatmul.mubr.f32.gmra.mrb[0].mxu0 %v1270
        %v2933 = vpop.f32.mrb[0].mxu0
        %v2934 = vadd.f32 0.0, %v2933
        %v2935 = vpop.f32.mrb[0].mxu0
        %2936 = vmatprep.mubr.f32.mxu0 0.0
        %2937 = vmatmul.mubr.f32.gmra.mrb[0].mxu0 %v1272
        %v2938 = vpop.f32.mrb[0].mxu0
        %v2939 = vadd.f32 0.0, %v2938
        %v2940 = vpop.f32.mrb[0].mxu0
        %2941 = vmatprep.mubr.f32.mxu0 0.0
        %2942 = vmatmul.mubr.f32.gmra.mrb[0].mxu0 %v1274
        %v2943 = vpop.f32.mrb[0].mxu0
        %v2944 = vadd.f32 0.0, %v2943
        %v2945 = vpop.f32.mrb[0].mxu0
        %2946 = vmatprep.mubr.f32.mxu0 0.0
        %2947 = vmatmul.mubr.f32.gmra.mrb[0].mxu0 %v1276
        %v2948 = vpop.f32.mrb[0].mxu0
        %v2949 = vadd.f32 0.0, %v2948
        %v2950 = vpop.f32.mrb[0].mxu0
        %2951 = vmatprep.mubr.f32.mxu0 0.0
        %2952 = vmatmul.mubr.f32.gmra.mrb[0].mxu0 %v1922
        %v2953 = vpop.f32.mrb[0].mxu0
        %v2954 = vadd.f32 0.0, %v2953
        %v2955 = vpop.f32.mrb[0].mxu0
        %2956 = vmatprep.mubr.f32.mxu0 0.0
        %2957 = vmatmul.mubr.f32.gmra.mrb[0].mxu0 %v1925
        %v2958 = vpop.f32.mrb[0].mxu0
        %v2959 = vadd.f32 0.0, %v2958
        %v2960 = vpop.f32.mrb[0].mxu0
        %2961 = vmatprep.mubr.f32.mxu0 0.0
        %2962 = vmatmul.mubr.f32.gmra.mrb[0].mxu0 %v2742
        %v2963 = vpop.f32.mrb[0].mxu0
        %v2964 = vadd.f32 0.0, %v2963
        %v2965 = vpop.f32.mrb[0].mxu0
        %2966 = vmatprep.mubr.f32.mxu0 0.0
        %2967 = vmatmul.mubr.f32.gmra.mrb[0].mxu0 %v2745
        %v2968 = vpop.f32.mrb[0].mxu0
        %v2969 = vadd.f32 0.0, %v2968
        %v2970 = vpop.f32.mrb[0].mxu0
        %2971 = vdwg.mxu0
        %v2972 = vadd.f32 %v2701, %v2814
        %v2973 = vadd.f32 %v2702, %v2819
        %v2974 = vadd.f32 %v2703, %v2824
        %v2975 = vadd.f32 %v2704, %v2829
        %v2976 = vadd.f32 %v2705, %v2834
        %v2977 = vadd.f32 %v2706, %v2839
        %v2978 = vadd.f32 %v2707, %v2844
        %v2979 = vadd.f32 %v2708, %v2849
        %v2980 = vadd.f32 %v2709, %v2854
        %v2981 = vadd.f32 %v2710, %v2859
        %v2982 = vadd.f32 %v2711, %v2864
        %v2983 = vadd.f32 %v2712, %v2869
        %v2984 = vadd.f32 %v2713, %v2874
        %v2985 = vadd.f32 %v2714, %v2879
        %v2986 = vadd.f32 %v2715, %v2884
        %v2987 = vadd.f32 %v2716, %v2889
        %v2988 = vadd.f32 %v2717, %v2894
        %v2989 = vadd.f32 %v2718, %v2899
        %v2990 = vadd.f32 %v2719, %v2904
        %v2991 = vadd.f32 %v2720, %v2909
        %v2992 = vadd.f32 %v2721, %v2914
        %v2993 = vadd.f32 %v2722, %v2919
        %v2994 = vadd.f32 %v2723, %v2924
        %v2995 = vadd.f32 %v2724, %v2929
        %v2996 = vadd.f32 %v2725, %v2934
        %v2997 = vadd.f32 %v2726, %v2939
        %v2998 = vadd.f32 %v2727, %v2944
        %v2999 = vadd.f32 %v2728, %v2949
        %v3000 = vadd.f32 %v2729, %v2954
        %v3001 = vadd.f32 %v2730, %v2959
        %v3002 = vadd.f32 %v2731, %v2964
        %v3003 = vadd.f32 %v2732, %v2969
        %v3005 = vrot.slane %v777, 1
        %v3006 = vrot.slane %v778, 1
        %v3007 = vsel %vm836, %v3005, %v3006
        %v3008 = vrot.slane %v779, 1
        %v3009 = vsel %vm836, %v3006, %v3008
        %v3010 = vld [vmem:[%s3 + $0x1c0] sm:$0xff]
        %v3011 = vld [vmem:[%s3 + $0x1c8] sm:$0xff]
        %v3012 = vld [vmem:[%s3 + $0x1d0] sm:$0xff]
        %v3013 = vld [vmem:[%s3 + $0x1d8] sm:$0xff]
        %v3014 = vld [vmem:[%s3 + $0x1e0] sm:$0xff]
        %v3015 = vld [vmem:[%s3 + $0x1e8] sm:$0xff]
        %v3016 = vld [vmem:[%s3 + $0x1f0] sm:$0xff]
        %v3017 = vld [vmem:[%s3 + $0x1f8] sm:$0xff]
        %v3018 = vsel %vm637, %v3007, 0
        %v3020 = vsel %vm637, %v3009, 0
        %3022 = vmatprep.subr.mxu0 0.0
        %3023 = vmatpush1.msra.mxu0 %v3010
        %3024 = vmatprep.subr.mxu0 0.0
        %3025 = vmatpush1.msra.mxu0 %v3011
        %3026 = vmatprep.subr.mxu0 0.0
        %3027 = vmatpush1.msra.mxu0 %v3012
        %3028 = vmatprep.subr.mxu0 0.0
        %3029 = vmatpush1.msra.mxu0 %v3013
        %3030 = vmatprep.subr.mxu0 0.0
        %3031 = vmatpush1.msra.mxu0 %v3014
        %3032 = vmatprep.subr.mxu0 0.0
        %3033 = vmatpush1.msra.mxu0 %v3015
        %3034 = vmatprep.subr.mxu0 0.0
        %3035 = vmatpush1.msra.mxu0 %v3016
        %3036 = vmatprep.subr.mxu0 0.0
        %3037 = vmatpush1.msra.mxu0 %v3017
        %3038 = vmatprep.subr.mxu0 0.0
        %3039 = vmatpush1.msra.mxu0 0.0
        %3040 = vmatprep.subr.mxu0 0.0
        %3041 = vmatpush1.msra.mxu0 0.0
        %3042 = vmatprep.subr.mxu0 0.0
        %3043 = vmatpush1.msra.mxu0 0.0
        %3044 = vmatprep.subr.mxu0 0.0
        %3045 = vmatpush1.msra.mxu0 0.0
        %3046 = vmatprep.subr.mxu0 0.0
        %3047 = vmatpush1.msra.mxu0 0.0
        %3048 = vmatprep.subr.mxu0 0.0
        %3049 = vmatpush1.msra.mxu0 0.0
        %3050 = vmatprep.subr.mxu0 0.0
        %3051 = vmatpush1.msra.mxu0 0.0
        %3052 = vmatprep.subr.mxu0 0.0
        %3053 = vmatpush1.msra.mxu0 0.0
        %3054 = vmatprep.subr.mxu0 0.0
        %3055 = vmatpush1.msra.mxu0 0.0
        %3056 = vmatprep.subr.mxu0 0.0
        %3057 = vmatpush1.msra.mxu0 0.0
        %3058 = vmatprep.subr.mxu0 0.0
        %3059 = vmatpush1.msra.mxu0 0.0
        %3060 = vmatprep.subr.mxu0 0.0
        %3061 = vmatpush1.msra.mxu0 0.0
        %3062 = vmatprep.subr.mxu0 0.0
        %3063 = vmatpush1.msra.mxu0 0.0
        %3064 = vmatprep.subr.mxu0 0.0
        %3065 = vmatpush1.msra.mxu0 0.0
        %3066 = vmatprep.subr.mxu0 0.0
        %3067 = vmatpush1.msra.mxu0 0.0
        %3068 = vmatprep.subr.mxu0 0.0
        %3069 = vmatpush1.msra.mxu0 0.0
        %3070 = vmatprep.subr.mxu0 0.0
        %3071 = vmatpush1.msra.mxu0 0.0
        %3072 = vmatprep.subr.mxu0 0.0
        %3073 = vmatpush1.msra.mxu0 0.0
        %3074 = vmatprep.subr.mxu0 0.0
        %3075 = vmatpush1.msra.mxu0 0.0
        %3076 = vmatprep.subr.mxu0 0.0
        %3077 = vmatpush1.msra.mxu0 0.0
        %3078 = vmatprep.subr.mxu0 0.0
        %3079 = vmatpush1.msra.mxu0 0.0
        %3080 = vmatprep.subr.mxu0 0.0
        %3081 = vmatpush1.msra.mxu0 0.0
        %3082 = vmatprep.subr.mxu0 0.0
        %3083 = vmatpush1.msra.mxu0 0.0
        %3084 = vmatprep.subr.mxu0 0.0
        %3085 = vmatpush1.msra.mxu0 0.0
        %3086 = vmatprep.mubr.f32.mxu0 0.0
        %3087 = vmatmul.mubr.f32.gmra.mrb[0].mxu0 %v933
        %v3088 = vpop.f32.mrb[0].mxu0
        %v3089 = vadd.f32 0.0, %v3088
        %v3090 = vpop.f32.mrb[0].mxu0
        %3091 = vmatprep.mubr.f32.mxu0 0.0
        %3092 = vmatmul.mubr.f32.gmra.mrb[0].mxu0 %v935
        %v3093 = vpop.f32.mrb[0].mxu0
        %v3094 = vadd.f32 0.0, %v3093
        %v3095 = vpop.f32.mrb[0].mxu0
        %3096 = vmatprep.mubr.f32.mxu0 0.0
        %3097 = vmatmul.mubr.f32.gmra.mrb[0].mxu0 %v937
        %v3098 = vpop.f32.mrb[0].mxu0
        %v3099 = vadd.f32 0.0, %v3098
        %v3100 = vpop.f32.mrb[0].mxu0
        %3101 = vmatprep.mubr.f32.mxu0 0.0
        %3102 = vmatmul.mubr.f32.gmra.mrb[0].mxu0 %v939
        %v3103 = vpop.f32.mrb[0].mxu0
        %v3104 = vadd.f32 0.0, %v3103
        %v3105 = vpop.f32.mrb[0].mxu0
        %3106 = vmatprep.mubr.f32.mxu0 0.0
        %3107 = vmatmul.mubr.f32.gmra.mrb[0].mxu0 %v941
        %v3108 = vpop.f32.mrb[0].mxu0
        %v3109 = vadd.f32 0.0, %v3108
        %v3110 = vpop.f32.mrb[0].mxu0
        %3111 = vmatprep.mubr.f32.mxu0 0.0
        %3112 = vmatmul.mubr.f32.gmra.mrb[0].mxu0 %v943
        %v3113 = vpop.f32.mrb[0].mxu0
        %v3114 = vadd.f32 0.0, %v3113
        %v3115 = vpop.f32.mrb[0].mxu0
        %3116 = vmatprep.mubr.f32.mxu0 0.0
        %3117 = vmatmul.mubr.f32.gmra.mrb[0].mxu0 %v945
        %v3118 = vpop.f32.mrb[0].mxu0
        %v3119 = vadd.f32 0.0, %v3118
        %v3120 = vpop.f32.mrb[0].mxu0
        %3121 = vmatprep.mubr.f32.mxu0 0.0
        %3122 = vmatmul.mubr.f32.gmra.mrb[0].mxu0 %v947
        %v3123 = vpop.f32.mrb[0].mxu0
        %v3124 = vadd.f32 0.0, %v3123
        %v3125 = vpop.f32.mrb[0].mxu0
        %3126 = vmatprep.mubr.f32.mxu0 0.0
        %3127 = vmatmul.mubr.f32.gmra.mrb[0].mxu0 %v949
        %v3128 = vpop.f32.mrb[0].mxu0
        %v3129 = vadd.f32 0.0, %v3128
        %v3130 = vpop.f32.mrb[0].mxu0
        %3131 = vmatprep.mubr.f32.mxu0 0.0
        %3132 = vmatmul.mubr.f32.gmra.mrb[0].mxu0 %v951
        %v3133 = vpop.f32.mrb[0].mxu0
        %v3134 = vadd.f32 0.0, %v3133
        %v3135 = vpop.f32.mrb[0].mxu0
        %3136 = vmatprep.mubr.f32.mxu0 0.0
        %3137 = vmatmul.mubr.f32.gmra.mrb[0].mxu0 %v953
        %v3138 = vpop.f32.mrb[0].mxu0
        %v3139 = vadd.f32 0.0, %v3138
        %v3140 = vpop.f32.mrb[0].mxu0
        %3141 = vmatprep.mubr.f32.mxu0 0.0
        %3142 = vmatmul.mubr.f32.gmra.mrb[0].mxu0 %v955
        %v3143 = vpop.f32.mrb[0].mxu0
        %v3144 = vadd.f32 0.0, %v3143
        %v3145 = vpop.f32.mrb[0].mxu0
        %3146 = vmatprep.mubr.f32.mxu0 0.0
        %3147 = vmatmul.mubr.f32.gmra.mrb[0].mxu0 %v957
        %v3148 = vpop.f32.mrb[0].mxu0
        %v3149 = vadd.f32 0.0, %v3148
        %v3150 = vpop.f32.mrb[0].mxu0
        %3151 = vmatprep.mubr.f32.mxu0 0.0
        %3152 = vmatmul.mubr.f32.gmra.mrb[0].mxu0 %v959
        %v3153 = vpop.f32.mrb[0].mxu0
        %v3154 = vadd.f32 0.0, %v3153
        %v3155 = vpop.f32.mrb[0].mxu0
        %3156 = vmatprep.mubr.f32.mxu0 0.0
        %3157 = vmatmul.mubr.f32.gmra.mrb[0].mxu0 %v961
        %v3158 = vpop.f32.mrb[0].mxu0
        %v3159 = vadd.f32 0.0, %v3158
        %v3160 = vpop.f32.mrb[0].mxu0
        %3161 = vmatprep.mubr.f32.mxu0 0.0
        %3162 = vmatmul.mubr.f32.gmra.mrb[0].mxu0 %v963
        %v3163 = vpop.f32.mrb[0].mxu0
        %v3164 = vadd.f32 0.0, %v3163
        %v3165 = vpop.f32.mrb[0].mxu0
        %3166 = vmatprep.mubr.f32.mxu0 0.0
        %3167 = vmatmul.mubr.f32.gmra.mrb[0].mxu0 %v965
        %v3168 = vpop.f32.mrb[0].mxu0
        %v3169 = vadd.f32 0.0, %v3168
        %v3170 = vpop.f32.mrb[0].mxu0
        %3171 = vmatprep.mubr.f32.mxu0 0.0
        %3172 = vmatmul.mubr.f32.gmra.mrb[0].mxu0 %v967
        %v3173 = vpop.f32.mrb[0].mxu0
        %v3174 = vadd.f32 0.0, %v3173
        %v3175 = vpop.f32.mrb[0].mxu0
        %3176 = vmatprep.mubr.f32.mxu0 0.0
        %3177 = vmatmul.mubr.f32.gmra.mrb[0].mxu0 %v969
        %v3178 = vpop.f32.mrb[0].mxu0
        %v3179 = vadd.f32 0.0, %v3178
        %v3180 = vpop.f32.mrb[0].mxu0
        %3181 = vmatprep.mubr.f32.mxu0 0.0
        %3182 = vmatmul.mubr.f32.gmra.mrb[0].mxu0 %v971
        %v3183 = vpop.f32.mrb[0].mxu0
        %v3184 = vadd.f32 0.0, %v3183
        %v3185 = vpop.f32.mrb[0].mxu0
        %3186 = vmatprep.mubr.f32.mxu0 0.0
        %3187 = vmatmul.mubr.f32.gmra.mrb[0].mxu0 %v973
        %v3188 = vpop.f32.mrb[0].mxu0
        %v3189 = vadd.f32 0.0, %v3188
        %v3190 = vpop.f32.mrb[0].mxu0
        %3191 = vmatprep.mubr.f32.mxu0 0.0
        %3192 = vmatmul.mubr.f32.gmra.mrb[0].mxu0 %v975
        %v3193 = vpop.f32.mrb[0].mxu0
        %v3194 = vadd.f32 0.0, %v3193
        %v3195 = vpop.f32.mrb[0].mxu0
        %3196 = vmatprep.mubr.f32.mxu0 0.0
        %3197 = vmatmul.mubr.f32.gmra.mrb[0].mxu0 %v977
        %v3198 = vpop.f32.mrb[0].mxu0
        %v3199 = vadd.f32 0.0, %v3198
        %v3200 = vpop.f32.mrb[0].mxu0
        %3201 = vmatprep.mubr.f32.mxu0 0.0
        %3202 = vmatmul.mubr.f32.gmra.mrb[0].mxu0 %v979
        %v3203 = vpop.f32.mrb[0].mxu0
        %v3204 = vadd.f32 0.0, %v3203
        %v3205 = vpop.f32.mrb[0].mxu0
        %3206 = vmatprep.mubr.f32.mxu0 0.0
        %3207 = vmatmul.mubr.f32.gmra.mrb[0].mxu0 %v981
        %v3208 = vpop.f32.mrb[0].mxu0
        %v3209 = vadd.f32 0.0, %v3208
        %v3210 = vpop.f32.mrb[0].mxu0
        %3211 = vmatprep.mubr.f32.mxu0 0.0
        %3212 = vmatmul.mubr.f32.gmra.mrb[0].mxu0 %v983
        %v3213 = vpop.f32.mrb[0].mxu0
        %v3214 = vadd.f32 0.0, %v3213
        %v3215 = vpop.f32.mrb[0].mxu0
        %3216 = vmatprep.mubr.f32.mxu0 0.0
        %3217 = vmatmul.mubr.f32.gmra.mrb[0].mxu0 %v985
        %v3218 = vpop.f32.mrb[0].mxu0
        %v3219 = vadd.f32 0.0, %v3218
        %v3220 = vpop.f32.mrb[0].mxu0
        %3221 = vmatprep.mubr.f32.mxu0 0.0
        %3222 = vmatmul.mubr.f32.gmra.mrb[0].mxu0 %v987
        %v3223 = vpop.f32.mrb[0].mxu0
        %v3224 = vadd.f32 0.0, %v3223
        %v3225 = vpop.f32.mrb[0].mxu0
        %3226 = vmatprep.mubr.f32.mxu0 0.0
        %3227 = vmatmul.mubr.f32.gmra.mrb[0].mxu0 %v2198
        %v3228 = vpop.f32.mrb[0].mxu0
        %v3229 = vadd.f32 0.0, %v3228
        %v3230 = vpop.f32.mrb[0].mxu0
        %3231 = vmatprep.mubr.f32.mxu0 0.0
        %3232 = vmatmul.mubr.f32.gmra.mrb[0].mxu0 %v2200
        %v3233 = vpop.f32.mrb[0].mxu0
        %v3234 = vadd.f32 0.0, %v3233
        %v3235 = vpop.f32.mrb[0].mxu0
        %3236 = vmatprep.mubr.f32.mxu0 0.0
        %3237 = vmatmul.mubr.f32.gmra.mrb[0].mxu0 %v3018
        %v3238 = vpop.f32.mrb[0].mxu0
        %v3239 = vadd.f32 0.0, %v3238
        %v3240 = vpop.f32.mrb[0].mxu0
        %3241 = vmatprep.mubr.f32.mxu0 0.0
        %3242 = vmatmul.mubr.f32.gmra.mrb[0].mxu0 %v3020
        %v3243 = vpop.f32.mrb[0].mxu0
        %v3244 = vadd.f32 0.0, %v3243
        %v3245 = vpop.f32.mrb[0].mxu0
        %3246 = vdwg.mxu0
        %v3247 = vadd.f32 %v2972, %v3089
        %v3248 = vadd.f32 %v2973, %v3094
        %v3249 = vadd.f32 %v2974, %v3099
        %v3250 = vadd.f32 %v2975, %v3104
        %v3251 = vadd.f32 %v2976, %v3109
        %v3252 = vadd.f32 %v2977, %v3114
        %v3253 = vadd.f32 %v2978, %v3119
        %v3254 = vadd.f32 %v2979, %v3124
        %v3255 = vadd.f32 %v2980, %v3129
        %v3256 = vadd.f32 %v2981, %v3134
        %v3257 = vadd.f32 %v2982, %v3139
        %v3258 = vadd.f32 %v2983, %v3144
        %v3259 = vadd.f32 %v2984, %v3149
        %v3260 = vadd.f32 %v2985, %v3154
        %v3261 = vadd.f32 %v2986, %v3159
        %v3262 = vadd.f32 %v2987, %v3164
        %v3263 = vadd.f32 %v2988, %v3169
        %v3264 = vadd.f32 %v2989, %v3174
        %v3265 = vadd.f32 %v2990, %v3179
        %v3266 = vadd.f32 %v2991, %v3184
        %v3267 = vadd.f32 %v2992, %v3189
        %v3268 = vadd.f32 %v2993, %v3194
        %v3269 = vadd.f32 %v2994, %v3199
        %v3270 = vadd.f32 %v2995, %v3204
        %v3271 = vadd.f32 %v2996, %v3209
        %v3272 = vadd.f32 %v2997, %v3214
        %v3273 = vadd.f32 %v2998, %v3219
        %v3274 = vadd.f32 %v2999, %v3224
        %v3275 = vadd.f32 %v3000, %v3229
        %v3276 = vadd.f32 %v3001, %v3234
        %v3277 = vadd.f32 %v3002, %v3239
        %v3278 = vadd.f32 %v3003, %v3244
        %v3279 = vrot.slane %v777, 2
        %v3280 = vrot.slane %v778, 2
        %v3281 = vsel %vm1503, %v3279, %v3280
        %v3282 = vrot.slane %v779, 2
        %v3283 = vsel %vm1503, %v3280, %v3282
        %v3284 = vld [vmem:[%s3 + $0x200] sm:$0xff]
        %v3285 = vld [vmem:[%s3 + $0x208] sm:$0xff]
        %v3286 = vld [vmem:[%s3 + $0x210] sm:$0xff]
        %v3287 = vld [vmem:[%s3 + $0x218] sm:$0xff]
        %v3288 = vld [vmem:[%s3 + $0x220] sm:$0xff]
        %v3289 = vld [vmem:[%s3 + $0x228] sm:$0xff]
        %v3290 = vld [vmem:[%s3 + $0x230] sm:$0xff]
        %v3291 = vld [vmem:[%s3 + $0x238] sm:$0xff]
        %v3292 = vsel %vm637, %v3281, 0
        %v3294 = vsel %vm637, %v3283, 0
        %3296 = vmatprep.subr.mxu0 0.0
        %3297 = vmatpush1.msra.mxu0 %v3284
        %3298 = vmatprep.subr.mxu0 0.0
        %3299 = vmatpush1.msra.mxu0 %v3285
        %3300 = vmatprep.subr.mxu0 0.0
        %3301 = vmatpush1.msra.mxu0 %v3286
        %3302 = vmatprep.subr.mxu0 0.0
        %3303 = vmatpush1.msra.mxu0 %v3287
        %3304 = vmatprep.subr.mxu0 0.0
        %3305 = vmatpush1.msra.mxu0 %v3288
        %3306 = vmatprep.subr.mxu0 0.0
        %3307 = vmatpush1.msra.mxu0 %v3289
        %3308 = vmatprep.subr.mxu0 0.0
        %3309 = vmatpush1.msra.mxu0 %v3290
        %3310 = vmatprep.subr.mxu0 0.0
        %3311 = vmatpush1.msra.mxu0 %v3291
        %3312 = vmatprep.subr.mxu0 0.0
        %3313 = vmatpush1.msra.mxu0 0.0
        %3314 = vmatprep.subr.mxu0 0.0
        %3315 = vmatpush1.msra.mxu0 0.0
        %3316 = vmatprep.subr.mxu0 0.0
        %3317 = vmatpush1.msra.mxu0 0.0
        %3318 = vmatprep.subr.mxu0 0.0
        %3319 = vmatpush1.msra.mxu0 0.0
        %3320 = vmatprep.subr.mxu0 0.0
        %3321 = vmatpush1.msra.mxu0 0.0
        %3322 = vmatprep.subr.mxu0 0.0
        %3323 = vmatpush1.msra.mxu0 0.0
        %3324 = vmatprep.subr.mxu0 0.0
        %3325 = vmatpush1.msra.mxu0 0.0
        %3326 = vmatprep.subr.mxu0 0.0
        %3327 = vmatpush1.msra.mxu0 0.0
        %3328 = vmatprep.subr.mxu0 0.0
        %3329 = vmatpush1.msra.mxu0 0.0
        %3330 = vmatprep.subr.mxu0 0.0
        %3331 = vmatpush1.msra.mxu0 0.0
        %3332 = vmatprep.subr.mxu0 0.0
        %3333 = vmatpush1.msra.mxu0 0.0
        %3334 = vmatprep.subr.mxu0 0.0
        %3335 = vmatpush1.msra.mxu0 0.0
        %3336 = vmatprep.subr.mxu0 0.0
        %3337 = vmatpush1.msra.mxu0 0.0
        %3338 = vmatprep.subr.mxu0 0.0
        %3339 = vmatpush1.msra.mxu0 0.0
        %3340 = vmatprep.subr.mxu0 0.0
        %3341 = vmatpush1.msra.mxu0 0.0
        %3342 = vmatprep.subr.mxu0 0.0
        %3343 = vmatpush1.msra.mxu0 0.0
        %3344 = vmatprep.subr.mxu0 0.0
        %3345 = vmatpush1.msra.mxu0 0.0
        %3346 = vmatprep.subr.mxu0 0.0
        %3347 = vmatpush1.msra.mxu0 0.0
        %3348 = vmatprep.subr.mxu0 0.0
        %3349 = vmatpush1.msra.mxu0 0.0
        %3350 = vmatprep.subr.mxu0 0.0
        %3351 = vmatpush1.msra.mxu0 0.0
        %3352 = vmatprep.subr.mxu0 0.0
        %3353 = vmatpush1.msra.mxu0 0.0
        %3354 = vmatprep.subr.mxu0 0.0
        %3355 = vmatpush1.msra.mxu0 0.0
        %3356 = vmatprep.subr.mxu0 0.0
        %3357 = vmatpush1.msra.mxu0 0.0
        %3358 = vmatprep.subr.mxu0 0.0
        %3359 = vmatpush1.msra.mxu0 0.0
        %3360 = vmatprep.mubr.f32.mxu0 0.0
        %3361 = vmatmul.mubr.f32.gmra.mrb[0].mxu0 %v1600
        %v3362 = vpop.f32.mrb[0].mxu0
        %v3363 = vadd.f32 0.0, %v3362
        %v3364 = vpop.f32.mrb[0].mxu0
        %3365 = vmatprep.mubr.f32.mxu0 0.0
        %3366 = vmatmul.mubr.f32.gmra.mrb[0].mxu0 %v1602
        %v3367 = vpop.f32.mrb[0].mxu0
        %v3368 = vadd.f32 0.0, %v3367
        %v3369 = vpop.f32.mrb[0].mxu0
        %3370 = vmatprep.mubr.f32.mxu0 0.0
        %3371 = vmatmul.mubr.f32.gmra.mrb[0].mxu0 %v1604
        %v3372 = vpop.f32.mrb[0].mxu0
        %v3373 = vadd.f32 0.0, %v3372
        %v3374 = vpop.f32.mrb[0].mxu0
        %3375 = vmatprep.mubr.f32.mxu0 0.0
        %3376 = vmatmul.mubr.f32.gmra.mrb[0].mxu0 %v1606
        %v3377 = vpop.f32.mrb[0].mxu0
        %v3378 = vadd.f32 0.0, %v3377
        %v3379 = vpop.f32.mrb[0].mxu0
        %3380 = vmatprep.mubr.f32.mxu0 0.0
        %3381 = vmatmul.mubr.f32.gmra.mrb[0].mxu0 %v1608
        %v3382 = vpop.f32.mrb[0].mxu0
        %v3383 = vadd.f32 0.0, %v3382
        %v3384 = vpop.f32.mrb[0].mxu0
        %3385 = vmatprep.mubr.f32.mxu0 0.0
        %3386 = vmatmul.mubr.f32.gmra.mrb[0].mxu0 %v1610
        %v3387 = vpop.f32.mrb[0].mxu0
        %v3388 = vadd.f32 0.0, %v3387
        %v3389 = vpop.f32.mrb[0].mxu0
        %3390 = vmatprep.mubr.f32.mxu0 0.0
        %3391 = vmatmul.mubr.f32.gmra.mrb[0].mxu0 %v1612
        %v3392 = vpop.f32.mrb[0].mxu0
        %v3393 = vadd.f32 0.0, %v3392
        %v3394 = vpop.f32.mrb[0].mxu0
        %3395 = vmatprep.mubr.f32.mxu0 0.0
        %3396 = vmatmul.mubr.f32.gmra.mrb[0].mxu0 %v1614
        %v3397 = vpop.f32.mrb[0].mxu0
        %v3398 = vadd.f32 0.0, %v3397
        %v3399 = vpop.f32.mrb[0].mxu0
        %3400 = vmatprep.mubr.f32.mxu0 0.0
        %3401 = vmatmul.mubr.f32.gmra.mrb[0].mxu0 %v1616
        %v3402 = vpop.f32.mrb[0].mxu0
        %v3403 = vadd.f32 0.0, %v3402
        %v3404 = vpop.f32.mrb[0].mxu0
        %3405 = vmatprep.mubr.f32.mxu0 0.0
        %3406 = vmatmul.mubr.f32.gmra.mrb[0].mxu0 %v1618
        %v3407 = vpop.f32.mrb[0].mxu0
        %v3408 = vadd.f32 0.0, %v3407
        %v3409 = vpop.f32.mrb[0].mxu0
        %3410 = vmatprep.mubr.f32.mxu0 0.0
        %3411 = vmatmul.mubr.f32.gmra.mrb[0].mxu0 %v1620
        %v3412 = vpop.f32.mrb[0].mxu0
        %v3413 = vadd.f32 0.0, %v3412
        %v3414 = vpop.f32.mrb[0].mxu0
        %3415 = vmatprep.mubr.f32.mxu0 0.0
        %3416 = vmatmul.mubr.f32.gmra.mrb[0].mxu0 %v1622
        %v3417 = vpop.f32.mrb[0].mxu0
        %v3418 = vadd.f32 0.0, %v3417
        %v3419 = vpop.f32.mrb[0].mxu0
        %3420 = vmatprep.mubr.f32.mxu0 0.0
        %3421 = vmatmul.mubr.f32.gmra.mrb[0].mxu0 %v1624
        %v3422 = vpop.f32.mrb[0].mxu0
        %v3423 = vadd.f32 0.0, %v3422
        %v3424 = vpop.f32.mrb[0].mxu0
        %3425 = vmatprep.mubr.f32.mxu0 0.0
        %3426 = vmatmul.mubr.f32.gmra.mrb[0].mxu0 %v1626
        %v3427 = vpop.f32.mrb[0].mxu0
        %v3428 = vadd.f32 0.0, %v3427
        %v3429 = vpop.f32.mrb[0].mxu0
        %3430 = vmatprep.mubr.f32.mxu0 0.0
        %3431 = vmatmul.mubr.f32.gmra.mrb[0].mxu0 %v1628
        %v3432 = vpop.f32.mrb[0].mxu0
        %v3433 = vadd.f32 0.0, %v3432
        %v3434 = vpop.f32.mrb[0].mxu0
        %3435 = vmatprep.mubr.f32.mxu0 0.0
        %3436 = vmatmul.mubr.f32.gmra.mrb[0].mxu0 %v1630
        %v3437 = vpop.f32.mrb[0].mxu0
        %v3438 = vadd.f32 0.0, %v3437
        %v3439 = vpop.f32.mrb[0].mxu0
        %3440 = vmatprep.mubr.f32.mxu0 0.0
        %3441 = vmatmul.mubr.f32.gmra.mrb[0].mxu0 %v1632
        %v3442 = vpop.f32.mrb[0].mxu0
        %v3443 = vadd.f32 0.0, %v3442
        %v3444 = vpop.f32.mrb[0].mxu0
        %3445 = vmatprep.mubr.f32.mxu0 0.0
        %3446 = vmatmul.mubr.f32.gmra.mrb[0].mxu0 %v1634
        %v3447 = vpop.f32.mrb[0].mxu0
        %v3448 = vadd.f32 0.0, %v3447
        %v3449 = vpop.f32.mrb[0].mxu0
        %3450 = vmatprep.mubr.f32.mxu0 0.0
        %3451 = vmatmul.mubr.f32.gmra.mrb[0].mxu0 %v1636
        %v3452 = vpop.f32.mrb[0].mxu0
        %v3453 = vadd.f32 0.0, %v3452
        %v3454 = vpop.f32.mrb[0].mxu0
        %3455 = vmatprep.mubr.f32.mxu0 0.0
        %3456 = vmatmul.mubr.f32.gmra.mrb[0].mxu0 %v1638
        %v3457 = vpop.f32.mrb[0].mxu0
        %v3458 = vadd.f32 0.0, %v3457
        %v3459 = vpop.f32.mrb[0].mxu0
        %3460 = vmatprep.mubr.f32.mxu0 0.0
        %3461 = vmatmul.mubr.f32.gmra.mrb[0].mxu0 %v1640
        %v3462 = vpop.f32.mrb[0].mxu0
        %v3463 = vadd.f32 0.0, %v3462
        %v3464 = vpop.f32.mrb[0].mxu0
        %3465 = vmatprep.mubr.f32.mxu0 0.0
        %3466 = vmatmul.mubr.f32.gmra.mrb[0].mxu0 %v1642
        %v3467 = vpop.f32.mrb[0].mxu0
        %v3468 = vadd.f32 0.0, %v3467
        %v3469 = vpop.f32.mrb[0].mxu0
        %3470 = vmatprep.mubr.f32.mxu0 0.0
        %3471 = vmatmul.mubr.f32.gmra.mrb[0].mxu0 %v1644
        %v3472 = vpop.f32.mrb[0].mxu0
        %v3473 = vadd.f32 0.0, %v3472
        %v3474 = vpop.f32.mrb[0].mxu0
        %3475 = vmatprep.mubr.f32.mxu0 0.0
        %3476 = vmatmul.mubr.f32.gmra.mrb[0].mxu0 %v1646
        %v3477 = vpop.f32.mrb[0].mxu0
        %v3478 = vadd.f32 0.0, %v3477
        %v3479 = vpop.f32.mrb[0].mxu0
        %3480 = vmatprep.mubr.f32.mxu0 0.0
        %3481 = vmatmul.mubr.f32.gmra.mrb[0].mxu0 %v1648
        %v3482 = vpop.f32.mrb[0].mxu0
        %v3483 = vadd.f32 0.0, %v3482
        %v3484 = vpop.f32.mrb[0].mxu0
        %3485 = vmatprep.mubr.f32.mxu0 0.0
        %3486 = vmatmul.mubr.f32.gmra.mrb[0].mxu0 %v1650
        %v3487 = vpop.f32.mrb[0].mxu0
        %v3488 = vadd.f32 0.0, %v3487
        %v3489 = vpop.f32.mrb[0].mxu0
        %3490 = vmatprep.mubr.f32.mxu0 0.0
        %3491 = vmatmul.mubr.f32.gmra.mrb[0].mxu0 %v1652
        %v3492 = vpop.f32.mrb[0].mxu0
        %v3493 = vadd.f32 0.0, %v3492
        %v3494 = vpop.f32.mrb[0].mxu0
        %3495 = vmatprep.mubr.f32.mxu0 0.0
        %3496 = vmatmul.mubr.f32.gmra.mrb[0].mxu0 %v1654
        %v3497 = vpop.f32.mrb[0].mxu0
        %v3498 = vadd.f32 0.0, %v3497
        %v3499 = vpop.f32.mrb[0].mxu0
        %3500 = vmatprep.mubr.f32.mxu0 0.0
        %3501 = vmatmul.mubr.f32.gmra.mrb[0].mxu0 %v2472
        %v3502 = vpop.f32.mrb[0].mxu0
        %v3503 = vadd.f32 0.0, %v3502
        %v3504 = vpop.f32.mrb[0].mxu0
        %3505 = vmatprep.mubr.f32.mxu0 0.0
        %3506 = vmatmul.mubr.f32.gmra.mrb[0].mxu0 %v2474
        %v3507 = vpop.f32.mrb[0].mxu0
        %v3508 = vadd.f32 0.0, %v3507
        %v3509 = vpop.f32.mrb[0].mxu0
        %3510 = vmatprep.mubr.f32.mxu0 0.0
        %3511 = vmatmul.mubr.f32.gmra.mrb[0].mxu0 %v3292
        %v3512 = vpop.f32.mrb[0].mxu0
        %v3513 = vadd.f32 0.0, %v3512
        %v3514 = vpop.f32.mrb[0].mxu0
        %3515 = vmatprep.mubr.f32.mxu0 0.0
        %3516 = vmatmul.mubr.f32.gmra.mrb[0].mxu0 %v3294
        %v3517 = vpop.f32.mrb[0].mxu0
        %v3518 = vadd.f32 0.0, %v3517
        %v3519 = vpop.f32.mrb[0].mxu0
        %3520 = vdwg.mxu0
        %v3521 = vadd.f32 %v3247, %v3363
        %v3522 = vadd.f32 %v3248, %v3368
        %v3523 = vadd.f32 %v3249, %v3373
        %v3524 = vadd.f32 %v3250, %v3378
        %v3525 = vadd.f32 %v3251, %v3383
        %v3526 = vadd.f32 %v3252, %v3388
        %v3527 = vadd.f32 %v3253, %v3393
        %v3528 = vadd.f32 %v3254, %v3398
        %v3529 = vadd.f32 %v3255, %v3403
        %v3530 = vadd.f32 %v3256, %v3408
        %v3531 = vadd.f32 %v3257, %v3413
        %v3532 = vadd.f32 %v3258, %v3418
        %v3533 = vadd.f32 %v3259, %v3423
        %v3534 = vadd.f32 %v3260, %v3428
        %v3535 = vadd.f32 %v3261, %v3433
        %v3536 = vadd.f32 %v3262, %v3438
        %v3537 = vadd.f32 %v3263, %v3443
        %v3538 = vadd.f32 %v3264, %v3448
        %v3539 = vadd.f32 %v3265, %v3453
        %v3540 = vadd.f32 %v3266, %v3458
        %v3541 = vadd.f32 %v3267, %v3463
        %v3542 = vadd.f32 %v3268, %v3468
        %v3543 = vadd.f32 %v3269, %v3473
        %v3544 = vadd.f32 %v3270, %v3478
        %v3545 = vadd.f32 %v3271, %v3483
        %v3546 = vadd.f32 %v3272, %v3488
        %v3547 = vadd.f32 %v3273, %v3493
        %v3548 = vadd.f32 %v3274, %v3498
        %v3549 = vadd.f32 %v3275, %v3503
        %v3550 = vadd.f32 %v3276, %v3508
        %v3551 = vadd.f32 %v3277, %v3513
        %v3552 = vadd.f32 %v3278, %v3518
        %v3553 = vld [vmem:[%s4] sm:$0x1]
        %v3555 = vlaneseq
        %v3556 = vshrl.u32 %v3555, 7
        %v3557 = vsub.s32 0, %v3556
        %v3558 = vrot.slane %v3553, %v3557
        %v3560 = vadd.f32 %v3521, %v3558
        %v3561 = vadd.f32 %v3522, %v3558
        %v3562 = vadd.f32 %v3523, %v3558
        %v3563 = vadd.f32 %v3524, %v3558
        %v3564 = vadd.f32 %v3525, %v3558
        %v3565 = vadd.f32 %v3526, %v3558
        %v3566 = vadd.f32 %v3527, %v3558
        %v3567 = vadd.f32 %v3528, %v3558
        %v3568 = vadd.f32 %v3529, %v3558
        %v3569 = vadd.f32 %v3530, %v3558
        %v3570 = vadd.f32 %v3531, %v3558
        %v3571 = vadd.f32 %v3532, %v3558
        %v3572 = vadd.f32 %v3533, %v3558
        %v3573 = vadd.f32 %v3534, %v3558
        %v3574 = vadd.f32 %v3535, %v3558
        %v3575 = vadd.f32 %v3536, %v3558
        %v3576 = vadd.f32 %v3537, %v3558
        %v3577 = vadd.f32 %v3538, %v3558
        %v3578 = vadd.f32 %v3539, %v3558
        %v3579 = vadd.f32 %v3540, %v3558
        %v3580 = vadd.f32 %v3541, %v3558
        %v3581 = vadd.f32 %v3542, %v3558
        %v3582 = vadd.f32 %v3543, %v3558
        %v3583 = vadd.f32 %v3544, %v3558
        %v3584 = vadd.f32 %v3545, %v3558
        %v3585 = vadd.f32 %v3546, %v3558
        %v3586 = vadd.f32 %v3547, %v3558
        %v3587 = vadd.f32 %v3548, %v3558
        %v3588 = vadd.f32 %v3549, %v3558
        %v3589 = vadd.f32 %v3550, %v3558
        %v3590 = vadd.f32 %v3551, %v3558
        %v3591 = vadd.f32 %v3552, %v3558
        %v3592 = vmax.f32 %v3560, 0.0
        %v3593 = vmax.f32 %v3561, 0.0
        %v3594 = vmax.f32 %v3562, 0.0
        %v3595 = vmax.f32 %v3563, 0.0
        %v3596 = vmax.f32 %v3564, 0.0
        %v3597 = vmax.f32 %v3565, 0.0
        %v3598 = vmax.f32 %v3566, 0.0
        %v3599 = vmax.f32 %v3567, 0.0
        %v3600 = vmax.f32 %v3568, 0.0
        %v3601 = vmax.f32 %v3569, 0.0
        %v3602 = vmax.f32 %v3570, 0.0
        %v3603 = vmax.f32 %v3571, 0.0
        %v3604 = vmax.f32 %v3572, 0.0
        %v3605 = vmax.f32 %v3573, 0.0
        %v3606 = vmax.f32 %v3574, 0.0
        %v3607 = vmax.f32 %v3575, 0.0
        %v3608 = vmax.f32 %v3576, 0.0
        %v3609 = vmax.f32 %v3577, 0.0
        %v3610 = vmax.f32 %v3578, 0.0
        %v3611 = vmax.f32 %v3579, 0.0
        %v3612 = vmax.f32 %v3580, 0.0
        %v3613 = vmax.f32 %v3581, 0.0
        %v3614 = vmax.f32 %v3582, 0.0
        %v3615 = vmax.f32 %v3583, 0.0
        %v3616 = vmax.f32 %v3584, 0.0
        %v3617 = vmax.f32 %v3585, 0.0
        %v3618 = vmax.f32 %v3586, 0.0
        %v3619 = vmax.f32 %v3587, 0.0
        %v3620 = vmax.f32 %v3588, 0.0
        %v3621 = vmax.f32 %v3589, 0.0
        %v3622 = vmax.f32 %v3590, 0.0
        %v3623 = vmax.f32 %v3591, 0.0
        %v3624 = vld [vmem:[%s5] sm:$0xff]
        %v3625 = vld [vmem:[%s5 + $0x8] sm:$0xff]
        %v3626 = vld [vmem:[%s5 + $0x10] sm:$0xff]
        %v3627 = vld [vmem:[%s5 + $0x18] sm:$0xff]
        %v3628 = vld [vmem:[%s5 + $0x20] sm:$0xff]
        %v3629 = vld [vmem:[%s5 + $0x28] sm:$0xff]
        %v3630 = vld [vmem:[%s5 + $0x30] sm:$0xff]
        %v3631 = vld [vmem:[%s5 + $0x38] sm:$0xff]
        %v3632 = vld [vmem:[%s5 + $0x40] sm:$0xff]
        %v3633 = vld [vmem:[%s5 + $0x48] sm:$0xff]
        %v3634 = vld [vmem:[%s5 + $0x50] sm:$0xff]
        %v3635 = vld [vmem:[%s5 + $0x58] sm:$0xff]
        %v3636 = vld [vmem:[%s5 + $0x60] sm:$0xff]
        %v3637 = vld [vmem:[%s5 + $0x68] sm:$0xff]
        %v3638 = vld [vmem:[%s5 + $0x70] sm:$0xff]
        %v3639 = vld [vmem:[%s5 + $0x78] sm:$0xff]
        %v3640 = vld [vmem:[%s6] sm:$0x3]
        %v3642 = vlaneseq
        %v3643 = vshrl.u32 %v3642, 7
        %v3644 = vsub.s32 0, %v3643
        %v3645 = vrot.slane %v3640, %v3644
        %v3646 = vlaneseq
        %v3647 = vshrl.u32 %v3646, 7
        %v3648 = vsub.s32 1, %v3647
        %v3649 = vrot.slane %v3640, %v3648
        %v3653 = vsel %vm637, %v3592, 0
        %v3656 = vsel %vm637, %v3593, 0
        %v3659 = vsel %vm637, %v3594, 0
        %v3662 = vsel %vm637, %v3595, 0
        %v3665 = vsel %vm637, %v3596, 0
        %v3668 = vsel %vm637, %v3597, 0
        %v3671 = vsel %vm637, %v3598, 0
        %v3674 = vsel %vm637, %v3599, 0
        %v3677 = vsel %vm637, %v3600, 0
        %v3680 = vsel %vm637, %v3601, 0
        %v3683 = vsel %vm637, %v3602, 0
        %v3686 = vsel %vm637, %v3603, 0
        %v3689 = vsel %vm637, %v3604, 0
        %v3692 = vsel %vm637, %v3605, 0
        %v3695 = vsel %vm637, %v3606, 0
        %v3698 = vsel %vm637, %v3607, 0
        %v3701 = vsel %vm637, %v3608, 0
        %v3704 = vsel %vm637, %v3609, 0
        %v3707 = vsel %vm637, %v3610, 0
        %v3710 = vsel %vm637, %v3611, 0
        %v3713 = vsel %vm637, %v3612, 0
        %v3716 = vsel %vm637, %v3613, 0
        %v3719 = vsel %vm637, %v3614, 0
        %v3722 = vsel %vm637, %v3615, 0
        %v3725 = vsel %vm637, %v3616, 0
        %v3728 = vsel %vm637, %v3617, 0
        %v3731 = vsel %vm637, %v3618, 0
        %v3734 = vsel %vm637, %v3619, 0
        %v3737 = vsel %vm637, %v3620, 0
        %v3740 = vsel %vm637, %v3621, 0
        %v3743 = vsel %vm637, %v3622, 0
        %v3746 = vsel %vm637, %v3623, 0
        %3748 = vmatprep.subr.mxu0 %v3625
        %3749 = vmatpush1.msra.mxu0 %v3624
        %3750 = vmatprep.subr.mxu0 %v3627
        %3751 = vmatpush1.msra.mxu0 %v3626
        %3752 = vmatprep.subr.mxu0 %v3629
        %3753 = vmatpush1.msra.mxu0 %v3628
        %3754 = vmatprep.subr.mxu0 %v3631
        %3755 = vmatpush1.msra.mxu0 %v3630
        %3756 = vmatprep.subr.mxu0 %v3633
        %3757 = vmatpush1.msra.mxu0 %v3632
        %3758 = vmatprep.subr.mxu0 %v3635
        %3759 = vmatpush1.msra.mxu0 %v3634
        %3760 = vmatprep.subr.mxu0 %v3637
        %3761 = vmatpush1.msra.mxu0 %v3636
        %3762 = vmatprep.subr.mxu0 %v3639
        %3763 = vmatpush1.msra.mxu0 %v3638
        %3764 = vmatprep.subr.mxu0 0.0
        %3765 = vmatpush1.msra.mxu0 0.0
        %3766 = vmatprep.subr.mxu0 0.0
        %3767 = vmatpush1.msra.mxu0 0.0
        %3768 = vmatprep.subr.mxu0 0.0
        %3769 = vmatpush1.msra.mxu0 0.0
        %3770 = vmatprep.subr.mxu0 0.0
        %3771 = vmatpush1.msra.mxu0 0.0
        %3772 = vmatprep.subr.mxu0 0.0
        %3773 = vmatpush1.msra.mxu0 0.0
        %3774 = vmatprep.subr.mxu0 0.0
        %3775 = vmatpush1.msra.mxu0 0.0
        %3776 = vmatprep.subr.mxu0 0.0
        %3777 = vmatpush1.msra.mxu0 0.0
        %3778 = vmatprep.subr.mxu0 0.0
        %3779 = vmatpush1.msra.mxu0 0.0
        %3780 = vmatprep.subr.mxu0 0.0
        %3781 = vmatpush1.msra.mxu0 0.0
        %3782 = vmatprep.subr.mxu0 0.0
        %3783 = vmatpush1.msra.mxu0 0.0
        %3784 = vmatprep.subr.mxu0 0.0
        %3785 = vmatpush1.msra.mxu0 0.0
        %3786 = vmatprep.subr.mxu0 0.0
        %3787 = vmatpush1.msra.mxu0 0.0
        %3788 = vmatprep.subr.mxu0 0.0
        %3789 = vmatpush1.msra.mxu0 0.0
        %3790 = vmatprep.subr.mxu0 0.0
        %3791 = vmatpush1.msra.mxu0 0.0
        %3792 = vmatprep.subr.mxu0 0.0
        %3793 = vmatpush1.msra.mxu0 0.0
        %3794 = vmatprep.subr.mxu0 0.0
        %3795 = vmatpush1.msra.mxu0 0.0
        %3796 = vmatprep.subr.mxu0 0.0
        %3797 = vmatpush1.msra.mxu0 0.0
        %3798 = vmatprep.subr.mxu0 0.0
        %3799 = vmatpush1.msra.mxu0 0.0
        %3800 = vmatprep.subr.mxu0 0.0
        %3801 = vmatpush1.msra.mxu0 0.0
        %3802 = vmatprep.subr.mxu0 0.0
        %3803 = vmatpush1.msra.mxu0 0.0
        %3804 = vmatprep.subr.mxu0 0.0
        %3805 = vmatpush1.msra.mxu0 0.0
        %3806 = vmatprep.subr.mxu0 0.0
        %3807 = vmatpush1.msra.mxu0 0.0
        %3808 = vmatprep.subr.mxu0 0.0
        %3809 = vmatpush1.msra.mxu0 0.0
        %3810 = vmatprep.subr.mxu0 0.0
        %3811 = vmatpush1.msra.mxu0 0.0
        %3812 = vmatprep.mubr.f32.mxu0 0.0
        %3813 = vmatmul.mubr.f32.gmra.mrb[0].mxu0 %v3653
        %v3814 = vpop.f32.mrb[0].mxu0
        %v3815 = vadd.f32 %v3645, %v3814
        %v3816 = vpop.f32.mrb[0].mxu0
        %v3817 = vadd.f32 %v3649, %v3816
        %3818 = vmatprep.mubr.f32.mxu0 0.0
        %3819 = vmatmul.mubr.f32.gmra.mrb[0].mxu0 %v3656
        %v3820 = vpop.f32.mrb[0].mxu0
        %v3821 = vadd.f32 %v3645, %v3820
        %v3822 = vpop.f32.mrb[0].mxu0
        %v3823 = vadd.f32 %v3649, %v3822
        %3824 = vmatprep.mubr.f32.mxu0 0.0
        %3825 = vmatmul.mubr.f32.gmra.mrb[0].mxu0 %v3659
        %v3826 = vpop.f32.mrb[0].mxu0
        %v3827 = vadd.f32 %v3645, %v3826
        %v3828 = vpop.f32.mrb[0].mxu0
        %v3829 = vadd.f32 %v3649, %v3828
        %3830 = vmatprep.mubr.f32.mxu0 0.0
        %3831 = vmatmul.mubr.f32.gmra.mrb[0].mxu0 %v3662
        %v3832 = vpop.f32.mrb[0].mxu0
        %v3833 = vadd.f32 %v3645, %v3832
        %v3834 = vpop.f32.mrb[0].mxu0
        %v3835 = vadd.f32 %v3649, %v3834
        %3836 = vmatprep.mubr.f32.mxu0 0.0
        %3837 = vmatmul.mubr.f32.gmra.mrb[0].mxu0 %v3665
        %v3838 = vpop.f32.mrb[0].mxu0
        %v3839 = vadd.f32 %v3645, %v3838
        %v3840 = vpop.f32.mrb[0].mxu0
        %v3841 = vadd.f32 %v3649, %v3840
        %3842 = vmatprep.mubr.f32.mxu0 0.0
        %3843 = vmatmul.mubr.f32.gmra.mrb[0].mxu0 %v3668
        %v3844 = vpop.f32.mrb[0].mxu0
        %v3845 = vadd.f32 %v3645, %v3844
        %v3846 = vpop.f32.mrb[0].mxu0
        %v3847 = vadd.f32 %v3649, %v3846
        %3848 = vmatprep.mubr.f32.mxu0 0.0
        %3849 = vmatmul.mubr.f32.gmra.mrb[0].mxu0 %v3671
        %v3850 = vpop.f32.mrb[0].mxu0
        %v3851 = vadd.f32 %v3645, %v3850
        %v3852 = vpop.f32.mrb[0].mxu0
        %v3853 = vadd.f32 %v3649, %v3852
        %3854 = vmatprep.mubr.f32.mxu0 0.0
        %3855 = vmatmul.mubr.f32.gmra.mrb[0].mxu0 %v3674
        %v3856 = vpop.f32.mrb[0].mxu0
        %v3857 = vadd.f32 %v3645, %v3856
        %v3858 = vpop.f32.mrb[0].mxu0
        %v3859 = vadd.f32 %v3649, %v3858
        %3860 = vmatprep.mubr.f32.mxu0 0.0
        %3861 = vmatmul.mubr.f32.gmra.mrb[0].mxu0 %v3677
        %v3862 = vpop.f32.mrb[0].mxu0
        %v3863 = vadd.f32 %v3645, %v3862
        %v3864 = vpop.f32.mrb[0].mxu0
        %v3865 = vadd.f32 %v3649, %v3864
        %3866 = vmatprep.mubr.f32.mxu0 0.0
        %3867 = vmatmul.mubr.f32.gmra.mrb[0].mxu0 %v3680
        %v3868 = vpop.f32.mrb[0].mxu0
        %v3869 = vadd.f32 %v3645, %v3868
        %v3870 = vpop.f32.mrb[0].mxu0
        %v3871 = vadd.f32 %v3649, %v3870
        %3872 = vmatprep.mubr.f32.mxu0 0.0
        %3873 = vmatmul.mubr.f32.gmra.mrb[0].mxu0 %v3683
        %v3874 = vpop.f32.mrb[0].mxu0
        %v3875 = vadd.f32 %v3645, %v3874
        %v3876 = vpop.f32.mrb[0].mxu0
        %v3877 = vadd.f32 %v3649, %v3876
        %3878 = vmatprep.mubr.f32.mxu0 0.0
        %3879 = vmatmul.mubr.f32.gmra.mrb[0].mxu0 %v3686
        %v3880 = vpop.f32.mrb[0].mxu0
        %v3881 = vadd.f32 %v3645, %v3880
        %v3882 = vpop.f32.mrb[0].mxu0
        %v3883 = vadd.f32 %v3649, %v3882
        %3884 = vmatprep.mubr.f32.mxu0 0.0
        %3885 = vmatmul.mubr.f32.gmra.mrb[0].mxu0 %v3689
        %v3886 = vpop.f32.mrb[0].mxu0
        %v3887 = vadd.f32 %v3645, %v3886
        %v3888 = vpop.f32.mrb[0].mxu0
        %v3889 = vadd.f32 %v3649, %v3888
        %3890 = vmatprep.mubr.f32.mxu0 0.0
        %3891 = vmatmul.mubr.f32.gmra.mrb[0].mxu0 %v3692
        %v3892 = vpop.f32.mrb[0].mxu0
        %v3893 = vadd.f32 %v3645, %v3892
        %v3894 = vpop.f32.mrb[0].mxu0
        %v3895 = vadd.f32 %v3649, %v3894
        %3896 = vmatprep.mubr.f32.mxu0 0.0
        %3897 = vmatmul.mubr.f32.gmra.mrb[0].mxu0 %v3695
        %v3898 = vpop.f32.mrb[0].mxu0
        %v3899 = vadd.f32 %v3645, %v3898
        %v3900 = vpop.f32.mrb[0].mxu0
        %v3901 = vadd.f32 %v3649, %v3900
        %3902 = vmatprep.mubr.f32.mxu0 0.0
        %3903 = vmatmul.mubr.f32.gmra.mrb[0].mxu0 %v3698
        %v3904 = vpop.f32.mrb[0].mxu0
        %v3905 = vadd.f32 %v3645, %v3904
        %v3906 = vpop.f32.mrb[0].mxu0
        %v3907 = vadd.f32 %v3649, %v3906
        %3908 = vmatprep.mubr.f32.mxu0 0.0
        %3909 = vmatmul.mubr.f32.gmra.mrb[0].mxu0 %v3701
        %v3910 = vpop.f32.mrb[0].mxu0
        %v3911 = vadd.f32 %v3645, %v3910
        %v3912 = vpop.f32.mrb[0].mxu0
        %v3913 = vadd.f32 %v3649, %v3912
        %3914 = vmatprep.mubr.f32.mxu0 0.0
        %3915 = vmatmul.mubr.f32.gmra.mrb[0].mxu0 %v3704
        %v3916 = vpop.f32.mrb[0].mxu0
        %v3917 = vadd.f32 %v3645, %v3916
        %v3918 = vpop.f32.mrb[0].mxu0
        %v3919 = vadd.f32 %v3649, %v3918
        %3920 = vmatprep.mubr.f32.mxu0 0.0
        %3921 = vmatmul.mubr.f32.gmra.mrb[0].mxu0 %v3707
        %v3922 = vpop.f32.mrb[0].mxu0
        %v3923 = vadd.f32 %v3645, %v3922
        %v3924 = vpop.f32.mrb[0].mxu0
        %v3925 = vadd.f32 %v3649, %v3924
        %3926 = vmatprep.mubr.f32.mxu0 0.0
        %3927 = vmatmul.mubr.f32.gmra.mrb[0].mxu0 %v3710
        %v3928 = vpop.f32.mrb[0].mxu0
        %v3929 = vadd.f32 %v3645, %v3928
        %v3930 = vpop.f32.mrb[0].mxu0
        %v3931 = vadd.f32 %v3649, %v3930
        %3932 = vmatprep.mubr.f32.mxu0 0.0
        %3933 = vmatmul.mubr.f32.gmra.mrb[0].mxu0 %v3713
        %v3934 = vpop.f32.mrb[0].mxu0
        %v3935 = vadd.f32 %v3645, %v3934
        %v3936 = vpop.f32.mrb[0].mxu0
        %v3937 = vadd.f32 %v3649, %v3936
        %3938 = vmatprep.mubr.f32.mxu0 0.0
        %3939 = vmatmul.mubr.f32.gmra.mrb[0].mxu0 %v3716
        %v3940 = vpop.f32.mrb[0].mxu0
        %v3941 = vadd.f32 %v3645, %v3940
        %v3942 = vpop.f32.mrb[0].mxu0
        %v3943 = vadd.f32 %v3649, %v3942
        %3944 = vmatprep.mubr.f32.mxu0 0.0
        %3945 = vmatmul.mubr.f32.gmra.mrb[0].mxu0 %v3719
        %v3946 = vpop.f32.mrb[0].mxu0
        %v3947 = vadd.f32 %v3645, %v3946
        %v3948 = vpop.f32.mrb[0].mxu0
        %v3949 = vadd.f32 %v3649, %v3948
        %3950 = vmatprep.mubr.f32.mxu0 0.0
        %3951 = vmatmul.mubr.f32.gmra.mrb[0].mxu0 %v3722
        %v3952 = vpop.f32.mrb[0].mxu0
        %v3953 = vadd.f32 %v3645, %v3952
        %v3954 = vpop.f32.mrb[0].mxu0
        %v3955 = vadd.f32 %v3649, %v3954
        %3956 = vmatprep.mubr.f32.mxu0 0.0
        %3957 = vmatmul.mubr.f32.gmra.mrb[0].mxu0 %v3725
        %v3958 = vpop.f32.mrb[0].mxu0
        %v3959 = vadd.f32 %v3645, %v3958
        %v3960 = vpop.f32.mrb[0].mxu0
        %v3961 = vadd.f32 %v3649, %v3960
        %3962 = vmatprep.mubr.f32.mxu0 0.0
        %3963 = vmatmul.mubr.f32.gmra.mrb[0].mxu0 %v3728
        %v3964 = vpop.f32.mrb[0].mxu0
        %v3965 = vadd.f32 %v3645, %v3964
        %v3966 = vpop.f32.mrb[0].mxu0
        %v3967 = vadd.f32 %v3649, %v3966
        %3968 = vmatprep.mubr.f32.mxu0 0.0
        %3969 = vmatmul.mubr.f32.gmra.mrb[0].mxu0 %v3731
        %v3970 = vpop.f32.mrb[0].mxu0
        %v3971 = vadd.f32 %v3645, %v3970
        %v3972 = vpop.f32.mrb[0].mxu0
        %v3973 = vadd.f32 %v3649, %v3972
        %3974 = vmatprep.mubr.f32.mxu0 0.0
        %3975 = vmatmul.mubr.f32.gmra.mrb[0].mxu0 %v3734
        %v3976 = vpop.f32.mrb[0].mxu0
        %v3977 = vadd.f32 %v3645, %v3976
        %v3978 = vpop.f32.mrb[0].mxu0
        %v3979 = vadd.f32 %v3649, %v3978
        %3980 = vmatprep.mubr.f32.mxu0 0.0
        %3981 = vmatmul.mubr.f32.gmra.mrb[0].mxu0 %v3737
        %v3982 = vpop.f32.mrb[0].mxu0
        %v3983 = vadd.f32 %v3645, %v3982
        %v3984 = vpop.f32.mrb[0].mxu0
        %v3985 = vadd.f32 %v3649, %v3984
        %3986 = vmatprep.mubr.f32.mxu0 0.0
        %3987 = vmatmul.mubr.f32.gmra.mrb[0].mxu0 %v3740
        %v3988 = vpop.f32.mrb[0].mxu0
        %v3989 = vadd.f32 %v3645, %v3988
        %v3990 = vpop.f32.mrb[0].mxu0
        %v3991 = vadd.f32 %v3649, %v3990
        %3992 = vmatprep.mubr.f32.mxu0 0.0
        %3993 = vmatmul.mubr.f32.gmra.mrb[0].mxu0 %v3743
        %v3994 = vpop.f32.mrb[0].mxu0
        %v3995 = vadd.f32 %v3645, %v3994
        %v3996 = vpop.f32.mrb[0].mxu0
        %v3997 = vadd.f32 %v3649, %v3996
        %3998 = vmatprep.mubr.f32.mxu0 0.0
        %3999 = vmatmul.mubr.f32.gmra.mrb[0].mxu0 %v3746
        %v4000 = vpop.f32.mrb[0].mxu0
        %v4001 = vadd.f32 %v3645, %v4000
        %v4002 = vpop.f32.mrb[0].mxu0
        %v4003 = vadd.f32 %v3649, %v4002
        %4004 = vdwg.mxu0
        %v4005 = vadd.f32 %v3815, %v277
        %v4006 = vadd.f32 %v3817, %v278
        %v4007 = vadd.f32 %v3821, %v279
        %v4008 = vadd.f32 %v3823, %v280
        %v4009 = vadd.f32 %v3827, %v281
        %v4010 = vadd.f32 %v3829, %v282
        %v4011 = vadd.f32 %v3833, %v283
        %v4012 = vadd.f32 %v3835, %v284
        %v4013 = vadd.f32 %v3839, %v285
        %v4014 = vadd.f32 %v3841, %v286
        %v4015 = vadd.f32 %v3845, %v287
        %v4016 = vadd.f32 %v3847, %v288
        %v4017 = vadd.f32 %v3851, %v289
        %v4018 = vadd.f32 %v3853, %v290
        %v4019 = vadd.f32 %v3857, %v291
        %v4020 = vadd.f32 %v3859, %v292
        %v4021 = vadd.f32 %v3863, %v293
        %v4022 = vadd.f32 %v3865, %v294
        %v4023 = vadd.f32 %v3869, %v295
        %v4024 = vadd.f32 %v3871, %v296
        %v4025 = vadd.f32 %v3875, %v297
        %v4026 = vadd.f32 %v3877, %v298
        %v4027 = vadd.f32 %v3881, %v299
        %v4028 = vadd.f32 %v3883, %v300
        %v4029 = vadd.f32 %v3887, %v301
        %v4030 = vadd.f32 %v3889, %v302
        %v4031 = vadd.f32 %v3893, %v303
        %v4032 = vadd.f32 %v3895, %v304
        %v4033 = vadd.f32 %v3899, %v305
        %v4034 = vadd.f32 %v3901, %v306
        %v4035 = vadd.f32 %v3905, %v307
        %v4036 = vadd.f32 %v3907, %v308
        %v4037 = vadd.f32 %v3911, %v309
        %v4038 = vadd.f32 %v3913, %v310
        %v4039 = vadd.f32 %v3917, %v311
        %v4040 = vadd.f32 %v3919, %v312
        %v4041 = vadd.f32 %v3923, %v313
        %v4042 = vadd.f32 %v3925, %v314
        %v4043 = vadd.f32 %v3929, %v315
        %v4044 = vadd.f32 %v3931, %v316
        %v4045 = vadd.f32 %v3935, %v317
        %v4046 = vadd.f32 %v3937, %v318
        %v4047 = vadd.f32 %v3941, %v319
        %v4048 = vadd.f32 %v3943, %v320
        %v4049 = vadd.f32 %v3947, %v321
        %v4050 = vadd.f32 %v3949, %v322
        %v4051 = vadd.f32 %v3953, %v323
        %v4052 = vadd.f32 %v3955, %v324
        %v4053 = vadd.f32 %v3959, %v325
        %v4054 = vadd.f32 %v3961, %v326
        %v4055 = vadd.f32 %v3965, %v327
        %v4056 = vadd.f32 %v3967, %v328
        %v4057 = vadd.f32 %v3971, %v329
        %v4058 = vadd.f32 %v3973, %v330
        %v4059 = vadd.f32 %v3977, %v331
        %v4060 = vadd.f32 %v3979, %v332
        %v4061 = vadd.f32 %v3983, %v333
        %v4062 = vadd.f32 %v3985, %v334
        %v4063 = vadd.f32 %v3989, %v335
        %v4064 = vadd.f32 %v3991, %v336
        %v4065 = vadd.f32 %v3995, %v337
        %v4066 = vadd.f32 %v3997, %v338
        %v4067 = vadd.f32 %v4001, %v339
        %v4068 = vadd.f32 %v4003, %v340
        %v4069 = vmax.f32 %v4005, 0.0
        %v4070 = vmax.f32 %v4006, 0.0
        %v4071 = vmax.f32 %v4007, 0.0
        %v4072 = vmax.f32 %v4008, 0.0
        %v4073 = vmax.f32 %v4009, 0.0
        %v4074 = vmax.f32 %v4010, 0.0
        %v4075 = vmax.f32 %v4011, 0.0
        %v4076 = vmax.f32 %v4012, 0.0
        %v4077 = vmax.f32 %v4013, 0.0
        %v4078 = vmax.f32 %v4014, 0.0
        %v4079 = vmax.f32 %v4015, 0.0
        %v4080 = vmax.f32 %v4016, 0.0
        %v4081 = vmax.f32 %v4017, 0.0
        %v4082 = vmax.f32 %v4018, 0.0
        %v4083 = vmax.f32 %v4019, 0.0
        %v4084 = vmax.f32 %v4020, 0.0
        %v4085 = vmax.f32 %v4021, 0.0
        %v4086 = vmax.f32 %v4022, 0.0
        %v4087 = vmax.f32 %v4023, 0.0
        %v4088 = vmax.f32 %v4024, 0.0
        %v4089 = vmax.f32 %v4025, 0.0
        %v4090 = vmax.f32 %v4026, 0.0
        %v4091 = vmax.f32 %v4027, 0.0
        %v4092 = vmax.f32 %v4028, 0.0
        %v4093 = vmax.f32 %v4029, 0.0
        %v4094 = vmax.f32 %v4030, 0.0
        %v4095 = vmax.f32 %v4031, 0.0
        %v4096 = vmax.f32 %v4032, 0.0
        %v4097 = vmax.f32 %v4033, 0.0
        %v4098 = vmax.f32 %v4034, 0.0
        %v4099 = vmax.f32 %v4035, 0.0
        %v4100 = vmax.f32 %v4036, 0.0
        %v4101 = vmax.f32 %v4037, 0.0
        %v4102 = vmax.f32 %v4038, 0.0
        %v4103 = vmax.f32 %v4039, 0.0
        %v4104 = vmax.f32 %v4040, 0.0
        %v4105 = vmax.f32 %v4041, 0.0
        %v4106 = vmax.f32 %v4042, 0.0
        %v4107 = vmax.f32 %v4043, 0.0
        %v4108 = vmax.f32 %v4044, 0.0
        %v4109 = vmax.f32 %v4045, 0.0
        %v4110 = vmax.f32 %v4046, 0.0
        %v4111 = vmax.f32 %v4047, 0.0
        %v4112 = vmax.f32 %v4048, 0.0
        %v4113 = vmax.f32 %v4049, 0.0
        %v4114 = vmax.f32 %v4050, 0.0
        %v4115 = vmax.f32 %v4051, 0.0
        %v4116 = vmax.f32 %v4052, 0.0
        %v4117 = vmax.f32 %v4053, 0.0
        %v4118 = vmax.f32 %v4054, 0.0
        %v4119 = vmax.f32 %v4055, 0.0
        %v4120 = vmax.f32 %v4056, 0.0
        %v4121 = vmax.f32 %v4057, 0.0
        %v4122 = vmax.f32 %v4058, 0.0
        %v4123 = vmax.f32 %v4059, 0.0
        %v4124 = vmax.f32 %v4060, 0.0
        %v4125 = vmax.f32 %v4061, 0.0
        %v4126 = vmax.f32 %v4062, 0.0
        %v4127 = vmax.f32 %v4063, 0.0
        %v4128 = vmax.f32 %v4064, 0.0
        %v4129 = vmax.f32 %v4065, 0.0
        %v4130 = vmax.f32 %v4066, 0.0
        %v4131 = vmax.f32 %v4067, 0.0
        %v4132 = vmax.f32 %v4068, 0.0
        %4133 = vst [vmem:[%s271] sm:$0xff] %v4069
        %4134 = vst [vmem:[%s271 + $0x8] sm:$0xff] %v4070
        %4135 = vst [vmem:[%s271 + $0x10] sm:$0xff] %v4071
        %4136 = vst [vmem:[%s271 + $0x18] sm:$0xff] %v4072
        %4137 = vst [vmem:[%s271 + $0x20] sm:$0xff] %v4073
        %4138 = vst [vmem:[%s271 + $0x28] sm:$0xff] %v4074
        %4139 = vst [vmem:[%s271 + $0x30] sm:$0xff] %v4075
        %4140 = vst [vmem:[%s271 + $0x38] sm:$0xff] %v4076
        %4141 = vst [vmem:[%s271 + $0x40] sm:$0xff] %v4077
        %4142 = vst [vmem:[%s271 + $0x48] sm:$0xff] %v4078
        %4143 = vst [vmem:[%s271 + $0x50] sm:$0xff] %v4079
        %4144 = vst [vmem:[%s271 + $0x58] sm:$0xff] %v4080
        %4145 = vst [vmem:[%s271 + $0x60] sm:$0xff] %v4081
        %4146 = vst [vmem:[%s271 + $0x68] sm:$0xff] %v4082
        %4147 = vst [vmem:[%s271 + $0x70] sm:$0xff] %v4083
        %4148 = vst [vmem:[%s271 + $0x78] sm:$0xff] %v4084
        %4149 = vst [vmem:[%s271 + $0x80] sm:$0xff] %v4085
        %4150 = vst [vmem:[%s271 + $0x88] sm:$0xff] %v4086
        %4151 = vst [vmem:[%s271 + $0x90] sm:$0xff] %v4087
        %4152 = vst [vmem:[%s271 + $0x98] sm:$0xff] %v4088
        %4153 = vst [vmem:[%s271 + $0xa0] sm:$0xff] %v4089
        %4154 = vst [vmem:[%s271 + $0xa8] sm:$0xff] %v4090
        %4155 = vst [vmem:[%s271 + $0xb0] sm:$0xff] %v4091
        %4156 = vst [vmem:[%s271 + $0xb8] sm:$0xff] %v4092
        %4157 = vst [vmem:[%s271 + $0xc0] sm:$0xff] %v4093
        %4158 = vst [vmem:[%s271 + $0xc8] sm:$0xff] %v4094
        %4159 = vst [vmem:[%s271 + $0xd0] sm:$0xff] %v4095
        %4160 = vst [vmem:[%s271 + $0xd8] sm:$0xff] %v4096
        %4161 = vst [vmem:[%s271 + $0xe0] sm:$0xff] %v4097
        %4162 = vst [vmem:[%s271 + $0xe8] sm:$0xff] %v4098
        %4163 = vst [vmem:[%s271 + $0xf0] sm:$0xff] %v4099
        %4164 = vst [vmem:[%s271 + $0xf8] sm:$0xff] %v4100
        %4165 = vst [vmem:[%s271 + $0x100] sm:$0xff] %v4101
        %4166 = vst [vmem:[%s271 + $0x108] sm:$0xff] %v4102
        %4167 = vst [vmem:[%s271 + $0x110] sm:$0xff] %v4103
        %4168 = vst [vmem:[%s271 + $0x118] sm:$0xff] %v4104
        %4169 = vst [vmem:[%s271 + $0x120] sm:$0xff] %v4105
        %4170 = vst [vmem:[%s271 + $0x128] sm:$0xff] %v4106
        %4171 = vst [vmem:[%s271 + $0x130] sm:$0xff] %v4107
        %4172 = vst [vmem:[%s271 + $0x138] sm:$0xff] %v4108
        %4173 = vst [vmem:[%s271 + $0x140] sm:$0xff] %v4109
        %4174 = vst [vmem:[%s271 + $0x148] sm:$0xff] %v4110
        %4175 = vst [vmem:[%s271 + $0x150] sm:$0xff] %v4111
        %4176 = vst [vmem:[%s271 + $0x158] sm:$0xff] %v4112
        %4177 = vst [vmem:[%s271 + $0x160] sm:$0xff] %v4113
        %4178 = vst [vmem:[%s271 + $0x168] sm:$0xff] %v4114
        %4179 = vst [vmem:[%s271 + $0x170] sm:$0xff] %v4115
        %4180 = vst [vmem:[%s271 + $0x178] sm:$0xff] %v4116
        %4181 = vst [vmem:[%s271 + $0x180] sm:$0xff] %v4117
        %4182 = vst [vmem:[%s271 + $0x188] sm:$0xff] %v4118
        %4183 = vst [vmem:[%s271 + $0x190] sm:$0xff] %v4119
        %4184 = vst [vmem:[%s271 + $0x198] sm:$0xff] %v4120
        %4185 = vst [vmem:[%s271 + $0x1a0] sm:$0xff] %v4121
        %4186 = vst [vmem:[%s271 + $0x1a8] sm:$0xff] %v4122
        %4187 = vst [vmem:[%s271 + $0x1b0] sm:$0xff] %v4123
        %4188 = vst [vmem:[%s271 + $0x1b8] sm:$0xff] %v4124
        %4189 = vst [vmem:[%s271 + $0x1c0] sm:$0xff] %v4125
        %4190 = vst [vmem:[%s271 + $0x1c8] sm:$0xff] %v4126
        %4191 = vst [vmem:[%s271 + $0x1d0] sm:$0xff] %v4127
        %4192 = vst [vmem:[%s271 + $0x1d8] sm:$0xff] %v4128
        %4193 = vst [vmem:[%s271 + $0x1e0] sm:$0xff] %v4129
        %4194 = vst [vmem:[%s271 + $0x1e8] sm:$0xff] %v4130
        %4195 = vst [vmem:[%s271 + $0x1f0] sm:$0xff] %v4131
        %4196 = vst [vmem:[%s271 + $0x1f8] sm:$0xff] %v4132
        %s4197 = sand.u32 %s181, 1
        %s4198 = scalar_lea.sflag [#allocation4], %s4197
        %s4199 = sand.u32 %s181, 1
        %s4200 = smul.addr %s4199, 512
        %s4201 = scalar_lea.vmem [#allocation3], %s4200
        // Predicated region
        $region49: #{bottleneck_forward.1} parent=47 // pred_check
          %p4202 = pneg %p191
        $region50: #{bottleneck_forward.1} parent=47 // pred_check_branch
          %4204 = sbr.rel (%p4202) target = $region52
        $region51: #{bottleneck_forward.1} parent=47 // pred_region
          %s4206 = ssub.s32 8192, 8192
          %4207 = vsyncadd %s4198, %s4206
          %s4208 = smul.addr %s21, 64
          %s4209 = smul.addr %s4208, 128
          %s4210 = scalar_lea.hbm %s7, %s4209
          %s4211 = sshll.u32 %s4201, 4
          %s4212 = int_to_ptr.vmem [resolvable:$true] %s4211
          %4217 = dma.vmem_to_hbm [thread:$0]  %s4212, 8192, %s4210, %s4198, 256, 256, 16
        $region52: #{bottleneck_forward.1} parent=47 // pred_fallthru
          _
      $region48: #{bottleneck_forward.1} parent=5 // pred_fallthru
        _
      %p4218 = scmp.le.s32.totalorder 2, %s16
      // Predicated region
      $region53: #{bottleneck_forward.1} parent=5 // pred_check
        %p4219 = pneg %p4218
      $region54: #{bottleneck_forward.1} parent=5 // pred_check_branch
        %4221 = sbr.rel (%p4219) target = $region56
      $region55: #{bottleneck_forward.1} parent=5 // pred_region
        %s4222 = ssub.s32 %s16, 2
        // Predicated region
        $region57: #{bottleneck_forward.1} parent=55 // pred_check
          %p4223 = pneg %p197
        $region58: #{bottleneck_forward.1} parent=55 // pred_check_branch
          %4225 = sbr.rel (%p4223) target = $region60
        $region59: #{bottleneck_forward.1} parent=55 // pred_region
          %s4226 = sand.u32 %s182, 1
          %s4227 = scalar_lea.sflag [#allocation4], %s4226
          %s4228 = sand.u32 %s182, 1
          %s4229 = smul.addr %s4228, 512
          %s4230 = scalar_lea.vmem [#allocation3], %s4229
          %4231 = dma.done %s4227, 8192
        $region60: #{bottleneck_forward.1} parent=55 // pred_fallthru
          _
      $region56: #{bottleneck_forward.1} parent=5 // pred_fallthru
        _
    $region6: #{bottleneck_forward.1} parent=1 // loop_footer
      %s20 = sadd.s32 1, %s16
    $region7: #{bottleneck_forward.1} parent=1 // loop_footer_branch
      %15 = sbr.rel target = $region3
    $region8: #{bottleneck_forward.1} parent=1 // loop_exit
      _
    %4232 = vsyncpa [#allocation4], 1
    %s4233 = scalar_lea.sflag [#allocation4], 1
    %4234 = vsyncpa %s4233, 1

</llo_original>
